<compile_context>
chip_gen: v7x
topology: tpu7x:2x2x1
jax: 0.10.0
libtpu: 0.0.40
codegen_flags: <defaults>
</compile_context>

<pallas_src>
import functools
import math

import jax
import jax.numpy as jnp
from jax.experimental import pallas as pl
from jax.experimental.pallas import tpu as pltpu


def _round_up(x, m):
    return ((x + m - 1) // m) * m


def _vmem_limits():
    """Generation-aware VMEM limits: (vmem_limit_bytes, per-kernel tile budget)."""
    cap = 64 * 1024 * 1024
    try:
        info = pltpu.get_tpu_info()
        cap = int(getattr(info, "vmem_capacity_bytes", cap))
    except Exception:
        pass
    # v5e/v6e: 128 MiB physical -> 64 MiB limit; v7x: 64 MiB physical -> 32 MiB limit.
    limit = max(32 * 1024 * 1024, min(cap // 2, 64 * 1024 * 1024))
    budget = limit // 3
    return limit, budget


# ---------------------------------------------------------------------------
# Pallas kernel A: fused 3x3 conv over a row tile (+2-row halo) + bias
#                  (+ optional SiLU, + optional sigmoid on a lane range).
#   a_ref    : (TH*Wp, 3*C)    bf16   main row tile of the haloed image
#   b_ref    : (2*Wp, 3*C)     bf16   2-row bottom halo
#   w_ref    : (3, 3*C, Coutp) bf16   per-vertical-tap weight (BN scale pre-folded)
#   bias_ref : (1, Coutp)      f32
#   o_ref    : (TH*Wp, Coutp)  out_dtype
#   comb_ref : (TH*Wp + 2*Wp, 3*C) bf16 VMEM scratch (tile + halo, contiguous rows)
# ---------------------------------------------------------------------------
def _conv3x3_kernel(a_ref, b_ref, w_ref, bias_ref, o_ref, comb_ref, *,
                    Wp, THW, apply_silu, sigmoid_lanes):
    comb_ref[pl.ds(0, THW), :] = a_ref[...]
    comb_ref[pl.ds(THW, 2 * Wp), :] = b_ref[...]
    acc = jnp.dot(comb_ref[pl.ds(0, THW), :], w_ref[0],
                  preferred_element_type=jnp.float32)
    acc = acc + jnp.dot(comb_ref[pl.ds(Wp, THW), :], w_ref[1],
                        preferred_element_type=jnp.float32)
    acc = acc + jnp.dot(comb_ref[pl.ds(2 * Wp, THW), :], w_ref[2],
                        preferred_element_type=jnp.float32)
    y = acc + bias_ref[...]
    if apply_silu:
        y = y * jax.nn.sigmoid(y)
    if sigmoid_lanes is not None:
        lo, hi = sigmoid_lanes
        lane = jax.lax.broadcasted_iota(jnp.int32, y.shape, 1)
        y = jnp.where((lane >= lo) & (lane < hi), jax.nn.sigmoid(y), y)
    o_ref[...] = y.astype(o_ref.dtype)


def conv3x3_fused(xhal, w, bias, *, H_pad, Wp, TH, apply_silu, sigmoid_lanes,
                  out_dtype, vmem_limit):
    """xhal: (N, (H_pad+2)*Wp, 3C) bf16 haloed image (horizontal taps in lanes);
    w: (3, 3C, Coutp) bf16; bias: (1, Coutp) f32.  Returns (N, H_pad*Wp, Coutp)."""
    N, _, C3 = xhal.shape
    Coutp = w.shape[2]
    T = H_pad // TH
    THW = TH * Wp
    kernel = functools.partial(_conv3x3_kernel, Wp=Wp, THW=THW,
                               apply_silu=apply_silu, sigmoid_lanes=sigmoid_lanes)
    flops = 2 * N * H_pad * Wp * C3 * Coutp * 3
    trans = N * H_pad * Wp * Coutp if (apply_silu or sigmoid_lanes is not None) else 0
    bytes_acc = (xhal.size * xhal.dtype.itemsize + w.size * 2 + bias.size * 4
                 + N * H_pad * Wp * Coutp * jnp.dtype(out_dtype).itemsize)
    return pl.pallas_call(
        kernel,
        out_shape=jax.ShapeDtypeStruct((N, H_pad * Wp, Coutp), out_dtype),
        grid_spec=pltpu.PrefetchScalarGridSpec(
            num_scalar_prefetch=0,
            grid=(N, T),
            in_specs=[
                # main row tile: haloed rows [t*TH, (t+1)*TH)
                pl.BlockSpec((None, THW, C3), lambda n, t: (n, t, 0)),
                # 2-row bottom halo: haloed rows [(t+1)*TH, (t+1)*TH + 2)
                pl.BlockSpec((None, 2 * Wp, C3),
                             lambda n, t: (n, (t + 1) * (TH // 2), 0)),
                pl.BlockSpec((3, C3, Coutp), lambda n, t: (0, 0, 0)),
                pl.BlockSpec((1, Coutp), lambda n, t: (0, 0)),
            ],
            out_specs=pl.BlockSpec((None, THW, Coutp), lambda n, t: (n, t, 0)),
            scratch_shapes=[pltpu.VMEM((THW + 2 * Wp, C3), jnp.bfloat16)],
        ),
        compiler_params=pltpu.CompilerParams(
            dimension_semantics=("parallel", "parallel"),
            vmem_limit_bytes=int(vmem_limit)),
        cost_estimate=pl.CostEstimate(flops=int(flops), transcendentals=int(trans),
                                      bytes_accessed=int(bytes_acc)),
    )(xhal, xhal, w, bias)


# ---------------------------------------------------------------------------
# Pallas kernel B: tiled matmul + bias for the deformable conv.
# ---------------------------------------------------------------------------
def _matmul_bias_kernel(cols_ref, w_ref, bias_ref, o_ref):
    acc = jnp.dot(cols_ref[...], w_ref[...], preferred_element_type=jnp.float32)
    o_ref[...] = (acc + bias_ref[...]).astype(o_ref.dtype)


def matmul_bias(cols, w, bias, *, vmem_limit, budget):
    """cols: (N, HW, K) bf16; w: (K, Coutp) bf16; bias: (1, Coutp) f32.
    Returns (N, HWp, Coutp) f32 (HWp = HW rounded up to the row tile)."""
    N, HW, K = cols.shape
    Coutp = w.shape[1]
    HW128 = _round_up(HW, 128)

    # Pick the largest row tile that fits the (double-buffered) VMEM budget, then pad
    # HW up to a multiple of it.
    th = min(128, HW128)
    for cand in (2048, 1024, 512, 256, 128):
        if cand > HW128:
            continue
        work = 2 * (cand * K * 2 + cand * Coutp * 4) + K * Coutp * 2 + cand * Coutp * 4
        if work <= budget:
            th = cand
            break
    HWp = _round_up(HW, th)
    if HWp != HW:
        cols = jnp.pad(cols, ((0, 0), (0, HWp - HW), (0, 0)))

    grid = (N, HWp // th)
    flops = 2 * N * HWp * K * Coutp
    bytes_acc = (cols.size * cols.dtype.itemsize + w.size * 2 + bias.size * 4
                 + N * HWp * Coutp * 4)
    return pl.pallas_call(
        _matmul_bias_kernel,
        out_shape=jax.ShapeDtypeStruct((N, HWp, Coutp), jnp.float32),
        grid_spec=pltpu.PrefetchScalarGridSpec(
            num_scalar_prefetch=0,
            grid=grid,
            in_specs=[
                pl.BlockSpec((None, th, K), lambda n, t: (n, t, 0)),
                pl.BlockSpec((K, Coutp), lambda n, t: (0, 0)),
                pl.BlockSpec((1, Coutp), lambda n, t: (0, 0)),
            ],
            out_specs=pl.BlockSpec((None, th, Coutp), lambda n, t: (n, t, 0)),
        ),
        compiler_params=pltpu.CompilerParams(
            dimension_semantics=("parallel", "parallel"),
            vmem_limit_bytes=int(vmem_limit)),
        cost_estimate=pl.CostEstimate(flops=int(flops), transcendentals=0,
                                      bytes_accessed=int(bytes_acc)),
    )(cols, w, bias)


# ---------------------------------------------------------------------------
# JAX glue: fold the 3 horizontal taps of a 3x3 'same' conv into the channel dim,
# zero-pad rows by 1 top / (H_pad+1-H) bottom, pad W to Wp (multiple of 8), flatten
# to ((H_pad+2)*Wp, 3C) per image.  Vertical taps are resolved inside the Pallas
# kernel by row-shifted slices (shift = Wp, 2*Wp -> sublane-aligned).
# ---------------------------------------------------------------------------
def h_triple(x_nhwc, H_pad, Wp):
    N, H, W, C = x_nhwc.shape
    xw = jnp.pad(x_nhwc, ((0, 0), (0, 0), (1, 1), (0, 0)))                   # (N,H,W+2,C)
    t = jnp.concatenate([xw[:, :, j:j + W, :] for j in range(3)], axis=-1)   # (N,H,W,3C)
    t = jnp.pad(t, ((0, 0), (1, H_pad + 1 - H), (0, Wp - W), (0, 0)))        # (N,H_pad+2,Wp,3C)
    return t.reshape(N, (H_pad + 2) * Wp, 3 * C)


def _pick_row_tile(H, Wp, C3, Coutp, out_itemsize, budget):
    """Largest even image-row tile whose double-buffered working set fits the budget."""
    H2 = _round_up(max(H, 2), 2)
    for cand in (1024, 512, 256, 128, 64, 32, 16, 8, 4, 2):
        if cand > H2:
            continue
        in_tile = cand * Wp * C3 * 2 + 2 * Wp * C3 * 2
        out_tile = cand * Wp * Coutp * out_itemsize
        scratch = (cand + 2) * Wp * C3 * 2
        acc = cand * Wp * Coutp * 4
        work = 2 * (in_tile + out_tile) + scratch + acc + 3 * C3 * Coutp * 2
        if work <= budget:
            return cand
    return 2


# ---------------------------------------------------------------------------
# JAX glue: modulated deformable im2col (mmcv semantics: bilinear, zero outside,
# mask modulation). Offsets/mask are per output-pixel per-tap.
# TODO(synk): fuse this data-dependent bilinear gather into a Pallas kernel with the
#             dcn matmul (VMEM-resident y tile + VPU bilinear weights); kept in XLA glue.
# ---------------------------------------------------------------------------
def deform_im2col(y, off_h, off_w, mask):
    # y: (N,H,W,C) bf16; off_h/off_w/mask: (N,H,W,9) f32; taps k = i*3 + j
    N, H, W, C = y.shape
    ii = jnp.repeat(jnp.arange(3, dtype=jnp.float32), 3)   # i per tap
    jj = jnp.tile(jnp.arange(3, dtype=jnp.float32), 3)     # j per tap
    hh = jnp.arange(H, dtype=jnp.float32)
    ww = jnp.arange(W, dtype=jnp.float32)
    # sample positions: h_out*stride - pad + i*dil + off  (stride=1, pad=1, dil=1)
    h_im = hh[None, :, None, None] - 1.0 + ii[None, None, None, :] + off_h
    w_im = ww[None, None, :, None] - 1.0 + jj[None, None, None, :] + off_w
    valid = (h_im > -1.0) & (w_im > -1.0) & (h_im < H) & (w_im < W)
    h0 = jnp.floor(h_im)
    w0 = jnp.floor(w_im)
    lh = h_im - h0
    lw = w_im - w0
    h0i = h0.astype(jnp.int32)
    w0i = w0.astype(jnp.int32)
    y_flat = y.reshape(N, H * W, C)

    def corner(hc, wc, wgt):
        ok = (hc >= 0) & (hc < H) & (wc >= 0) & (wc < W)
        idx = jnp.clip(hc, 0, H - 1) * W + jnp.clip(wc, 0, W - 1)            # (N,H,W,9)
        v = jnp.take_along_axis(y_flat, idx.reshape(N, -1)[..., None], axis=1)
        v = v.reshape(N, H, W, 9, C).astype(jnp.float32)
        return v * (wgt * ok.astype(jnp.float32))[..., None]

    val = (corner(h0i,     w0i,     (1.0 - lh) * (1.0 - lw)) +
           corner(h0i,     w0i + 1, (1.0 - lh) * lw) +
           corner(h0i + 1, w0i,     lh * (1.0 - lw)) +
           corner(h0i + 1, w0i + 1, lh * lw))
    val = val * (valid.astype(jnp.float32) * mask)[..., None]
    return val.reshape(N, H * W, 9 * C)


# ---------------------------------------------------------------------------
# Parameter init (deterministic). Shapes follow the PyTorch module __init__.
# Weights stored pre-flattened, BN-folded, lane-padded to a multiple of 128, bf16.
# ---------------------------------------------------------------------------
def init_params(key, c1, c2, e=0.5):
    c_ = int(c2 * e)
    k1, k2, k3, k4 = jax.random.split(key, 4)

    def flat3(w_oihw):   # (Cout, Cin, 3, 3) -> (3, 3*Cin, Cout): [i, j*Cin+c, o]
        return jnp.transpose(w_oihw, (2, 3, 1, 0)).reshape(3, 3 * w_oihw.shape[1],
                                                           w_oihw.shape[0])

    def flat9(w_oihw):   # (Cout, Cin, 3, 3) -> (9*Cin, Cout): [(i*3+j)*Cin+c, o]
        return jnp.transpose(w_oihw, (2, 3, 1, 0)).reshape(9 * w_oihw.shape[1],
                                                           w_oihw.shape[0])

    def pad_lane(a, to):
        p = to - a.shape[-1]
        return jnp.pad(a, [(0, 0)] * (a.ndim - 1) + [(0, p)]) if p else a

    c_p = _round_up(c_, 128)
    c27p = _round_up(27, 128)
    c2p = _round_up(c2, 128)

    # cv1: Conv2d(c1, c_, 3, bias=False) + BatchNorm2d(c_) (default stats, eval fold)
    cv1_w = jax.random.normal(k1, (c_, c1, 3, 3), jnp.float32) * 0.1
    eps = 1e-5
    bn_scale = jnp.ones((c_,), jnp.float32) / jnp.sqrt(jnp.ones((c_,), jnp.float32) + eps)
    bn_bias = jnp.zeros((c_,), jnp.float32)
    cv1_wf = pad_lane(flat3(cv1_w) * bn_scale[None, None, :], c_p).astype(jnp.bfloat16)
    cv1_bf = pad_lane(bn_bias[None, :], c_p).astype(jnp.float32)

    # conv_offset: Conv2d(c_, 27, 3, bias=True). The PyTorch module zero-inits it
    # (degenerate: offsets=0, mask=0.5); use small deterministic random values instead
    # so the deformable sampling path is exercised.
    offc_w = jax.random.normal(k2, (27, c_, 3, 3), jnp.float32) * 0.05
    offc_b = jax.random.normal(k3, (27,), jnp.float32) * 0.05
    offc_wf = pad_lane(flat3(offc_w), c27p).astype(jnp.bfloat16)
    offc_bf = pad_lane(offc_b[None, :], c27p).astype(jnp.float32)

    # deformable conv weight (c2, c_, 3, 3): uniform(-stdv, stdv), bias zeros
    stdv = 1.0 / math.sqrt(c_ * 9)
    dcn_w = jax.random.uniform(k4, (c2, c_, 3, 3), jnp.float32, -stdv, stdv)
    dcn_wf = pad_lane(flat9(dcn_w), c2p).astype(jnp.bfloat16)
    dcn_bf = jnp.zeros((1, c2p), jnp.float32)

    return dict(cv1_w=cv1_wf, cv1_b=cv1_bf,
                offc_w=offc_wf, offc_b=offc_bf,
                dcn_w=dcn_wf, dcn_b=dcn_bf)


# ---------------------------------------------------------------------------
# Forward pass of Bottleneck_MDConv
# ---------------------------------------------------------------------------
def bottleneck_mdconv_forward(params, x_nchw, *, c2, e=0.5, shortcut=True):
    vmem_limit, budget = _vmem_limits()
    x = jnp.transpose(x_nchw, (0, 2, 3, 1)).astype(jnp.float32)   # NCHW -> NHWC
    N, H, W, c1 = x.shape
    c_ = int(c2 * e)
    HW = H * W
    c_p = params['cv1_w'].shape[2]
    c27p = params['offc_w'].shape[2]
    c2p = params['dcn_w'].shape[1]

    Wp = _round_up(W, 8)                       # sublane-aligned row pitch
    C3a, C3b = 3 * c1, 3 * c_
    TH = _pick_row_tile(H, Wp, max(C3a, C3b), max(c_p, c27p), 4, budget)
    H_pad = _round_up(H, TH)

    # --- cv1: 3x3 conv + BN + SiLU (row-tiled Pallas kernel, bf16 in, bf16 out) ---
    xhal1 = h_triple(x.astype(jnp.bfloat16), H_pad, Wp)           # (N,(H_pad+2)Wp,3c1)
    y_p = conv3x3_fused(xhal1, params['cv1_w'], params['cv1_b'],
                        H_pad=H_pad, Wp=Wp, TH=TH, apply_silu=True,
                        sigmoid_lanes=None, out_dtype=jnp.bfloat16,
                        vmem_limit=vmem_limit)
    y_img = y_p.reshape(N, H_pad, Wp, c_p)[:, :H, :W, :c_]        # (N,H,W,c_) bf16

    # --- conv_offset: 3x3 conv + bias; mask sigmoid (lanes 18..26) fused in-kernel ---
    xhal2 = h_triple(y_img, H_pad, Wp)                            # (N,(H_pad+2)Wp,3c_)
    off_p = conv3x3_fused(xhal2, params['offc_w'], params['offc_b'],
                          H_pad=H_pad, Wp=Wp, TH=TH, apply_silu=False,
                          sigmoid_lanes=(18, 27), out_dtype=jnp.float32,
                          vmem_limit=vmem_limit)
    off = off_p.reshape(N, H_pad, Wp, c27p)[:, :H, :W, :27]
    # channel 2k -> dh of tap k, 2k+1 -> dw of tap k; last 9 channels -> mask (sigmoided)
    off_h = off[..., 0:18:2]
    off_w = off[..., 1:18:2]
    mask = off[..., 18:27]

    # --- modulated deformable conv: sampled columns @ weight (+ bias) ---
    cols = deform_im2col(y_img, off_h, off_w, mask).astype(jnp.bfloat16)    # (N,HW,9c_)
    out_p = matmul_bias(cols, params['dcn_w'], params['dcn_b'],
                        vmem_limit=vmem_limit, budget=budget)               # (N,HWp,c2p)
    out = out_p[:, :HW, :c2].reshape(N, H, W, c2)
    if shortcut and (c1 == c2):
        out = out + x                                              # unpadded residual add
    return jnp.transpose(out, (0, 3, 1, 2))                       # NHWC -> NCHW


if __name__ == "__main__":
    key = jax.random.PRNGKey(0)
    kp, kx = jax.random.split(key)

    N, c1, c2, H, W = 2, 4, 4, 16, 16
    params = init_params(kp, c1, c2, e=0.5)
    x = jax.random.normal(kx, (N, c1, H, W), jnp.float32)

    fwd = jax.jit(functools.partial(bottleneck_mdconv_forward,
                                    c2=c2, e=0.5, shortcut=True))
    out = jax.block_until_ready(fwd(params, x))

    assert out.shape == (N, c2, H, W), out.shape
    assert bool(jnp.all(jnp.isfinite(out)))
    print("KERNEL_OK")
</pallas_src>

<mosaic_0001>
module attributes {stable_mosaic.version = 11 : i64} {
  func.func @_conv3x3_kernel(%arg0: i32, %arg1: i32, %arg2: memref<1x256x12xbf16, #tpu.memory_space<vmem>>, %arg3: memref<1x32x12xbf16, #tpu.memory_space<vmem>>, %arg4: memref<3x12x128xbf16, #tpu.memory_space<vmem>>, %arg5: memref<1x128xf32, #tpu.memory_space<vmem>>, %arg6: memref<1x256x128xbf16, #tpu.memory_space<vmem>>, %arg7: memref<288x12xbf16, #tpu.memory_space<vmem>>) attributes {dimension_semantics = [#tpu.dimension_semantics<parallel>, #tpu.dimension_semantics<parallel>], iteration_bounds = array<i64: 2, 1>, scalar_prefetch = 0 : i64, scratch_operands = 1 : i64, tpu.core_type = #tpu.core_type<tc>, window_params = [{transform_indices = @transform_0, window_bounds = array<i64: 1, 256, 12>}, {transform_indices = @transform_1, window_bounds = array<i64: 1, 32, 12>}, {pipeline_mode = #tpu.pipeline_mode<synchronous>, transform_indices = @transform_2, window_bounds = array<i64: 3, 12, 128>}, {pipeline_mode = #tpu.pipeline_mode<synchronous>, transform_indices = @transform_3, window_bounds = array<i64: 1, 128>}, {transform_indices = @transform_4, window_bounds = array<i64: 1, 256, 128>}]} {
    %c0 = arith.constant 0 : index
    %c0_0 = arith.constant 0 : index
    %c0_1 = arith.constant 0 : index
    %0 = vector.load %arg2[%c0, %c0_0, %c0_1] : memref<1x256x12xbf16, #tpu.memory_space<vmem>>, vector<1x256x12xbf16>
    %1 = vector.shape_cast %0 : vector<1x256x12xbf16> to vector<256x12xbf16>
    %c0_2 = arith.constant 0 : index
    %c0_3 = arith.constant 0 : index
    %2 = vector.load %arg7[%c0_2, %c0_3] : memref<288x12xbf16, #tpu.memory_space<vmem>>, vector<256x12xbf16>
    tpu.vector_store %arg7[%c0_2, %c0_3], %1 {strides = array<i32>} : memref<288x12xbf16, #tpu.memory_space<vmem>>, vector<256x12xbf16>,
    %c0_4 = arith.constant 0 : index
    %c0_5 = arith.constant 0 : index
    %c0_6 = arith.constant 0 : index
    %3 = vector.load %arg3[%c0_4, %c0_5, %c0_6] : memref<1x32x12xbf16, #tpu.memory_space<vmem>>, vector<1x32x12xbf16>
    %4 = vector.shape_cast %3 : vector<1x32x12xbf16> to vector<32x12xbf16>
    %c256 = arith.constant 256 : index
    %c0_7 = arith.constant 0 : index
    %5 = vector.load %arg7[%c256, %c0_7] : memref<288x12xbf16, #tpu.memory_space<vmem>>, vector<32x12xbf16>
    tpu.vector_store %arg7[%c256, %c0_7], %4 {strides = array<i32>} : memref<288x12xbf16, #tpu.memory_space<vmem>>, vector<32x12xbf16>,
    %c0_8 = arith.constant 0 : index
    %c0_9 = arith.constant 0 : index
    %6 = vector.load %arg7[%c0_8, %c0_9] : memref<288x12xbf16, #tpu.memory_space<vmem>>, vector<256x12xbf16>
    %c0_10 = arith.constant 0 : index
    %c0_11 = arith.constant 0 : index
    %c0_12 = arith.constant 0 : index
    %7 = vector.load %arg4[%c0_10, %c0_11, %c0_12] : memref<3x12x128xbf16, #tpu.memory_space<vmem>>, vector<1x12x128xbf16>
    %8 = vector.shape_cast %7 : vector<1x12x128xbf16> to vector<12x128xbf16>
    %cst = arith.constant dense<0.000000e+00> : vector<256x128xf32>
    %9 = tpu.matmul %6, %8, %cst {dimension_numbers = #tpu.dot_dimension_numbers<[1], [0], [0], [1], [0, 0, 1, 1], [], []>} : vector<256x12xbf16>, vector<12x128xbf16>, vector<256x128xf32> -> vector<256x128xf32>
    %c16 = arith.constant 16 : index
    %c0_13 = arith.constant 0 : index
    %10 = vector.load %arg7[%c16, %c0_13] : memref<288x12xbf16, #tpu.memory_space<vmem>>, vector<256x12xbf16>
    %c1 = arith.constant 1 : index
    %c0_14 = arith.constant 0 : index
    %c0_15 = arith.constant 0 : index
    %11 = vector.load %arg4[%c1, %c0_14, %c0_15] : memref<3x12x128xbf16, #tpu.memory_space<vmem>>, vector<1x12x128xbf16>
    %12 = vector.shape_cast %11 : vector<1x12x128xbf16> to vector<12x128xbf16>
    %cst_16 = arith.constant dense<0.000000e+00> : vector<256x128xf32>
    %13 = tpu.matmul %10, %12, %cst_16 {dimension_numbers = #tpu.dot_dimension_numbers<[1], [0], [0], [1], [0, 0, 1, 1], [], []>} : vector<256x12xbf16>, vector<12x128xbf16>, vector<256x128xf32> -> vector<256x128xf32>
    %14 = arith.addf %9, %13 : vector<256x128xf32>
    %c32 = arith.constant 32 : index
    %c0_17 = arith.constant 0 : index
    %15 = vector.load %arg7[%c32, %c0_17] : memref<288x12xbf16, #tpu.memory_space<vmem>>, vector<256x12xbf16>
    %c2 = arith.constant 2 : index
    %c0_18 = arith.constant 0 : index
    %c0_19 = arith.constant 0 : index
    %16 = vector.load %arg4[%c2, %c0_18, %c0_19] : memref<3x12x128xbf16, #tpu.memory_space<vmem>>, vector<1x12x128xbf16>
    %17 = vector.shape_cast %16 : vector<1x12x128xbf16> to vector<12x128xbf16>
    %cst_20 = arith.constant dense<0.000000e+00> : vector<256x128xf32>
    %18 = tpu.matmul %15, %17, %cst_20 {dimension_numbers = #tpu.dot_dimension_numbers<[1], [0], [0], [1], [0, 0, 1, 1], [], []>} : vector<256x12xbf16>, vector<12x128xbf16>, vector<256x128xf32> -> vector<256x128xf32>
    %19 = arith.addf %14, %18 : vector<256x128xf32>
    %c0_21 = arith.constant 0 : index
    %c0_22 = arith.constant 0 : index
    %20 = vector.load %arg5[%c0_21, %c0_22] : memref<1x128xf32, #tpu.memory_space<vmem>>, vector<1x128xf32>
    %21 = vector.broadcast %20 : vector<1x128xf32> to vector<256x128xf32>
    %22 = arith.addf %19, %21 : vector<256x128xf32>
    %23 = arith.negf %22 : vector<256x128xf32>
    %24 = math.exp %23 : vector<256x128xf32>
    %cst_23 = arith.constant 1.000000e+00 : f32
    %25 = vector.broadcast %cst_23 : f32 to vector<256x128xf32>
    %26 = arith.addf %25, %24 : vector<256x128xf32>
    %27 = arith.divf %25, %26 : vector<256x128xf32>
    %28 = arith.mulf %22, %27 : vector<256x128xf32>
    %29 = arith.truncf %28 : vector<256x128xf32> to vector<256x128xbf16>
    %c0_24 = arith.constant 0 : index
    %c0_25 = arith.constant 0 : index
    %c0_26 = arith.constant 0 : index
    %30 = vector.load %arg6[%c0_24, %c0_25, %c0_26] : memref<1x256x128xbf16, #tpu.memory_space<vmem>>, vector<1x256x128xbf16>
    %31 = vector.shape_cast %30 : vector<1x256x128xbf16> to vector<256x128xbf16>
    %32 = vector.shape_cast %29 : vector<256x128xbf16> to vector<1x256x128xbf16>
    tpu.vector_store %arg6[%c0_24, %c0_25, %c0_26], %32 {strides = array<i32>} : memref<1x256x128xbf16, #tpu.memory_space<vmem>>, vector<1x256x128xbf16>,
    return
  }
  func.func @transform_0(%arg0: i32, %arg1: i32) -> (i32, i32, i32) {
    %c0_i32 = arith.constant 0 : i32
    %c0_i32_0 = arith.constant 0 : i32
    return %arg0, %arg1, %c0_i32 : i32, i32, i32
  }
  func.func @transform_1(%arg0: i32, %arg1: i32) -> (i32, i32, i32) {
    %c1_i32 = arith.constant 1 : i32
    %0 = arith.addi %arg1, %c1_i32 : i32
    %c8_i32 = arith.constant 8 : i32
    %1 = arith.muli %0, %c8_i32 : i32
    %c0_i32 = arith.constant 0 : i32
    %c0_i32_0 = arith.constant 0 : i32
    return %arg0, %1, %c0_i32 : i32, i32, i32
  }
  func.func @transform_2(%arg0: i32, %arg1: i32) -> (i32, i32, i32) {
    %c0_i32 = arith.constant 0 : i32
    %c0_i32_0 = arith.constant 0 : i32
    %c0_i32_1 = arith.constant 0 : i32
    %c0_i32_2 = arith.constant 0 : i32
    return %c0_i32, %c0_i32_0, %c0_i32_1 : i32, i32, i32
  }
  func.func @transform_3(%arg0: i32, %arg1: i32) -> (i32, i32) {
    %c0_i32 = arith.constant 0 : i32
    %c0_i32_0 = arith.constant 0 : i32
    %c0_i32_1 = arith.constant 0 : i32
    return %c0_i32, %c0_i32_0 : i32, i32
  }
  func.func @transform_4(%arg0: i32, %arg1: i32) -> (i32, i32, i32) {
    %c0_i32 = arith.constant 0 : i32
    %c0_i32_0 = arith.constant 0 : i32
    return %arg0, %arg1, %c0_i32 : i32, i32, i32
  }
}

module attributes {stable_mosaic.version = 11 : i64} {
  func.func @_conv3x3_kernel(%arg0: i32, %arg1: i32, %arg2: memref<1x256x6xbf16, #tpu.memory_space<vmem>>, %arg3: memref<1x32x6xbf16, #tpu.memory_space<vmem>>, %arg4: memref<3x6x128xbf16, #tpu.memory_space<vmem>>, %arg5: memref<1x128xf32, #tpu.memory_space<vmem>>, %arg6: memref<1x256x128xf32, #tpu.memory_space<vmem>>, %arg7: memref<288x6xbf16, #tpu.memory_space<vmem>>) attributes {dimension_semantics = [#tpu.dimension_semantics<parallel>, #tpu.dimension_semantics<parallel>], iteration_bounds = array<i64: 2, 1>, scalar_prefetch = 0 : i64, scratch_operands = 1 : i64, tpu.core_type = #tpu.core_type<tc>, window_params = [{transform_indices = @transform_0, window_bounds = array<i64: 1, 256, 6>}, {transform_indices = @transform_1, window_bounds = array<i64: 1, 32, 6>}, {pipeline_mode = #tpu.pipeline_mode<synchronous>, transform_indices = @transform_2, window_bounds = array<i64: 3, 6, 128>}, {pipeline_mode = #tpu.pipeline_mode<synchronous>, transform_indices = @transform_3, window_bounds = array<i64: 1, 128>}, {transform_indices = @transform_4, window_bounds = array<i64: 1, 256, 128>}]} {
    %c0 = arith.constant 0 : index
    %c0_0 = arith.constant 0 : index
    %c0_1 = arith.constant 0 : index
    %0 = vector.load %arg2[%c0, %c0_0, %c0_1] : memref<1x256x6xbf16, #tpu.memory_space<vmem>>, vector<1x256x6xbf16>
    %1 = vector.shape_cast %0 : vector<1x256x6xbf16> to vector<256x6xbf16>
    %c0_2 = arith.constant 0 : index
    %c0_3 = arith.constant 0 : index
    %2 = vector.load %arg7[%c0_2, %c0_3] : memref<288x6xbf16, #tpu.memory_space<vmem>>, vector<256x6xbf16>
    tpu.vector_store %arg7[%c0_2, %c0_3], %1 {strides = array<i32>} : memref<288x6xbf16, #tpu.memory_space<vmem>>, vector<256x6xbf16>,
    %c0_4 = arith.constant 0 : index
    %c0_5 = arith.constant 0 : index
    %c0_6 = arith.constant 0 : index
    %3 = vector.load %arg3[%c0_4, %c0_5, %c0_6] : memref<1x32x6xbf16, #tpu.memory_space<vmem>>, vector<1x32x6xbf16>
    %4 = vector.shape_cast %3 : vector<1x32x6xbf16> to vector<32x6xbf16>
    %c256 = arith.constant 256 : index
    %c0_7 = arith.constant 0 : index
    %5 = vector.load %arg7[%c256, %c0_7] : memref<288x6xbf16, #tpu.memory_space<vmem>>, vector<32x6xbf16>
    tpu.vector_store %arg7[%c256, %c0_7], %4 {strides = array<i32>} : memref<288x6xbf16, #tpu.memory_space<vmem>>, vector<32x6xbf16>,
    %c0_8 = arith.constant 0 : index
    %c0_9 = arith.constant 0 : index
    %6 = vector.load %arg7[%c0_8, %c0_9] : memref<288x6xbf16, #tpu.memory_space<vmem>>, vector<256x6xbf16>
    %c0_10 = arith.constant 0 : index
    %c0_11 = arith.constant 0 : index
    %c0_12 = arith.constant 0 : index
    %7 = vector.load %arg4[%c0_10, %c0_11, %c0_12] : memref<3x6x128xbf16, #tpu.memory_space<vmem>>, vector<1x6x128xbf16>
    %8 = vector.shape_cast %7 : vector<1x6x128xbf16> to vector<6x128xbf16>
    %cst = arith.constant dense<0.000000e+00> : vector<256x128xf32>
    %9 = tpu.matmul %6, %8, %cst {dimension_numbers = #tpu.dot_dimension_numbers<[1], [0], [0], [1], [0, 0, 1, 1], [], []>} : vector<256x6xbf16>, vector<6x128xbf16>, vector<256x128xf32> -> vector<256x128xf32>
    %c16 = arith.constant 16 : index
    %c0_13 = arith.constant 0 : index
    %10 = vector.load %arg7[%c16, %c0_13] : memref<288x6xbf16, #tpu.memory_space<vmem>>, vector<256x6xbf16>
    %c1 = arith.constant 1 : index
    %c0_14 = arith.constant 0 : index
    %c0_15 = arith.constant 0 : index
    %11 = vector.load %arg4[%c1, %c0_14, %c0_15] : memref<3x6x128xbf16, #tpu.memory_space<vmem>>, vector<1x6x128xbf16>
    %12 = vector.shape_cast %11 : vector<1x6x128xbf16> to vector<6x128xbf16>
    %cst_16 = arith.constant dense<0.000000e+00> : vector<256x128xf32>
    %13 = tpu.matmul %10, %12, %cst_16 {dimension_numbers = #tpu.dot_dimension_numbers<[1], [0], [0], [1], [0, 0, 1, 1], [], []>} : vector<256x6xbf16>, vector<6x128xbf16>, vector<256x128xf32> -> vector<256x128xf32>
    %14 = arith.addf %9, %13 : vector<256x128xf32>
    %c32 = arith.constant 32 : index
    %c0_17 = arith.constant 0 : index
    %15 = vector.load %arg7[%c32, %c0_17] : memref<288x6xbf16, #tpu.memory_space<vmem>>, vector<256x6xbf16>
    %c2 = arith.constant 2 : index
    %c0_18 = arith.constant 0 : index
    %c0_19 = arith.constant 0 : index
    %16 = vector.load %arg4[%c2, %c0_18, %c0_19] : memref<3x6x128xbf16, #tpu.memory_space<vmem>>, vector<1x6x128xbf16>
    %17 = vector.shape_cast %16 : vector<1x6x128xbf16> to vector<6x128xbf16>
    %cst_20 = arith.constant dense<0.000000e+00> : vector<256x128xf32>
    %18 = tpu.matmul %15, %17, %cst_20 {dimension_numbers = #tpu.dot_dimension_numbers<[1], [0], [0], [1], [0, 0, 1, 1], [], []>} : vector<256x6xbf16>, vector<6x128xbf16>, vector<256x128xf32> -> vector<256x128xf32>
    %19 = arith.addf %14, %18 : vector<256x128xf32>
    %c0_21 = arith.constant 0 : index
    %c0_22 = arith.constant 0 : index
    %20 = vector.load %arg5[%c0_21, %c0_22] : memref<1x128xf32, #tpu.memory_space<vmem>>, vector<1x128xf32>
    %21 = vector.broadcast %20 : vector<1x128xf32> to vector<256x128xf32>
    %22 = arith.addf %19, %21 : vector<256x128xf32>
    %23 = tpu.iota {dimensions = array<i32: 1>} : vector<256x128xi32>
    %c18_i32 = arith.constant 18 : i32
    %24 = vector.broadcast %c18_i32 : i32 to vector<256x128xi32>
    %25 = arith.cmpi sge, %23, %24 : vector<256x128xi32>
    %c27_i32 = arith.constant 27 : i32
    %26 = vector.broadcast %c27_i32 : i32 to vector<256x128xi32>
    %27 = arith.cmpi slt, %23, %26 : vector<256x128xi32>
    %28 = arith.andi %25, %27 : vector<256x128xi1>
    %29 = arith.negf %22 : vector<256x128xf32>
    %30 = math.exp %29 : vector<256x128xf32>
    %cst_23 = arith.constant 1.000000e+00 : f32
    %31 = vector.broadcast %cst_23 : f32 to vector<256x128xf32>
    %32 = arith.addf %31, %30 : vector<256x128xf32>
    %33 = arith.divf %31, %32 : vector<256x128xf32>
    %34 = arith.select %28, %33, %22 : vector<256x128xi1>, vector<256x128xf32>
    %c0_24 = arith.constant 0 : index
    %c0_25 = arith.constant 0 : index
    %c0_26 = arith.constant 0 : index
    %35 = vector.load %arg6[%c0_24, %c0_25, %c0_26] : memref<1x256x128xf32, #tpu.memory_space<vmem>>, vector<1x256x128xf32>
    %36 = vector.shape_cast %35 : vector<1x256x128xf32> to vector<256x128xf32>
    %37 = vector.shape_cast %34 : vector<256x128xf32> to vector<1x256x128xf32>
    tpu.vector_store %arg6[%c0_24, %c0_25, %c0_26], %37 {strides = array<i32>} : memref<1x256x128xf32, #tpu.memory_space<vmem>>, vector<1x256x128xf32>,
    return
  }
  func.func @transform_0(%arg0: i32, %arg1: i32) -> (i32, i32, i32) {
    %c0_i32 = arith.constant 0 : i32
    %c0_i32_0 = arith.constant 0 : i32
    return %arg0, %arg1, %c0_i32 : i32, i32, i32
  }
  func.func @transform_1(%arg0: i32, %arg1: i32) -> (i32, i32, i32) {
    %c1_i32 = arith.constant 1 : i32
    %0 = arith.addi %arg1, %c1_i32 : i32
    %c8_i32 = arith.constant 8 : i32
    %1 = arith.muli %0, %c8_i32 : i32
    %c0_i32 = arith.constant 0 : i32
    %c0_i32_0 = arith.constant 0 : i32
    return %arg0, %1, %c0_i32 : i32, i32, i32
  }
  func.func @transform_2(%arg0: i32, %arg1: i32) -> (i32, i32, i32) {
    %c0_i32 = arith.constant 0 : i32
    %c0_i32_0 = arith.constant 0 : i32
    %c0_i32_1 = arith.constant 0 : i32
    %c0_i32_2 = arith.constant 0 : i32
    return %c0_i32, %c0_i32_0, %c0_i32_1 : i32, i32, i32
  }
  func.func @transform_3(%arg0: i32, %arg1: i32) -> (i32, i32) {
    %c0_i32 = arith.constant 0 : i32
    %c0_i32_0 = arith.constant 0 : i32
    %c0_i32_1 = arith.constant 0 : i32
    return %c0_i32, %c0_i32_0 : i32, i32
  }
  func.func @transform_4(%arg0: i32, %arg1: i32) -> (i32, i32, i32) {
    %c0_i32 = arith.constant 0 : i32
    %c0_i32_0 = arith.constant 0 : i32
    return %arg0, %arg1, %c0_i32 : i32, i32, i32
  }
}

module attributes {stable_mosaic.version = 11 : i64} {
  func.func @_matmul_bias_kernel(%arg0: i32, %arg1: i32, %arg2: memref<1x256x18xbf16, #tpu.memory_space<vmem>>, %arg3: memref<18x128xbf16, #tpu.memory_space<vmem>>, %arg4: memref<1x128xf32, #tpu.memory_space<vmem>>, %arg5: memref<1x256x128xf32, #tpu.memory_space<vmem>>) attributes {dimension_semantics = [#tpu.dimension_semantics<parallel>, #tpu.dimension_semantics<parallel>], iteration_bounds = array<i64: 2, 1>, scalar_prefetch = 0 : i64, scratch_operands = 0 : i64, tpu.core_type = #tpu.core_type<tc>, window_params = [{transform_indices = @transform_0, window_bounds = array<i64: 1, 256, 18>}, {pipeline_mode = #tpu.pipeline_mode<synchronous>, transform_indices = @transform_1, window_bounds = array<i64: 18, 128>}, {pipeline_mode = #tpu.pipeline_mode<synchronous>, transform_indices = @transform_2, window_bounds = array<i64: 1, 128>}, {transform_indices = @transform_3, window_bounds = array<i64: 1, 256, 128>}]} {
    %c0 = arith.constant 0 : index
    %c0_0 = arith.constant 0 : index
    %c0_1 = arith.constant 0 : index
    %0 = vector.load %arg2[%c0, %c0_0, %c0_1] : memref<1x256x18xbf16, #tpu.memory_space<vmem>>, vector<1x256x18xbf16>
    %1 = vector.shape_cast %0 : vector<1x256x18xbf16> to vector<256x18xbf16>
    %c0_2 = arith.constant 0 : index
    %c0_3 = arith.constant 0 : index
    %2 = vector.load %arg3[%c0_2, %c0_3] : memref<18x128xbf16, #tpu.memory_space<vmem>>, vector<18x128xbf16>
    %cst = arith.constant dense<0.000000e+00> : vector<256x128xf32>
    %3 = tpu.matmul %1, %2, %cst {dimension_numbers = #tpu.dot_dimension_numbers<[1], [0], [0], [1], [0, 0, 1, 1], [], []>} : vector<256x18xbf16>, vector<18x128xbf16>, vector<256x128xf32> -> vector<256x128xf32>
    %c0_4 = arith.constant 0 : index
    %c0_5 = arith.constant 0 : index
    %4 = vector.load %arg4[%c0_4, %c0_5] : memref<1x128xf32, #tpu.memory_space<vmem>>, vector<1x128xf32>
    %5 = vector.broadcast %4 : vector<1x128xf32> to vector<256x128xf32>
    %6 = arith.addf %3, %5 : vector<256x128xf32>
    %c0_6 = arith.constant 0 : index
    %c0_7 = arith.constant 0 : index
    %c0_8 = arith.constant 0 : index
    %7 = vector.load %arg5[%c0_6, %c0_7, %c0_8] : memref<1x256x128xf32, #tpu.memory_space<vmem>>, vector<1x256x128xf32>
    %8 = vector.shape_cast %7 : vector<1x256x128xf32> to vector<256x128xf32>
    %9 = vector.shape_cast %6 : vector<256x128xf32> to vector<1x256x128xf32>
    tpu.vector_store %arg5[%c0_6, %c0_7, %c0_8], %9 {strides = array<i32>} : memref<1x256x128xf32, #tpu.memory_space<vmem>>, vector<1x256x128xf32>,
    return
  }
  func.func @transform_0(%arg0: i32, %arg1: i32) -> (i32, i32, i32) {
    %c0_i32 = arith.constant 0 : i32
    %c0_i32_0 = arith.constant 0 : i32
    return %arg0, %arg1, %c0_i32 : i32, i32, i32
  }
  func.func @transform_1(%arg0: i32, %arg1: i32) -> (i32, i32) {
    %c0_i32 = arith.constant 0 : i32
    %c0_i32_0 = arith.constant 0 : i32
    %c0_i32_1 = arith.constant 0 : i32
    return %c0_i32, %c0_i32_0 : i32, i32
  }
  func.func @transform_2(%arg0: i32, %arg1: i32) -> (i32, i32) {
    %c0_i32 = arith.constant 0 : i32
    %c0_i32_0 = arith.constant 0 : i32
    %c0_i32_1 = arith.constant 0 : i32
    return %c0_i32, %c0_i32_0 : i32, i32
  }
  func.func @transform_3(%arg0: i32, %arg1: i32) -> (i32, i32, i32) {
    %c0_i32 = arith.constant 0 : i32
    %c0_i32_0 = arith.constant 0 : i32
    return %arg0, %arg1, %c0_i32 : i32, i32, i32
  }
}

</mosaic_0001>

<llo_original>
// kernel: bottleneck_mdconv_forward.3
$region0: #{bottleneck_mdconv_forward.3}
  #allocation0 [shape = 'u32[]', space=smem, size = 0x4, offset = 0x4, fixed_abs, tag = 'smem constant byte address 0x4 - core index']
  #allocation1 [shape = 'u32[144,128]{1,0:T(1,128)}', space=vmem, size = 0x12000, scoped, tag = 'internal scratch']
  #allocation2 [shape = 'bf16[288,12]{1,0:T(16,128)(2,1)}', space=vmem, size = 0x12000, scoped, tag = 'scratch operand']
  %s0 = inlined_call_operand.vmem [shape: bf16[2,288,12], index: 0, kind: input, shape index: {}, may-alias: {0,1}]
  %s1 = inlined_call_operand.vmem [shape: bf16[2,288,12], index: 1, kind: input, shape index: {}, may-alias: {0,1}]
  %s2 = inlined_call_operand.hbm [shape: bf16[3,12,128], index: 2, kind: input, shape index: {}]
  %s3 = inlined_call_operand.hbm [shape: f32[1,128], index: 3, kind: input, shape index: {}]
  %s4 = inlined_call_operand.vmem [shape: bf16[2,256,128], index: 4, kind: output, shape index: {}]
  %s5 = sld [smem:[#allocation0]]
  $region57: #{bottleneck_mdconv_forward.3} parent=0
    _
  %s7 = ssub.s32 1, %s5
  %s8 = scalar_select 0, %s7, %s5
  $region1: #{bottleneck_mdconv_forward.3} parent=0
    #allocation3 [shape = 'u8[12288]{0}', space=vmem, size = 0x3000, scoped, tag = 'input window, operand 2, single buffered']
    #allocation4 [shape = 's32[2]{0}', space=sflag, size = 0x8, scoped, tag = 'scoped memory for bottleneck_mdconv_forward.3']
    #allocation5 [shape = 'u8[512]{0}', space=vmem, size = 0x400, scoped, tag = 'input window, operand 3, single buffered']
    #allocation6 [shape = 's32[1]{0}', space=sflag, size = 0x4, scoped, tag = 'scoped memory for bottleneck_mdconv_forward.3']
    %9 = vsyncpa [#allocation4], 0
    %10 = vsyncpa [#allocation6], 0
    loop: start=0, step=1, limit=4
    $region2: #{bottleneck_mdconv_forward.3} parent=1 // loop_pre_header
      _
    $region3: #{bottleneck_mdconv_forward.3} parent=1 // loop_header
      %s12 = sphi 0, %s16
      %p13 = scmp.ge.s32.totalorder %s12, 4
      %s19 = sphi 0, %s31
      %s20 = sphi 0, %s27
      %s21 = sphi 0, %s19
      %s22 = sphi 0, %s20
      %s23 = sphi 0, %s21
      %s24 = sphi 0, %s22
      %s36 = sphi 0, %s38
      %s39 = sphi 0, %s36
      %s40 = sphi 0, %s39
      %s56 = sphi 0, %s40
      %s68 = sphi 0, %s70
      %s71 = sphi 0, %s68
      %s72 = sphi 0, %s71
      %s88 = sphi 0, %s72
      %s92 = sphi 0, %s92
      %s94 = sphi 0, %s92
      %s95 = sphi 0, %s94
      %s109 = sphi 0, %s95
      %s113 = sphi 0, %s113
      %s115 = sphi 0, %s113
      %s116 = sphi 0, %s115
      %s130 = sphi 0, %s116
      %s138 = sphi 0, %s140
      %s141 = sphi 0, %s138
      %s142 = sphi 0, %s141
      %s158 = sphi 0, %s142
    $region4: #{bottleneck_mdconv_forward.3} parent=1 // loop_header_branch
      %15 = sbr.rel (%p13) target = $region8
    $region5: #{bottleneck_mdconv_forward.3} parent=1 // loop_body
      %s17 = ssub.s32 %s12, 1
      %s18 = ssub.s32 %s12, 2
      %s25 = sadd.s32 1, %s20
      %p26 = scmp.ge.s32.totalorder %s25, 1
      %s27 = scalar_select %p26, 0, %s25
      %s28 = sadd.s32 1, %s19
      %s29 = scalar_select %p26, %s28, %s19
      %p30 = scmp.ge.s32.totalorder %s29, 2
      %s31 = scalar_select %p30, 0, %s29
      %s32 = ssub.s32 %s19, %s31
      %s33 = ssub.s32 %s20, %s27
      %s34 = sor.u32 %s32, %s33
      %p35 = scmp.eq.s32.totalorder %s34, 0
      %s37 = sadd.s32 %s36, 1
      %s38 = scalar_select %p35, %s36, %s37
      %p41 = pneg %p35
      %p42 = scmp.eq.s32.totalorder %s12, 1
      %p43 = por %p41, %p42
      %p44 = scmp.ne.s32.totalorder %s36, %s39
      %p45 = scmp.eq.s32.totalorder %s12, 0
      %p46 = por %p44, %p45
      %p47 = scmp.ne.s32.totalorder %s36, %s39
      %p48 = scmp.eq.s32.totalorder %s17, 1
      %p49 = por %p47, %p48
      %p50 = scmp.ne.s32.totalorder %s39, %s40
      %p51 = scmp.eq.s32.totalorder %s17, 0
      %p52 = por %p50, %p51
      %p53 = scmp.ne.s32.totalorder %s39, %s40
      %p54 = scmp.eq.s32.totalorder %s18, 1
      %p55 = por %p53, %p54
      %p57 = scmp.ne.s32.totalorder %s40, %s56
      %p58 = scmp.eq.s32.totalorder %s18, 0
      %p59 = por %p57, %p58
      %s60 = sadd.s32 %s20, 1
      %s61 = smul.u32 %s60, 8
      %s62 = sadd.s32 %s27, 1
      %s63 = smul.u32 %s62, 8
      %s64 = ssub.s32 %s19, %s31
      %s65 = ssub.s32 %s61, %s63
      %s66 = sor.u32 %s64, %s65
      %p67 = scmp.eq.s32.totalorder %s66, 0
      %s69 = sadd.s32 %s68, 1
      %s70 = scalar_select %p67, %s68, %s69
      %p73 = pneg %p67
      %p74 = scmp.eq.s32.totalorder %s12, 1
      %p75 = por %p73, %p74
      %p76 = scmp.ne.s32.totalorder %s68, %s71
      %p77 = scmp.eq.s32.totalorder %s12, 0
      %p78 = por %p76, %p77
      %p79 = scmp.ne.s32.totalorder %s68, %s71
      %p80 = scmp.eq.s32.totalorder %s17, 1
      %p81 = por %p79, %p80
      %p82 = scmp.ne.s32.totalorder %s71, %s72
      %p83 = scmp.eq.s32.totalorder %s17, 0
      %p84 = por %p82, %p83
      %p85 = scmp.ne.s32.totalorder %s71, %s72
      %p86 = scmp.eq.s32.totalorder %s18, 1
      %p87 = por %p85, %p86
      %p89 = scmp.ne.s32.totalorder %s72, %s88
      %p90 = scmp.eq.s32.totalorder %s18, 0
      %p91 = por %p89, %p90
      %s93 = sadd.s32 %s92, 1
      %p96 = scmp.eq.s32.totalorder %s12, 1
      %p97 = scmp.ne.s32.totalorder %s92, %s94
      %p98 = scmp.eq.s32.totalorder %s12, 0
      %p99 = por %p97, %p98
      %p100 = scmp.ne.s32.totalorder %s92, %s94
      %p101 = scmp.eq.s32.totalorder %s17, 1
      %p102 = por %p100, %p101
      %p103 = scmp.ne.s32.totalorder %s94, %s95
      %p104 = scmp.eq.s32.totalorder %s17, 0
      %p105 = por %p103, %p104
      %p106 = scmp.ne.s32.totalorder %s94, %s95
      %p107 = scmp.eq.s32.totalorder %s18, 1
      %p108 = por %p106, %p107
      %p110 = scmp.ne.s32.totalorder %s95, %s109
      %p111 = scmp.eq.s32.totalorder %s18, 0
      %p112 = por %p110, %p111
      %s114 = sadd.s32 %s113, 1
      %p117 = scmp.eq.s32.totalorder %s12, 1
      %p118 = scmp.ne.s32.totalorder %s113, %s115
      %p119 = scmp.eq.s32.totalorder %s12, 0
      %p120 = por %p118, %p119
      %p121 = scmp.ne.s32.totalorder %s113, %s115
      %p122 = scmp.eq.s32.totalorder %s17, 1
      %p123 = por %p121, %p122
      %p124 = scmp.ne.s32.totalorder %s115, %s116
      %p125 = scmp.eq.s32.totalorder %s17, 0
      %p126 = por %p124, %p125
      %p127 = scmp.ne.s32.totalorder %s115, %s116
      %p128 = scmp.eq.s32.totalorder %s18, 1
      %p129 = por %p127, %p128
      %p131 = scmp.ne.s32.totalorder %s116, %s130
      %p132 = scmp.eq.s32.totalorder %s18, 0
      %p133 = por %p131, %p132
      %s134 = ssub.s32 %s19, %s31
      %s135 = ssub.s32 %s20, %s27
      %s136 = sor.u32 %s134, %s135
      %p137 = scmp.eq.s32.totalorder %s136, 0
      %s139 = sadd.s32 %s138, 1
      %s140 = scalar_select %p137, %s138, %s139
      %p143 = pneg %p137
      %p144 = scmp.eq.s32.totalorder %s12, 1
      %p145 = por %p143, %p144
      %p146 = scmp.ne.s32.totalorder %s138, %s141
      %p147 = scmp.eq.s32.totalorder %s12, 0
      %p148 = por %p146, %p147
      %p149 = scmp.ne.s32.totalorder %s138, %s141
      %p150 = scmp.eq.s32.totalorder %s17, 1
      %p151 = por %p149, %p150
      %p152 = scmp.ne.s32.totalorder %s141, %s142
      %p153 = scmp.eq.s32.totalorder %s17, 0
      %p154 = por %p152, %p153
      %p155 = scmp.ne.s32.totalorder %s141, %s142
      %p156 = scmp.eq.s32.totalorder %s18, 1
      %p157 = por %p155, %p156
      %p159 = scmp.ne.s32.totalorder %s142, %s158
      %p160 = scmp.eq.s32.totalorder %s18, 0
      %p161 = por %p159, %p160
      %p162 = scmp.le.s32.totalorder 1, %s12
      %p163 = scmp.lt.s32.totalorder %s12, 3
      %p164 = pnand %p162, %p163
      %p165 = pneg %p164
      // Predicated region
      $region9: #{bottleneck_mdconv_forward.3} parent=5 // pred_check
        _
      $region10: #{bottleneck_mdconv_forward.3} parent=5 // pred_check_branch
        %167 = sbr.rel (%p164) target = $region12
      $region11: #{bottleneck_mdconv_forward.3} parent=5 // pred_region
        %s168 = ssub.s32 %s12, 1
        // Predicated region
        $region13: #{bottleneck_mdconv_forward.3} parent=11 // pred_check
          %p169 = pneg %p105
        $region14: #{bottleneck_mdconv_forward.3} parent=11 // pred_check_branch
          %171 = sbr.rel (%p169) target = $region16
        $region15: #{bottleneck_mdconv_forward.3} parent=11 // pred_region
          %s173 = ssub.s32 384, 384
          %174 = vsyncadd [#allocation4], %s173
          %s175 = sshll.u32 [#allocation3], 4
          %s176 = int_to_ptr.vmem [resolvable:$true] %s175
          %181 = dma.hbm_to_vmem [thread:$0]  %s2, 384, %s176, [#allocation4], 64, 64, 4
        $region16: #{bottleneck_mdconv_forward.3} parent=11 // pred_fallthru
          _
        // Predicated region
        $region17: #{bottleneck_mdconv_forward.3} parent=11 // pred_check
          %p182 = pneg %p126
        $region18: #{bottleneck_mdconv_forward.3} parent=11 // pred_check_branch
          %184 = sbr.rel (%p182) target = $region20
        $region19: #{bottleneck_mdconv_forward.3} parent=11 // pred_region
          %s186 = ssub.s32 16, 16
          %187 = vsyncadd [#allocation6], %s186
          %s189 = sshll.u32 [#allocation5], 4
          %s190 = int_to_ptr.vmem [resolvable:$true] %s189
          %192 = dma.hbm_to_vmem [thread:$0]  %s3, 16, %s190, [#allocation6]
        $region20: #{bottleneck_mdconv_forward.3} parent=11 // pred_fallthru
          _
      $region12: #{bottleneck_mdconv_forward.3} parent=5 // pred_fallthru
        _
      %p193 = scmp.lt.s32.totalorder %s12, 2
      // Predicated region
      $region21: #{bottleneck_mdconv_forward.3} parent=5 // pred_check
        %p194 = pneg %p193
      $region22: #{bottleneck_mdconv_forward.3} parent=5 // pred_check_branch
        %196 = sbr.rel (%p194) target = $region24
      $region23: #{bottleneck_mdconv_forward.3} parent=5 // pred_region
        // Predicated region
        $region25: #{bottleneck_mdconv_forward.3} parent=23 // pred_check
          %p197 = pneg %p46
        $region26: #{bottleneck_mdconv_forward.3} parent=23 // pred_check_branch
          %199 = sbr.rel (%p197) target = $region28
        $region27: #{bottleneck_mdconv_forward.3} parent=23 // pred_region
          %s200 = smul.u32 32, %s20
          %s201 = ssub.s32 36, %s200
          %p202 = scmp.lt.s32.totalorder %s201, 32
          %s203 = scalar_select %p202, %s201, 32
          %s204 = smul.u32 64, %s203
          %p205 = scmp.lt.s32.totalorder %s19, 1
          %s206 = scalar_select %p205, %s19, 1
          %p207 = scmp.lt.s32.totalorder %s200, 35
          %s208 = scalar_select %p207, %s200, 35
          %s209 = smul.addr %s206, 36
          %s210 = sadd.s32 %s208, %s209
          %s211 = smul.addr %s210, 4
          %s212 = scalar_lea.vmem %s0, %s211
          %s213 = smul.u32 32, %s20
          %s214 = ssub.s32 36, %s213
          %p215 = scmp.lt.s32.totalorder %s214, 32
          %s216 = scalar_select %p215, %s214, 32
          %s217 = smul.u32 64, %s216
        $region28: #{bottleneck_mdconv_forward.3} parent=23 // pred_fallthru
          _
        // Predicated region
        $region29: #{bottleneck_mdconv_forward.3} parent=23 // pred_check
          %p218 = pneg %p78
        $region30: #{bottleneck_mdconv_forward.3} parent=23 // pred_check_branch
          %220 = sbr.rel (%p218) target = $region32
        $region31: #{bottleneck_mdconv_forward.3} parent=23 // pred_region
          %s221 = sadd.s32 %s20, 1
          %s222 = smul.u32 %s221, 8
          %s223 = smul.u32 4, %s222
          %p224 = scmp.lt.s32.totalorder %s19, 1
          %s225 = scalar_select %p224, %s19, 1
          %p226 = scmp.lt.s32.totalorder %s223, 35
          %s227 = scalar_select %p226, %s223, 35
          %s228 = smul.addr %s225, 36
          %s229 = sadd.s32 %s227, %s228
          %s230 = smul.addr %s229, 4
          %s231 = scalar_lea.vmem %s1, %s230
          %s232 = sadd.s32 %s20, 1
          %s233 = smul.u32 %s232, 8
          %s234 = smul.u32 4, %s233
        $region32: #{bottleneck_mdconv_forward.3} parent=23 // pred_fallthru
          _
      $region24: #{bottleneck_mdconv_forward.3} parent=5 // pred_fallthru
        _
      %p235 = scmp.le.s32.totalorder 1, %s12
      %p236 = scmp.lt.s32.totalorder %s12, 3
      %p237 = pnand %p235, %p236
      %p238 = pneg %p237
      // Predicated region
      $region33: #{bottleneck_mdconv_forward.3} parent=5 // pred_check
        _
      $region34: #{bottleneck_mdconv_forward.3} parent=5 // pred_check_branch
        %240 = sbr.rel (%p237) target = $region36
      $region35: #{bottleneck_mdconv_forward.3} parent=5 // pred_region
        %s241 = ssub.s32 %s12, 1
        // Predicated region
        $region37: #{bottleneck_mdconv_forward.3} parent=35 // pred_check
          %p242 = pneg %p105
        $region38: #{bottleneck_mdconv_forward.3} parent=35 // pred_check_branch
          %244 = sbr.rel (%p242) target = $region40
        $region39: #{bottleneck_mdconv_forward.3} parent=35 // pred_region
          %245 = dma.done [#allocation4], 384
        $region40: #{bottleneck_mdconv_forward.3} parent=35 // pred_fallthru
          _
        // Predicated region
        $region41: #{bottleneck_mdconv_forward.3} parent=35 // pred_check
          %p246 = pneg %p126
        $region42: #{bottleneck_mdconv_forward.3} parent=35 // pred_check_branch
          %248 = sbr.rel (%p246) target = $region44
        $region43: #{bottleneck_mdconv_forward.3} parent=35 // pred_region
          %249 = dma.done [#allocation6], 16
        $region44: #{bottleneck_mdconv_forward.3} parent=35 // pred_fallthru
          _
        %s250 = smul.u32 32, %s22
        %s251 = ssub.s32 36, %s250
        %p252 = scmp.lt.s32.totalorder %s251, 32
        %s253 = scalar_select %p252, %s251, 32
        %s254 = smul.u32 64, %s253
        %p255 = scmp.lt.s32.totalorder %s21, 1
        %s256 = scalar_select %p255, %s21, 1
        %p257 = scmp.lt.s32.totalorder %s250, 35
        %s258 = scalar_select %p257, %s250, 35
        %s259 = smul.addr %s256, 36
        %s260 = sadd.s32 %s258, %s259
        %s261 = smul.addr %s260, 4
        %s262 = scalar_lea.vmem %s0, %s261
        %p263 = pneg %p52
        %p264 = pneg %p49
        %s265 = sadd.s32 %s22, 1
        %s266 = smul.u32 %s265, 8
        %s267 = smul.u32 4, %s266
        %p268 = scmp.lt.s32.totalorder %s21, 1
        %s269 = scalar_select %p268, %s21, 1
        %p270 = scmp.lt.s32.totalorder %s267, 35
        %s271 = scalar_select %p270, %s267, 35
        %s272 = smul.addr %s269, 36
        %s273 = sadd.s32 %s271, %s272
        %s274 = smul.addr %s273, 4
        %s275 = scalar_lea.vmem %s1, %s274
        %p276 = pneg %p84
        %p277 = pneg %p81
        %p278 = pneg %p105
        %p279 = pneg %p102
        %p280 = pneg %p126
        %p281 = pneg %p123
        %p282 = pneg %p154
        %p283 = pneg %p151
        %s284 = smul.u32 32, %s22
        %p285 = scmp.lt.s32.totalorder %s21, 1
        %s286 = scalar_select %p285, %s21, 1
        %p287 = scmp.lt.s32.totalorder %s284, 31
        %s288 = scalar_select %p287, %s284, 31
        %s289 = smul.addr %s286, 32
        %s290 = sadd.s32 %s288, %s289
        %s291 = smul.addr %s290, 4
        %s292 = scalar_lea.vmem %s4, %s291
        %s293 = smul.u32 32, %s22
        %s294 = ssub.s32 36, %s293
        %p295 = scmp.lt.s32.totalorder %s294, 32
        %s296 = scalar_select %p295, %s294, 32
        %s297 = smul.u32 64, %s296
        %p298 = scmp.lt.s32.totalorder %s21, 1
        %s299 = scalar_select %p298, %s21, 1
        %p300 = scmp.lt.s32.totalorder %s293, 35
        %s301 = scalar_select %p300, %s293, 35
        %s302 = smul.addr %s299, 36
        %s303 = sadd.s32 %s301, %s302
        %s304 = smul.addr %s303, 4
        %s305 = scalar_lea.vmem %s0, %s304
        %s306 = smul.u32 32, %s22
        %s307 = ssub.s32 36, %s306
        %p308 = scmp.lt.s32.totalorder %s307, 32
        %s309 = scalar_select %p308, %s307, 32
        %s310 = smul.u32 64, %s309
        %s311 = sadd.s32 %s22, 1
        %s312 = smul.u32 %s311, 8
        %s313 = smul.u32 4, %s312
        %p314 = scmp.lt.s32.totalorder %s21, 1
        %s315 = scalar_select %p314, %s21, 1
        %p316 = scmp.lt.s32.totalorder %s313, 35
        %s317 = scalar_select %p316, %s313, 35
        %s318 = smul.addr %s315, 36
        %s319 = sadd.s32 %s317, %s318
        %s320 = smul.addr %s319, 4
        %s321 = scalar_lea.vmem %s1, %s320
        %s322 = sadd.s32 %s22, 1
        %s323 = smul.u32 %s322, 8
        %s324 = smul.u32 4, %s323
        %s325 = smul.u32 32, %s22
        %p326 = scmp.lt.s32.totalorder %s21, 1
        %s327 = scalar_select %p326, %s21, 1
        %p328 = scmp.lt.s32.totalorder %s325, 31
        %s329 = scalar_select %p328, %s325, 31
        %s330 = smul.addr %s327, 32
        %s331 = sadd.s32 %s329, %s330
        %s332 = smul.addr %s331, 4
        %s333 = scalar_lea.vmem %s4, %s332
        %s334 = smul.u32 32, %s22
        %v336 = vld [vmem:[%s305] sm:$0xf]
        %v337 = vld [vmem:[%s305 + $0x4] sm:$0xf]
        %v338 = vld [vmem:[%s305 + $0x8] sm:$0xf]
        %v339 = vld [vmem:[%s305 + $0xc] sm:$0xf]
        %v340 = vld [vmem:[%s305 + $0x10] sm:$0xf]
        %v341 = vld [vmem:[%s305 + $0x14] sm:$0xf]
        %v342 = vld [vmem:[%s305 + $0x18] sm:$0xf]
        %v343 = vld [vmem:[%s305 + $0x1c] sm:$0xf]
        %v344 = vld [vmem:[%s305 + $0x20] sm:$0xf]
        %v345 = vld [vmem:[%s305 + $0x24] sm:$0xf]
        %v346 = vld [vmem:[%s305 + $0x28] sm:$0xf]
        %v347 = vld [vmem:[%s305 + $0x2c] sm:$0xf]
        %v348 = vld [vmem:[%s305 + $0x30] sm:$0xf]
        %v349 = vld [vmem:[%s305 + $0x34] sm:$0xf]
        %v350 = vld [vmem:[%s305 + $0x38] sm:$0xf]
        %v351 = vld [vmem:[%s305 + $0x3c] sm:$0xf]
        %v352 = vld [vmem:[%s305 + $0x40] sm:$0xf]
        %v353 = vld [vmem:[%s305 + $0x44] sm:$0xf]
        %v354 = vld [vmem:[%s305 + $0x48] sm:$0xf]
        %v355 = vld [vmem:[%s305 + $0x4c] sm:$0xf]
        %v356 = vld [vmem:[%s305 + $0x50] sm:$0xf]
        %v357 = vld [vmem:[%s305 + $0x54] sm:$0xf]
        %v358 = vld [vmem:[%s305 + $0x58] sm:$0xf]
        %v359 = vld [vmem:[%s305 + $0x5c] sm:$0xf]
        %v360 = vld [vmem:[%s305 + $0x60] sm:$0xf]
        %v361 = vld [vmem:[%s305 + $0x64] sm:$0xf]
        %v362 = vld [vmem:[%s305 + $0x68] sm:$0xf]
        %v363 = vld [vmem:[%s305 + $0x6c] sm:$0xf]
        %v364 = vld [vmem:[%s305 + $0x70] sm:$0xf]
        %v365 = vld [vmem:[%s305 + $0x74] sm:$0xf]
        %v366 = vld [vmem:[%s305 + $0x78] sm:$0xf]
        %v367 = vld [vmem:[%s305 + $0x7c] sm:$0xf]
        %v400 = vunpack.c.l.b16 %v336
        %v401 = vunpack.c.l.b16 %v337
        %v402 = vunpack.c.l.b16 %v338
        %v403 = vunpack.c.l.b16 %v339
        %v404 = vunpack.c.l.b16 %v340
        %v405 = vunpack.c.l.b16 %v341
        %v406 = vunpack.c.l.b16 %v342
        %v407 = vunpack.c.l.b16 %v343
        %v408 = vunpack.c.l.b16 %v344
        %v409 = vunpack.c.l.b16 %v345
        %v410 = vunpack.c.l.b16 %v346
        %v411 = vunpack.c.l.b16 %v347
        %v412 = vunpack.c.l.b16 %v348
        %v413 = vunpack.c.l.b16 %v349
        %v414 = vunpack.c.l.b16 %v350
        %v415 = vunpack.c.l.b16 %v351
        %v416 = vunpack.c.l.b16 %v352
        %v417 = vunpack.c.l.b16 %v353
        %v418 = vunpack.c.l.b16 %v354
        %v419 = vunpack.c.l.b16 %v355
        %v420 = vunpack.c.l.b16 %v356
        %v421 = vunpack.c.l.b16 %v357
        %v422 = vunpack.c.l.b16 %v358
        %v423 = vunpack.c.l.b16 %v359
        %v424 = vunpack.c.l.b16 %v360
        %v425 = vunpack.c.l.b16 %v361
        %v426 = vunpack.c.l.b16 %v362
        %v427 = vunpack.c.l.b16 %v363
        %v428 = vunpack.c.l.b16 %v364
        %v429 = vunpack.c.l.b16 %v365
        %v430 = vunpack.c.l.b16 %v366
        %v431 = vunpack.c.l.b16 %v367
        %v432 = vpack.c.b16 %v401, %v400
        %v433 = vpack.c.b16 %v403, %v402
        %v434 = vpack.c.b16 %v405, %v404
        %v435 = vpack.c.b16 %v407, %v406
        %v436 = vpack.c.b16 %v409, %v408
        %v437 = vpack.c.b16 %v411, %v410
        %v438 = vpack.c.b16 %v413, %v412
        %v439 = vpack.c.b16 %v415, %v414
        %v440 = vpack.c.b16 %v417, %v416
        %v441 = vpack.c.b16 %v419, %v418
        %v442 = vpack.c.b16 %v421, %v420
        %v443 = vpack.c.b16 %v423, %v422
        %v444 = vpack.c.b16 %v425, %v424
        %v445 = vpack.c.b16 %v427, %v426
        %v446 = vpack.c.b16 %v429, %v428
        %v447 = vpack.c.b16 %v431, %v430
        %vm464 = vcmask 97280
        %465 = vst.msk [vmem:[#allocation2] sm:$0xff] %vm464, %v432
        %466 = vst.msk [vmem:[#allocation2 + $0x8] sm:$0xff] %vm464, %v433
        %467 = vst.msk [vmem:[#allocation2 + $0x10] sm:$0xff] %vm464, %v434
        %468 = vst.msk [vmem:[#allocation2 + $0x18] sm:$0xff] %vm464, %v435
        %469 = vst.msk [vmem:[#allocation2 + $0x20] sm:$0xff] %vm464, %v436
        %470 = vst.msk [vmem:[#allocation2 + $0x28] sm:$0xff] %vm464, %v437
        %471 = vst.msk [vmem:[#allocation2 + $0x30] sm:$0xff] %vm464, %v438
        %472 = vst.msk [vmem:[#allocation2 + $0x38] sm:$0xff] %vm464, %v439
        %473 = vst.msk [vmem:[#allocation2 + $0x40] sm:$0xff] %vm464, %v440
        %474 = vst.msk [vmem:[#allocation2 + $0x48] sm:$0xff] %vm464, %v441
        %475 = vst.msk [vmem:[#allocation2 + $0x50] sm:$0xff] %vm464, %v442
        %476 = vst.msk [vmem:[#allocation2 + $0x58] sm:$0xff] %vm464, %v443
        %477 = vst.msk [vmem:[#allocation2 + $0x60] sm:$0xff] %vm464, %v444
        %478 = vst.msk [vmem:[#allocation2 + $0x68] sm:$0xff] %vm464, %v445
        %479 = vst.msk [vmem:[#allocation2 + $0x70] sm:$0xff] %vm464, %v446
        %480 = vst.msk [vmem:[#allocation2 + $0x78] sm:$0xff] %vm464, %v447
        %v481 = vld [vmem:[%s321] sm:$0xf]
        %v482 = vld [vmem:[%s321 + $0x4] sm:$0xf]
        %v483 = vld [vmem:[%s321 + $0x8] sm:$0xf]
        %v484 = vld [vmem:[%s321 + $0xc] sm:$0xf]
        %v489 = vunpack.c.l.b16 %v481
        %v490 = vunpack.c.l.b16 %v482
        %v491 = vunpack.c.l.b16 %v483
        %v492 = vunpack.c.l.b16 %v484
        %v493 = vpack.c.b16 %v490, %v489
        %v494 = vpack.c.b16 %v492, %v491
        %497 = vst.msk [vmem:[#allocation2 + $0x80] sm:$0xff] %vm464, %v493
        %498 = vst.msk [vmem:[#allocation2 + $0x88] sm:$0xff] %vm464, %v494
        %v499 = vld [vmem:[#allocation2] sm:$0xff]
        %v500 = vld [vmem:[#allocation2 + $0x8] sm:$0xff]
        %v501 = vld [vmem:[#allocation2 + $0x10] sm:$0xff]
        %v502 = vld [vmem:[#allocation2 + $0x18] sm:$0xff]
        %v503 = vld [vmem:[#allocation2 + $0x20] sm:$0xff]
        %v504 = vld [vmem:[#allocation2 + $0x28] sm:$0xff]
        %v505 = vld [vmem:[#allocation2 + $0x30] sm:$0xff]
        %v506 = vld [vmem:[#allocation2 + $0x38] sm:$0xff]
        %v507 = vld [vmem:[#allocation2 + $0x40] sm:$0xff]
        %v508 = vld [vmem:[#allocation2 + $0x48] sm:$0xff]
        %v509 = vld [vmem:[#allocation2 + $0x50] sm:$0xff]
        %v510 = vld [vmem:[#allocation2 + $0x58] sm:$0xff]
        %v511 = vld [vmem:[#allocation2 + $0x60] sm:$0xff]
        %v512 = vld [vmem:[#allocation2 + $0x68] sm:$0xff]
        %v513 = vld [vmem:[#allocation2 + $0x70] sm:$0xff]
        %v514 = vld [vmem:[#allocation2 + $0x78] sm:$0xff]
        %v515 = vld [vmem:[#allocation3] sm:$0xf]
        %v516 = vld [vmem:[#allocation3 + $0x4] sm:$0x3]
        %v517 = vld [vmem:[#allocation2 + $0x80] sm:$0xff]
        %s518 = scalar_lea.vmem [#allocation3], 8
        %v519 = vld [vmem:[%s518] sm:$0xf]
        %v520 = vld [vmem:[%s518 + $0x4] sm:$0x3]
        %v523 = vunpack.c.l.b16 %v519
        %v524 = vunpack.c.l.b16 %v520
        %v525 = vpack.c.b16 %v524, %v523
        %v527 = vsel %vm464, %v500, 0
        %v530 = vsel %vm464, %v501, 0
        %v533 = vsel %vm464, %v502, 0
        %v536 = vsel %vm464, %v503, 0
        %v539 = vsel %vm464, %v504, 0
        %v542 = vsel %vm464, %v505, 0
        %v545 = vsel %vm464, %v506, 0
        %v548 = vsel %vm464, %v507, 0
        %v551 = vsel %vm464, %v508, 0
        %v554 = vsel %vm464, %v509, 0
        %v557 = vsel %vm464, %v510, 0
        %v560 = vsel %vm464, %v511, 0
        %v563 = vsel %vm464, %v512, 0
        %v566 = vsel %vm464, %v513, 0
        %v569 = vsel %vm464, %v514, 0
        %v572 = vsel %vm464, %v517, 0
        %vm574 = vcmask 1045504
        %v576 = vsel %vm574, %v525, 0
        %578 = vmatprep.subr.bf16.mxu0 0
        %579 = vmatpush1.bf16.msra.mxu0 %v576
        %580 = vmatprep.subr.bf16.mxu0 0
        %581 = vmatpush1.bf16.msra.mxu0 0
        %582 = vmatprep.subr.bf16.mxu0 0
        %583 = vmatpush1.bf16.msra.mxu0 0
        %584 = vmatprep.subr.bf16.mxu0 0
        %585 = vmatpush1.bf16.msra.mxu0 0
        %586 = vmatprep.subr.bf16.mxu0 0
        %587 = vmatpush1.bf16.msra.mxu0 0
        %588 = vmatprep.subr.bf16.mxu0 0
        %589 = vmatpush1.bf16.msra.mxu0 0
        %590 = vmatprep.subr.bf16.mxu0 0
        %591 = vmatpush1.bf16.msra.mxu0 0
        %592 = vmatprep.subr.bf16.mxu0 0
        %593 = vmatpush1.bf16.msra.mxu0 0
        %594 = vmatprep.subr.bf16.mxu0 0
        %595 = vmatpush1.bf16.msra.mxu0 0
        %596 = vmatprep.subr.bf16.mxu0 0
        %597 = vmatpush1.bf16.msra.mxu0 0
        %598 = vmatprep.subr.bf16.mxu0 0
        %599 = vmatpush1.bf16.msra.mxu0 0
        %600 = vmatprep.subr.bf16.mxu0 0
        %601 = vmatpush1.bf16.msra.mxu0 0
        %602 = vmatprep.subr.bf16.mxu0 0
        %603 = vmatpush1.bf16.msra.mxu0 0
        %604 = vmatprep.subr.bf16.mxu0 0
        %605 = vmatpush1.bf16.msra.mxu0 0
        %606 = vmatprep.subr.bf16.mxu0 0
        %607 = vmatpush1.bf16.msra.mxu0 0
        %608 = vmatprep.subr.bf16.mxu0 0
        %609 = vmatpush1.bf16.msra.mxu0 0
        %610 = vmatprep.mubr.bf16.mxu0 0
        %611 = vmatmul.mubr.bf16.gmra.mrb[0].mxu0 %v527
        %v612 = vpop.f32.mrb[0].mxu0
        %v613 = vadd.f32 0.0, %v612
        %v614 = vpop.f32.mrb[0].mxu0
        %v615 = vpop.f32.mrb[0].mxu0
        %v616 = vadd.f32 0.0, %v615
        %v617 = vpop.f32.mrb[0].mxu0
        %618 = vmatprep.mubr.bf16.mxu0 0
        %619 = vmatmul.mubr.bf16.gmra.mrb[0].mxu0 %v530
        %v620 = vpop.f32.mrb[0].mxu0
        %v621 = vadd.f32 0.0, %v620
        %v622 = vpop.f32.mrb[0].mxu0
        %v623 = vpop.f32.mrb[0].mxu0
        %v624 = vadd.f32 0.0, %v623
        %v625 = vpop.f32.mrb[0].mxu0
        %626 = vmatprep.mubr.bf16.mxu0 0
        %627 = vmatmul.mubr.bf16.gmra.mrb[0].mxu0 %v533
        %v628 = vpop.f32.mrb[0].mxu0
        %v629 = vadd.f32 0.0, %v628
        %v630 = vpop.f32.mrb[0].mxu0
        %v631 = vpop.f32.mrb[0].mxu0
        %v632 = vadd.f32 0.0, %v631
        %v633 = vpop.f32.mrb[0].mxu0
        %634 = vmatprep.mubr.bf16.mxu0 0
        %635 = vmatmul.mubr.bf16.gmra.mrb[0].mxu0 %v536
        %v636 = vpop.f32.mrb[0].mxu0
        %v637 = vadd.f32 0.0, %v636
        %v638 = vpop.f32.mrb[0].mxu0
        %v639 = vpop.f32.mrb[0].mxu0
        %v640 = vadd.f32 0.0, %v639
        %v641 = vpop.f32.mrb[0].mxu0
        %642 = vmatprep.mubr.bf16.mxu0 0
        %643 = vmatmul.mubr.bf16.gmra.mrb[0].mxu0 %v539
        %v644 = vpop.f32.mrb[0].mxu0
        %v645 = vadd.f32 0.0, %v644
        %v646 = vpop.f32.mrb[0].mxu0
        %v647 = vpop.f32.mrb[0].mxu0
        %v648 = vadd.f32 0.0, %v647
        %v649 = vpop.f32.mrb[0].mxu0
        %650 = vmatprep.mubr.bf16.mxu0 0
        %651 = vmatmul.mubr.bf16.gmra.mrb[0].mxu0 %v542
        %v652 = vpop.f32.mrb[0].mxu0
        %v653 = vadd.f32 0.0, %v652
        %v654 = vpop.f32.mrb[0].mxu0
        %v655 = vpop.f32.mrb[0].mxu0
        %v656 = vadd.f32 0.0, %v655
        %v657 = vpop.f32.mrb[0].mxu0
        %658 = vmatprep.mubr.bf16.mxu0 0
        %659 = vmatmul.mubr.bf16.gmra.mrb[0].mxu0 %v545
        %v660 = vpop.f32.mrb[0].mxu0
        %v661 = vadd.f32 0.0, %v660
        %v662 = vpop.f32.mrb[0].mxu0
        %v663 = vpop.f32.mrb[0].mxu0
        %v664 = vadd.f32 0.0, %v663
        %v665 = vpop.f32.mrb[0].mxu0
        %666 = vmatprep.mubr.bf16.mxu0 0
        %667 = vmatmul.mubr.bf16.gmra.mrb[0].mxu0 %v548
        %v668 = vpop.f32.mrb[0].mxu0
        %v669 = vadd.f32 0.0, %v668
        %v670 = vpop.f32.mrb[0].mxu0
        %v671 = vpop.f32.mrb[0].mxu0
        %v672 = vadd.f32 0.0, %v671
        %v673 = vpop.f32.mrb[0].mxu0
        %674 = vmatprep.mubr.bf16.mxu0 0
        %675 = vmatmul.mubr.bf16.gmra.mrb[0].mxu0 %v551
        %v676 = vpop.f32.mrb[0].mxu0
        %v677 = vadd.f32 0.0, %v676
        %v678 = vpop.f32.mrb[0].mxu0
        %v679 = vpop.f32.mrb[0].mxu0
        %v680 = vadd.f32 0.0, %v679
        %v681 = vpop.f32.mrb[0].mxu0
        %682 = vmatprep.mubr.bf16.mxu0 0
        %683 = vmatmul.mubr.bf16.gmra.mrb[0].mxu0 %v554
        %v684 = vpop.f32.mrb[0].mxu0
        %v685 = vadd.f32 0.0, %v684
        %v686 = vpop.f32.mrb[0].mxu0
        %v687 = vpop.f32.mrb[0].mxu0
        %v688 = vadd.f32 0.0, %v687
        %v689 = vpop.f32.mrb[0].mxu0
        %690 = vmatprep.mubr.bf16.mxu0 0
        %691 = vmatmul.mubr.bf16.gmra.mrb[0].mxu0 %v557
        %v692 = vpop.f32.mrb[0].mxu0
        %v693 = vadd.f32 0.0, %v692
        %v694 = vpop.f32.mrb[0].mxu0
        %v695 = vpop.f32.mrb[0].mxu0
        %v696 = vadd.f32 0.0, %v695
        %v697 = vpop.f32.mrb[0].mxu0
        %698 = vmatprep.mubr.bf16.mxu0 0
        %699 = vmatmul.mubr.bf16.gmra.mrb[0].mxu0 %v560
        %v700 = vpop.f32.mrb[0].mxu0
        %v701 = vadd.f32 0.0, %v700
        %v702 = vpop.f32.mrb[0].mxu0
        %v703 = vpop.f32.mrb[0].mxu0
        %v704 = vadd.f32 0.0, %v703
        %v705 = vpop.f32.mrb[0].mxu0
        %706 = vmatprep.mubr.bf16.mxu0 0
        %707 = vmatmul.mubr.bf16.gmra.mrb[0].mxu0 %v563
        %v708 = vpop.f32.mrb[0].mxu0
        %v709 = vadd.f32 0.0, %v708
        %v710 = vpop.f32.mrb[0].mxu0
        %v711 = vpop.f32.mrb[0].mxu0
        %v712 = vadd.f32 0.0, %v711
        %v713 = vpop.f32.mrb[0].mxu0
        %714 = vmatprep.mubr.bf16.mxu0 0
        %715 = vmatmul.mubr.bf16.gmra.mrb[0].mxu0 %v566
        %v716 = vpop.f32.mrb[0].mxu0
        %v717 = vadd.f32 0.0, %v716
        %v718 = vpop.f32.mrb[0].mxu0
        %v719 = vpop.f32.mrb[0].mxu0
        %v720 = vadd.f32 0.0, %v719
        %v721 = vpop.f32.mrb[0].mxu0
        %722 = vmatprep.mubr.bf16.mxu0 0
        %723 = vmatmul.mubr.bf16.gmra.mrb[0].mxu0 %v569
        %v724 = vpop.f32.mrb[0].mxu0
        %v725 = vadd.f32 0.0, %v724
        %v726 = vpop.f32.mrb[0].mxu0
        %v727 = vpop.f32.mrb[0].mxu0
        %v728 = vadd.f32 0.0, %v727
        %v729 = vpop.f32.mrb[0].mxu0
        %730 = vmatprep.mubr.bf16.mxu0 0
        %731 = vmatmul.mubr.bf16.gmra.mrb[0].mxu0 %v572
        %v732 = vpop.f32.mrb[0].mxu0
        %v733 = vadd.f32 0.0, %v732
        %v734 = vpop.f32.mrb[0].mxu0
        %v735 = vpop.f32.mrb[0].mxu0
        %v736 = vadd.f32 0.0, %v735
        %v737 = vpop.f32.mrb[0].mxu0
        %738 = vdwg.mxu0
        %v741 = vunpack.c.l.b16 %v515
        %v742 = vunpack.c.l.b16 %v516
        %v743 = vpack.c.b16 %v742, %v741
        %v745 = vsel %vm464, %v499, 0
        %v748 = vsel %vm574, %v743, 0
        %750 = vmatprep.subr.bf16.mxu0 0
        %751 = vmatpush1.bf16.msra.mxu0 %v748
        %752 = vmatprep.subr.bf16.mxu0 0
        %753 = vmatpush1.bf16.msra.mxu0 0
        %754 = vmatprep.subr.bf16.mxu0 0
        %755 = vmatpush1.bf16.msra.mxu0 0
        %756 = vmatprep.subr.bf16.mxu0 0
        %757 = vmatpush1.bf16.msra.mxu0 0
        %758 = vmatprep.subr.bf16.mxu0 0
        %759 = vmatpush1.bf16.msra.mxu0 0
        %760 = vmatprep.subr.bf16.mxu0 0
        %761 = vmatpush1.bf16.msra.mxu0 0
        %762 = vmatprep.subr.bf16.mxu0 0
        %763 = vmatpush1.bf16.msra.mxu0 0
        %764 = vmatprep.subr.bf16.mxu0 0
        %765 = vmatpush1.bf16.msra.mxu0 0
        %766 = vmatprep.subr.bf16.mxu0 0
        %767 = vmatpush1.bf16.msra.mxu0 0
        %768 = vmatprep.subr.bf16.mxu0 0
        %769 = vmatpush1.bf16.msra.mxu0 0
        %770 = vmatprep.subr.bf16.mxu0 0
        %771 = vmatpush1.bf16.msra.mxu0 0
        %772 = vmatprep.subr.bf16.mxu0 0
        %773 = vmatpush1.bf16.msra.mxu0 0
        %774 = vmatprep.subr.bf16.mxu0 0
        %775 = vmatpush1.bf16.msra.mxu0 0
        %776 = vmatprep.subr.bf16.mxu0 0
        %777 = vmatpush1.bf16.msra.mxu0 0
        %778 = vmatprep.subr.bf16.mxu0 0
        %779 = vmatpush1.bf16.msra.mxu0 0
        %780 = vmatprep.subr.bf16.mxu0 0
        %781 = vmatpush1.bf16.msra.mxu0 0
        %782 = vmatprep.mubr.bf16.mxu0 0
        %783 = vmatmul.mubr.bf16.gmra.mrb[0].mxu0 %v745
        %v784 = vpop.f32.mrb[0].mxu0
        %v785 = vadd.f32 %v613, %v784
        %v786 = vpop.f32.mrb[0].mxu0
        %v787 = vpop.f32.mrb[0].mxu0
        %v788 = vadd.f32 %v616, %v787
        %v789 = vpop.f32.mrb[0].mxu0
        %790 = vmatprep.mubr.bf16.mxu0 0
        %791 = vmatmul.mubr.bf16.gmra.mrb[0].mxu0 %v527
        %v792 = vpop.f32.mrb[0].mxu0
        %v793 = vadd.f32 %v621, %v792
        %v794 = vpop.f32.mrb[0].mxu0
        %v795 = vpop.f32.mrb[0].mxu0
        %v796 = vadd.f32 %v624, %v795
        %v797 = vpop.f32.mrb[0].mxu0
        %798 = vmatprep.mubr.bf16.mxu0 0
        %799 = vmatmul.mubr.bf16.gmra.mrb[0].mxu0 %v530
        %v800 = vpop.f32.mrb[0].mxu0
        %v801 = vadd.f32 %v629, %v800
        %v802 = vpop.f32.mrb[0].mxu0
        %v803 = vpop.f32.mrb[0].mxu0
        %v804 = vadd.f32 %v632, %v803
        %v805 = vpop.f32.mrb[0].mxu0
        %806 = vmatprep.mubr.bf16.mxu0 0
        %807 = vmatmul.mubr.bf16.gmra.mrb[0].mxu0 %v533
        %v808 = vpop.f32.mrb[0].mxu0
        %v809 = vadd.f32 %v637, %v808
        %v810 = vpop.f32.mrb[0].mxu0
        %v811 = vpop.f32.mrb[0].mxu0
        %v812 = vadd.f32 %v640, %v811
        %v813 = vpop.f32.mrb[0].mxu0
        %814 = vmatprep.mubr.bf16.mxu0 0
        %815 = vmatmul.mubr.bf16.gmra.mrb[0].mxu0 %v536
        %v816 = vpop.f32.mrb[0].mxu0
        %v817 = vadd.f32 %v645, %v816
        %v818 = vpop.f32.mrb[0].mxu0
        %v819 = vpop.f32.mrb[0].mxu0
        %v820 = vadd.f32 %v648, %v819
        %v821 = vpop.f32.mrb[0].mxu0
        %822 = vmatprep.mubr.bf16.mxu0 0
        %823 = vmatmul.mubr.bf16.gmra.mrb[0].mxu0 %v539
        %v824 = vpop.f32.mrb[0].mxu0
        %v825 = vadd.f32 %v653, %v824
        %v826 = vpop.f32.mrb[0].mxu0
        %v827 = vpop.f32.mrb[0].mxu0
        %v828 = vadd.f32 %v656, %v827
        %v829 = vpop.f32.mrb[0].mxu0
        %830 = vmatprep.mubr.bf16.mxu0 0
        %831 = vmatmul.mubr.bf16.gmra.mrb[0].mxu0 %v542
        %v832 = vpop.f32.mrb[0].mxu0
        %v833 = vadd.f32 %v661, %v832
        %v834 = vpop.f32.mrb[0].mxu0
        %v835 = vpop.f32.mrb[0].mxu0
        %v836 = vadd.f32 %v664, %v835
        %v837 = vpop.f32.mrb[0].mxu0
        %838 = vmatprep.mubr.bf16.mxu0 0
        %839 = vmatmul.mubr.bf16.gmra.mrb[0].mxu0 %v545
        %v840 = vpop.f32.mrb[0].mxu0
        %v841 = vadd.f32 %v669, %v840
        %v842 = vpop.f32.mrb[0].mxu0
        %v843 = vpop.f32.mrb[0].mxu0
        %v844 = vadd.f32 %v672, %v843
        %v845 = vpop.f32.mrb[0].mxu0
        %846 = vmatprep.mubr.bf16.mxu0 0
        %847 = vmatmul.mubr.bf16.gmra.mrb[0].mxu0 %v548
        %v848 = vpop.f32.mrb[0].mxu0
        %v849 = vadd.f32 %v677, %v848
        %v850 = vpop.f32.mrb[0].mxu0
        %v851 = vpop.f32.mrb[0].mxu0
        %v852 = vadd.f32 %v680, %v851
        %v853 = vpop.f32.mrb[0].mxu0
        %854 = vmatprep.mubr.bf16.mxu0 0
        %855 = vmatmul.mubr.bf16.gmra.mrb[0].mxu0 %v551
        %v856 = vpop.f32.mrb[0].mxu0
        %v857 = vadd.f32 %v685, %v856
        %v858 = vpop.f32.mrb[0].mxu0
        %v859 = vpop.f32.mrb[0].mxu0
        %v860 = vadd.f32 %v688, %v859
        %v861 = vpop.f32.mrb[0].mxu0
        %862 = vmatprep.mubr.bf16.mxu0 0
        %863 = vmatmul.mubr.bf16.gmra.mrb[0].mxu0 %v554
        %v864 = vpop.f32.mrb[0].mxu0
        %v865 = vadd.f32 %v693, %v864
        %v866 = vpop.f32.mrb[0].mxu0
        %v867 = vpop.f32.mrb[0].mxu0
        %v868 = vadd.f32 %v696, %v867
        %v869 = vpop.f32.mrb[0].mxu0
        %870 = vmatprep.mubr.bf16.mxu0 0
        %871 = vmatmul.mubr.bf16.gmra.mrb[0].mxu0 %v557
        %v872 = vpop.f32.mrb[0].mxu0
        %v873 = vadd.f32 %v701, %v872
        %v874 = vpop.f32.mrb[0].mxu0
        %v875 = vpop.f32.mrb[0].mxu0
        %v876 = vadd.f32 %v704, %v875
        %v877 = vpop.f32.mrb[0].mxu0
        %878 = vmatprep.mubr.bf16.mxu0 0
        %879 = vmatmul.mubr.bf16.gmra.mrb[0].mxu0 %v560
        %v880 = vpop.f32.mrb[0].mxu0
        %v881 = vadd.f32 %v709, %v880
        %v882 = vpop.f32.mrb[0].mxu0
        %v883 = vpop.f32.mrb[0].mxu0
        %v884 = vadd.f32 %v712, %v883
        %v885 = vpop.f32.mrb[0].mxu0
        %886 = vmatprep.mubr.bf16.mxu0 0
        %887 = vmatmul.mubr.bf16.gmra.mrb[0].mxu0 %v563
        %v888 = vpop.f32.mrb[0].mxu0
        %v889 = vadd.f32 %v717, %v888
        %v890 = vpop.f32.mrb[0].mxu0
        %v891 = vpop.f32.mrb[0].mxu0
        %v892 = vadd.f32 %v720, %v891
        %v893 = vpop.f32.mrb[0].mxu0
        %894 = vmatprep.mubr.bf16.mxu0 0
        %895 = vmatmul.mubr.bf16.gmra.mrb[0].mxu0 %v566
        %v896 = vpop.f32.mrb[0].mxu0
        %v897 = vadd.f32 %v725, %v896
        %v898 = vpop.f32.mrb[0].mxu0
        %v899 = vpop.f32.mrb[0].mxu0
        %v900 = vadd.f32 %v728, %v899
        %v901 = vpop.f32.mrb[0].mxu0
        %902 = vmatprep.mubr.bf16.mxu0 0
        %903 = vmatmul.mubr.bf16.gmra.mrb[0].mxu0 %v569
        %v904 = vpop.f32.mrb[0].mxu0
        %v905 = vadd.f32 %v733, %v904
        %v906 = vpop.f32.mrb[0].mxu0
        %v907 = vpop.f32.mrb[0].mxu0
        %v908 = vadd.f32 %v736, %v907
        %v909 = vpop.f32.mrb[0].mxu0
        %910 = vdwg.mxu0
        %v911 = vld [vmem:[#allocation2 + $0x10] sm:$0xff]
        %v912 = vld [vmem:[#allocation2 + $0x18] sm:$0xff]
        %v913 = vld [vmem:[#allocation2 + $0x20] sm:$0xff]
        %v914 = vld [vmem:[#allocation2 + $0x28] sm:$0xff]
        %v915 = vld [vmem:[#allocation2 + $0x30] sm:$0xff]
        %v916 = vld [vmem:[#allocation2 + $0x38] sm:$0xff]
        %v917 = vld [vmem:[#allocation2 + $0x40] sm:$0xff]
        %v918 = vld [vmem:[#allocation2 + $0x48] sm:$0xff]
        %v919 = vld [vmem:[#allocation2 + $0x50] sm:$0xff]
        %v920 = vld [vmem:[#allocation2 + $0x58] sm:$0xff]
        %v921 = vld [vmem:[#allocation2 + $0x60] sm:$0xff]
        %v922 = vld [vmem:[#allocation2 + $0x68] sm:$0xff]
        %v923 = vld [vmem:[#allocation2 + $0x70] sm:$0xff]
        %v924 = vld [vmem:[#allocation2 + $0x78] sm:$0xff]
        %v925 = vld [vmem:[#allocation2 + $0x80] sm:$0xff]
        %v926 = vld [vmem:[#allocation2 + $0x88] sm:$0xff]
        %s927 = scalar_lea.vmem [#allocation3], 16
        %v928 = vld [vmem:[%s927] sm:$0xf]
        %v929 = vld [vmem:[%s927 + $0x4] sm:$0x3]
        %v932 = vunpack.c.l.b16 %v928
        %v933 = vunpack.c.l.b16 %v929
        %v934 = vpack.c.b16 %v933, %v932
        %v936 = vsel %vm464, %v911, 0
        %v939 = vsel %vm464, %v912, 0
        %v942 = vsel %vm464, %v913, 0
        %v945 = vsel %vm464, %v914, 0
        %v948 = vsel %vm464, %v915, 0
        %v951 = vsel %vm464, %v916, 0
        %v954 = vsel %vm464, %v917, 0
        %v957 = vsel %vm464, %v918, 0
        %v960 = vsel %vm464, %v919, 0
        %v963 = vsel %vm464, %v920, 0
        %v966 = vsel %vm464, %v921, 0
        %v969 = vsel %vm464, %v922, 0
        %v972 = vsel %vm464, %v923, 0
        %v975 = vsel %vm464, %v924, 0
        %v978 = vsel %vm464, %v925, 0
        %v981 = vsel %vm464, %v926, 0
        %v984 = vsel %vm574, %v934, 0
        %986 = vmatprep.subr.bf16.mxu0 0
        %987 = vmatpush1.bf16.msra.mxu0 %v984
        %988 = vmatprep.subr.bf16.mxu0 0
        %989 = vmatpush1.bf16.msra.mxu0 0
        %990 = vmatprep.subr.bf16.mxu0 0
        %991 = vmatpush1.bf16.msra.mxu0 0
        %992 = vmatprep.subr.bf16.mxu0 0
        %993 = vmatpush1.bf16.msra.mxu0 0
        %994 = vmatprep.subr.bf16.mxu0 0
        %995 = vmatpush1.bf16.msra.mxu0 0
        %996 = vmatprep.subr.bf16.mxu0 0
        %997 = vmatpush1.bf16.msra.mxu0 0
        %998 = vmatprep.subr.bf16.mxu0 0
        %999 = vmatpush1.bf16.msra.mxu0 0
        %1000 = vmatprep.subr.bf16.mxu0 0
        %1001 = vmatpush1.bf16.msra.mxu0 0
        %1002 = vmatprep.subr.bf16.mxu0 0
        %1003 = vmatpush1.bf16.msra.mxu0 0
        %1004 = vmatprep.subr.bf16.mxu0 0
        %1005 = vmatpush1.bf16.msra.mxu0 0
        %1006 = vmatprep.subr.bf16.mxu0 0
        %1007 = vmatpush1.bf16.msra.mxu0 0
        %1008 = vmatprep.subr.bf16.mxu0 0
        %1009 = vmatpush1.bf16.msra.mxu0 0
        %1010 = vmatprep.subr.bf16.mxu0 0
        %1011 = vmatpush1.bf16.msra.mxu0 0
        %1012 = vmatprep.subr.bf16.mxu0 0
        %1013 = vmatpush1.bf16.msra.mxu0 0
        %1014 = vmatprep.subr.bf16.mxu0 0
        %1015 = vmatpush1.bf16.msra.mxu0 0
        %1016 = vmatprep.subr.bf16.mxu0 0
        %1017 = vmatpush1.bf16.msra.mxu0 0
        %1018 = vmatprep.mubr.bf16.mxu0 0
        %1019 = vmatmul.mubr.bf16.gmra.mrb[0].mxu0 %v936
        %v1020 = vpop.f32.mrb[0].mxu0
        %v1021 = vadd.f32 0.0, %v1020
        %v1022 = vpop.f32.mrb[0].mxu0
        %v1023 = vpop.f32.mrb[0].mxu0
        %v1024 = vadd.f32 0.0, %v1023
        %v1025 = vpop.f32.mrb[0].mxu0
        %1026 = vmatprep.mubr.bf16.mxu0 0
        %1027 = vmatmul.mubr.bf16.gmra.mrb[0].mxu0 %v939
        %v1028 = vpop.f32.mrb[0].mxu0
        %v1029 = vadd.f32 0.0, %v1028
        %v1030 = vpop.f32.mrb[0].mxu0
        %v1031 = vpop.f32.mrb[0].mxu0
        %v1032 = vadd.f32 0.0, %v1031
        %v1033 = vpop.f32.mrb[0].mxu0
        %1034 = vmatprep.mubr.bf16.mxu0 0
        %1035 = vmatmul.mubr.bf16.gmra.mrb[0].mxu0 %v942
        %v1036 = vpop.f32.mrb[0].mxu0
        %v1037 = vadd.f32 0.0, %v1036
        %v1038 = vpop.f32.mrb[0].mxu0
        %v1039 = vpop.f32.mrb[0].mxu0
        %v1040 = vadd.f32 0.0, %v1039
        %v1041 = vpop.f32.mrb[0].mxu0
        %1042 = vmatprep.mubr.bf16.mxu0 0
        %1043 = vmatmul.mubr.bf16.gmra.mrb[0].mxu0 %v945
        %v1044 = vpop.f32.mrb[0].mxu0
        %v1045 = vadd.f32 0.0, %v1044
        %v1046 = vpop.f32.mrb[0].mxu0
        %v1047 = vpop.f32.mrb[0].mxu0
        %v1048 = vadd.f32 0.0, %v1047
        %v1049 = vpop.f32.mrb[0].mxu0
        %1050 = vmatprep.mubr.bf16.mxu0 0
        %1051 = vmatmul.mubr.bf16.gmra.mrb[0].mxu0 %v948
        %v1052 = vpop.f32.mrb[0].mxu0
        %v1053 = vadd.f32 0.0, %v1052
        %v1054 = vpop.f32.mrb[0].mxu0
        %v1055 = vpop.f32.mrb[0].mxu0
        %v1056 = vadd.f32 0.0, %v1055
        %v1057 = vpop.f32.mrb[0].mxu0
        %1058 = vmatprep.mubr.bf16.mxu0 0
        %1059 = vmatmul.mubr.bf16.gmra.mrb[0].mxu0 %v951
        %v1060 = vpop.f32.mrb[0].mxu0
        %v1061 = vadd.f32 0.0, %v1060
        %v1062 = vpop.f32.mrb[0].mxu0
        %v1063 = vpop.f32.mrb[0].mxu0
        %v1064 = vadd.f32 0.0, %v1063
        %v1065 = vpop.f32.mrb[0].mxu0
        %1066 = vmatprep.mubr.bf16.mxu0 0
        %1067 = vmatmul.mubr.bf16.gmra.mrb[0].mxu0 %v954
        %v1068 = vpop.f32.mrb[0].mxu0
        %v1069 = vadd.f32 0.0, %v1068
        %v1070 = vpop.f32.mrb[0].mxu0
        %v1071 = vpop.f32.mrb[0].mxu0
        %v1072 = vadd.f32 0.0, %v1071
        %v1073 = vpop.f32.mrb[0].mxu0
        %1074 = vmatprep.mubr.bf16.mxu0 0
        %1075 = vmatmul.mubr.bf16.gmra.mrb[0].mxu0 %v957
        %v1076 = vpop.f32.mrb[0].mxu0
        %v1077 = vadd.f32 0.0, %v1076
        %v1078 = vpop.f32.mrb[0].mxu0
        %v1079 = vpop.f32.mrb[0].mxu0
        %v1080 = vadd.f32 0.0, %v1079
        %v1081 = vpop.f32.mrb[0].mxu0
        %1082 = vmatprep.mubr.bf16.mxu0 0
        %1083 = vmatmul.mubr.bf16.gmra.mrb[0].mxu0 %v960
        %v1084 = vpop.f32.mrb[0].mxu0
        %v1085 = vadd.f32 0.0, %v1084
        %v1086 = vpop.f32.mrb[0].mxu0
        %v1087 = vpop.f32.mrb[0].mxu0
        %v1088 = vadd.f32 0.0, %v1087
        %v1089 = vpop.f32.mrb[0].mxu0
        %1090 = vmatprep.mubr.bf16.mxu0 0
        %1091 = vmatmul.mubr.bf16.gmra.mrb[0].mxu0 %v963
        %v1092 = vpop.f32.mrb[0].mxu0
        %v1093 = vadd.f32 0.0, %v1092
        %v1094 = vpop.f32.mrb[0].mxu0
        %v1095 = vpop.f32.mrb[0].mxu0
        %v1096 = vadd.f32 0.0, %v1095
        %v1097 = vpop.f32.mrb[0].mxu0
        %1098 = vmatprep.mubr.bf16.mxu0 0
        %1099 = vmatmul.mubr.bf16.gmra.mrb[0].mxu0 %v966
        %v1100 = vpop.f32.mrb[0].mxu0
        %v1101 = vadd.f32 0.0, %v1100
        %v1102 = vpop.f32.mrb[0].mxu0
        %v1103 = vpop.f32.mrb[0].mxu0
        %v1104 = vadd.f32 0.0, %v1103
        %v1105 = vpop.f32.mrb[0].mxu0
        %1106 = vmatprep.mubr.bf16.mxu0 0
        %1107 = vmatmul.mubr.bf16.gmra.mrb[0].mxu0 %v969
        %v1108 = vpop.f32.mrb[0].mxu0
        %v1109 = vadd.f32 0.0, %v1108
        %v1110 = vpop.f32.mrb[0].mxu0
        %v1111 = vpop.f32.mrb[0].mxu0
        %v1112 = vadd.f32 0.0, %v1111
        %v1113 = vpop.f32.mrb[0].mxu0
        %1114 = vmatprep.mubr.bf16.mxu0 0
        %1115 = vmatmul.mubr.bf16.gmra.mrb[0].mxu0 %v972
        %v1116 = vpop.f32.mrb[0].mxu0
        %v1117 = vadd.f32 0.0, %v1116
        %v1118 = vpop.f32.mrb[0].mxu0
        %v1119 = vpop.f32.mrb[0].mxu0
        %v1120 = vadd.f32 0.0, %v1119
        %v1121 = vpop.f32.mrb[0].mxu0
        %1122 = vmatprep.mubr.bf16.mxu0 0
        %1123 = vmatmul.mubr.bf16.gmra.mrb[0].mxu0 %v975
        %v1124 = vpop.f32.mrb[0].mxu0
        %v1125 = vadd.f32 0.0, %v1124
        %v1126 = vpop.f32.mrb[0].mxu0
        %v1127 = vpop.f32.mrb[0].mxu0
        %v1128 = vadd.f32 0.0, %v1127
        %v1129 = vpop.f32.mrb[0].mxu0
        %1130 = vmatprep.mubr.bf16.mxu0 0
        %1131 = vmatmul.mubr.bf16.gmra.mrb[0].mxu0 %v978
        %v1132 = vpop.f32.mrb[0].mxu0
        %v1133 = vadd.f32 0.0, %v1132
        %v1134 = vpop.f32.mrb[0].mxu0
        %v1135 = vpop.f32.mrb[0].mxu0
        %v1136 = vadd.f32 0.0, %v1135
        %v1137 = vpop.f32.mrb[0].mxu0
        %1138 = vmatprep.mubr.bf16.mxu0 0
        %1139 = vmatmul.mubr.bf16.gmra.mrb[0].mxu0 %v981
        %v1140 = vpop.f32.mrb[0].mxu0
        %v1141 = vadd.f32 0.0, %v1140
        %v1142 = vpop.f32.mrb[0].mxu0
        %v1143 = vpop.f32.mrb[0].mxu0
        %v1144 = vadd.f32 0.0, %v1143
        %v1145 = vpop.f32.mrb[0].mxu0
        %1146 = vdwg.mxu0
        %v1147 = vadd.f32 %v785, %v1021
        %v1148 = vadd.f32 %v788, %v1024
        %v1149 = vadd.f32 %v793, %v1029
        %v1150 = vadd.f32 %v796, %v1032
        %v1151 = vadd.f32 %v801, %v1037
        %v1152 = vadd.f32 %v804, %v1040
        %v1153 = vadd.f32 %v809, %v1045
        %v1154 = vadd.f32 %v812, %v1048
        %v1155 = vadd.f32 %v817, %v1053
        %v1156 = vadd.f32 %v820, %v1056
        %v1157 = vadd.f32 %v825, %v1061
        %v1158 = vadd.f32 %v828, %v1064
        %v1159 = vadd.f32 %v833, %v1069
        %v1160 = vadd.f32 %v836, %v1072
        %v1161 = vadd.f32 %v841, %v1077
        %v1162 = vadd.f32 %v844, %v1080
        %v1163 = vadd.f32 %v849, %v1085
        %v1164 = vadd.f32 %v852, %v1088
        %v1165 = vadd.f32 %v857, %v1093
        %v1166 = vadd.f32 %v860, %v1096
        %v1167 = vadd.f32 %v865, %v1101
        %v1168 = vadd.f32 %v868, %v1104
        %v1169 = vadd.f32 %v873, %v1109
        %v1170 = vadd.f32 %v876, %v1112
        %v1171 = vadd.f32 %v881, %v1117
        %v1172 = vadd.f32 %v884, %v1120
        %v1173 = vadd.f32 %v889, %v1125
        %v1174 = vadd.f32 %v892, %v1128
        %v1175 = vadd.f32 %v897, %v1133
        %v1176 = vadd.f32 %v900, %v1136
        %v1177 = vadd.f32 %v905, %v1141
        %v1178 = vadd.f32 %v908, %v1144
        %v1179 = vld [vmem:[#allocation5] sm:$0x1]
        %v1181 = vlaneseq
        %v1182 = vshrl.u32 %v1181, 7
        %v1183 = vsub.s32 0, %v1182
        %v1184 = vrot.slane %v1179, %v1183
        %v1186 = vadd.f32 %v1147, %v1184
        %v1187 = vadd.f32 %v1148, %v1184
        %v1188 = vadd.f32 %v1149, %v1184
        %v1189 = vadd.f32 %v1150, %v1184
        %v1190 = vadd.f32 %v1151, %v1184
        %v1191 = vadd.f32 %v1152, %v1184
        %v1192 = vadd.f32 %v1153, %v1184
        %v1193 = vadd.f32 %v1154, %v1184
        %v1194 = vadd.f32 %v1155, %v1184
        %v1195 = vadd.f32 %v1156, %v1184
        %v1196 = vadd.f32 %v1157, %v1184
        %v1197 = vadd.f32 %v1158, %v1184
        %v1198 = vadd.f32 %v1159, %v1184
        %v1199 = vadd.f32 %v1160, %v1184
        %v1200 = vadd.f32 %v1161, %v1184
        %v1201 = vadd.f32 %v1162, %v1184
        %v1202 = vadd.f32 %v1163, %v1184
        %v1203 = vadd.f32 %v1164, %v1184
        %v1204 = vadd.f32 %v1165, %v1184
        %v1205 = vadd.f32 %v1166, %v1184
        %v1206 = vadd.f32 %v1167, %v1184
        %v1207 = vadd.f32 %v1168, %v1184
        %v1208 = vadd.f32 %v1169, %v1184
        %v1209 = vadd.f32 %v1170, %v1184
        %v1210 = vadd.f32 %v1171, %v1184
        %v1211 = vadd.f32 %v1172, %v1184
        %v1212 = vadd.f32 %v1173, %v1184
        %v1213 = vadd.f32 %v1174, %v1184
        %v1214 = vadd.f32 %v1175, %v1184
        %v1215 = vadd.f32 %v1176, %v1184
        %v1216 = vadd.f32 %v1177, %v1184
        %v1217 = vadd.f32 %v1178, %v1184
        %v1218 = vxor.u32 %v1186, 2147483648
        %v1219 = vxor.u32 %v1187, 2147483648
        %v1220 = vxor.u32 %v1188, 2147483648
        %v1221 = vxor.u32 %v1189, 2147483648
        %v1222 = vxor.u32 %v1190, 2147483648
        %v1223 = vxor.u32 %v1191, 2147483648
        %v1224 = vxor.u32 %v1192, 2147483648
        %v1225 = vxor.u32 %v1193, 2147483648
        %v1226 = vxor.u32 %v1194, 2147483648
        %v1227 = vxor.u32 %v1195, 2147483648
        %v1228 = vxor.u32 %v1196, 2147483648
        %v1229 = vxor.u32 %v1197, 2147483648
        %v1230 = vxor.u32 %v1198, 2147483648
        %v1231 = vxor.u32 %v1199, 2147483648
        %v1232 = vxor.u32 %v1200, 2147483648
        %v1233 = vxor.u32 %v1201, 2147483648
        %v1234 = vxor.u32 %v1202, 2147483648
        %v1235 = vxor.u32 %v1203, 2147483648
        %v1236 = vxor.u32 %v1204, 2147483648
        %v1237 = vxor.u32 %v1205, 2147483648
        %v1238 = vxor.u32 %v1206, 2147483648
        %v1239 = vxor.u32 %v1207, 2147483648
        %v1240 = vxor.u32 %v1208, 2147483648
        %v1241 = vxor.u32 %v1209, 2147483648
        %v1242 = vxor.u32 %v1210, 2147483648
        %v1243 = vxor.u32 %v1211, 2147483648
        %v1244 = vxor.u32 %v1212, 2147483648
        %v1245 = vxor.u32 %v1213, 2147483648
        %v1246 = vxor.u32 %v1214, 2147483648
        %v1247 = vxor.u32 %v1215, 2147483648
        %v1248 = vxor.u32 %v1216, 2147483648
        %v1249 = vxor.u32 %v1217, 2147483648
        %v1250 = vmul.f32 %v1218, 1.442695
        %v1251 = vpow.pop %v1250
        %v1252 = vmul.f32 %v1219, 1.442695
        %v1253 = vpow.pop %v1252
        %v1254 = vmul.f32 %v1220, 1.442695
        %v1255 = vpow.pop %v1254
        %v1256 = vmul.f32 %v1221, 1.442695
        %v1257 = vpow.pop %v1256
        %v1258 = vmul.f32 %v1222, 1.442695
        %v1259 = vpow.pop %v1258
        %v1260 = vmul.f32 %v1223, 1.442695
        %v1261 = vpow.pop %v1260
        %v1262 = vmul.f32 %v1224, 1.442695
        %v1263 = vpow.pop %v1262
        %v1264 = vmul.f32 %v1225, 1.442695
        %v1265 = vpow.pop %v1264
        %v1266 = vmul.f32 %v1226, 1.442695
        %v1267 = vpow.pop %v1266
        %v1268 = vmul.f32 %v1227, 1.442695
        %v1269 = vpow.pop %v1268
        %v1270 = vmul.f32 %v1228, 1.442695
        %v1271 = vpow.pop %v1270
        %v1272 = vmul.f32 %v1229, 1.442695
        %v1273 = vpow.pop %v1272
        %v1274 = vmul.f32 %v1230, 1.442695
        %v1275 = vpow.pop %v1274
        %v1276 = vmul.f32 %v1231, 1.442695
        %v1277 = vpow.pop %v1276
        %v1278 = vmul.f32 %v1232, 1.442695
        %v1279 = vpow.pop %v1278
        %v1280 = vmul.f32 %v1233, 1.442695
        %v1281 = vpow.pop %v1280
        %v1282 = vmul.f32 %v1234, 1.442695
        %v1283 = vpow.pop %v1282
        %v1284 = vmul.f32 %v1235, 1.442695
        %v1285 = vpow.pop %v1284
        %v1286 = vmul.f32 %v1236, 1.442695
        %v1287 = vpow.pop %v1286
        %v1288 = vmul.f32 %v1237, 1.442695
        %v1289 = vpow.pop %v1288
        %v1290 = vmul.f32 %v1238, 1.442695
        %v1291 = vpow.pop %v1290
        %v1292 = vmul.f32 %v1239, 1.442695
        %v1293 = vpow.pop %v1292
        %v1294 = vmul.f32 %v1240, 1.442695
        %v1295 = vpow.pop %v1294
        %v1296 = vmul.f32 %v1241, 1.442695
        %v1297 = vpow.pop %v1296
        %v1298 = vmul.f32 %v1242, 1.442695
        %v1299 = vpow.pop %v1298
        %v1300 = vmul.f32 %v1243, 1.442695
        %v1301 = vpow.pop %v1300
        %v1302 = vmul.f32 %v1244, 1.442695
        %v1303 = vpow.pop %v1302
        %v1304 = vmul.f32 %v1245, 1.442695
        %v1305 = vpow.pop %v1304
        %v1306 = vmul.f32 %v1246, 1.442695
        %v1307 = vpow.pop %v1306
        %v1308 = vmul.f32 %v1247, 1.442695
        %v1309 = vpow.pop %v1308
        %v1310 = vmul.f32 %v1248, 1.442695
        %v1311 = vpow.pop %v1310
        %v1312 = vmul.f32 %v1249, 1.442695
        %v1313 = vpow.pop %v1312
        %v1314 = vadd.f32 %v1251, 1.0
        %v1315 = vadd.f32 %v1253, 1.0
        %v1316 = vadd.f32 %v1255, 1.0
        %v1317 = vadd.f32 %v1257, 1.0
        %v1318 = vadd.f32 %v1259, 1.0
        %v1319 = vadd.f32 %v1261, 1.0
        %v1320 = vadd.f32 %v1263, 1.0
        %v1321 = vadd.f32 %v1265, 1.0
        %v1322 = vadd.f32 %v1267, 1.0
        %v1323 = vadd.f32 %v1269, 1.0
        %v1324 = vadd.f32 %v1271, 1.0
        %v1325 = vadd.f32 %v1273, 1.0
        %v1326 = vadd.f32 %v1275, 1.0
        %v1327 = vadd.f32 %v1277, 1.0
        %v1328 = vadd.f32 %v1279, 1.0
        %v1329 = vadd.f32 %v1281, 1.0
        %v1330 = vadd.f32 %v1283, 1.0
        %v1331 = vadd.f32 %v1285, 1.0
        %v1332 = vadd.f32 %v1287, 1.0
        %v1333 = vadd.f32 %v1289, 1.0
        %v1334 = vadd.f32 %v1291, 1.0
        %v1335 = vadd.f32 %v1293, 1.0
        %v1336 = vadd.f32 %v1295, 1.0
        %v1337 = vadd.f32 %v1297, 1.0
        %v1338 = vadd.f32 %v1299, 1.0
        %v1339 = vadd.f32 %v1301, 1.0
        %v1340 = vadd.f32 %v1303, 1.0
        %v1341 = vadd.f32 %v1305, 1.0
        %v1342 = vadd.f32 %v1307, 1.0
        %v1343 = vadd.f32 %v1309, 1.0
        %v1344 = vadd.f32 %v1311, 1.0
        %v1345 = vadd.f32 %v1313, 1.0
        %v1346 = vrcp.pop %v1314
        %v1347 = vmul.f32 1.0, %v1346
        %v1348 = vrcp.pop %v1315
        %v1349 = vmul.f32 1.0, %v1348
        %v1350 = vrcp.pop %v1316
        %v1351 = vmul.f32 1.0, %v1350
        %v1352 = vrcp.pop %v1317
        %v1353 = vmul.f32 1.0, %v1352
        %v1354 = vrcp.pop %v1318
        %v1355 = vmul.f32 1.0, %v1354
        %v1356 = vrcp.pop %v1319
        %v1357 = vmul.f32 1.0, %v1356
        %v1358 = vrcp.pop %v1320
        %v1359 = vmul.f32 1.0, %v1358
        %v1360 = vrcp.pop %v1321
        %v1361 = vmul.f32 1.0, %v1360
        %v1362 = vrcp.pop %v1322
        %v1363 = vmul.f32 1.0, %v1362
        %v1364 = vrcp.pop %v1323
        %v1365 = vmul.f32 1.0, %v1364
        %v1366 = vrcp.pop %v1324
        %v1367 = vmul.f32 1.0, %v1366
        %v1368 = vrcp.pop %v1325
        %v1369 = vmul.f32 1.0, %v1368
        %v1370 = vrcp.pop %v1326
        %v1371 = vmul.f32 1.0, %v1370
        %v1372 = vrcp.pop %v1327
        %v1373 = vmul.f32 1.0, %v1372
        %v1374 = vrcp.pop %v1328
        %v1375 = vmul.f32 1.0, %v1374
        %v1376 = vrcp.pop %v1329
        %v1377 = vmul.f32 1.0, %v1376
        %v1378 = vrcp.pop %v1330
        %v1379 = vmul.f32 1.0, %v1378
        %v1380 = vrcp.pop %v1331
        %v1381 = vmul.f32 1.0, %v1380
        %v1382 = vrcp.pop %v1332
        %v1383 = vmul.f32 1.0, %v1382
        %v1384 = vrcp.pop %v1333
        %v1385 = vmul.f32 1.0, %v1384
        %v1386 = vrcp.pop %v1334
        %v1387 = vmul.f32 1.0, %v1386
        %v1388 = vrcp.pop %v1335
        %v1389 = vmul.f32 1.0, %v1388
        %v1390 = vrcp.pop %v1336
        %v1391 = vmul.f32 1.0, %v1390
        %v1392 = vrcp.pop %v1337
        %v1393 = vmul.f32 1.0, %v1392
        %v1394 = vrcp.pop %v1338
        %v1395 = vmul.f32 1.0, %v1394
        %v1396 = vrcp.pop %v1339
        %v1397 = vmul.f32 1.0, %v1396
        %v1398 = vrcp.pop %v1340
        %v1399 = vmul.f32 1.0, %v1398
        %v1400 = vrcp.pop %v1341
        %v1401 = vmul.f32 1.0, %v1400
        %v1402 = vrcp.pop %v1342
        %v1403 = vmul.f32 1.0, %v1402
        %v1404 = vrcp.pop %v1343
        %v1405 = vmul.f32 1.0, %v1404
        %v1406 = vrcp.pop %v1344
        %v1407 = vmul.f32 1.0, %v1406
        %v1408 = vrcp.pop %v1345
        %v1409 = vmul.f32 1.0, %v1408
        %v1410 = vmul.f32 %v1186, %v1347
        %v1411 = vmul.f32 %v1187, %v1349
        %v1412 = vmul.f32 %v1188, %v1351
        %v1413 = vmul.f32 %v1189, %v1353
        %v1414 = vmul.f32 %v1190, %v1355
        %v1415 = vmul.f32 %v1191, %v1357
        %v1416 = vmul.f32 %v1192, %v1359
        %v1417 = vmul.f32 %v1193, %v1361
        %v1418 = vmul.f32 %v1194, %v1363
        %v1419 = vmul.f32 %v1195, %v1365
        %v1420 = vmul.f32 %v1196, %v1367
        %v1421 = vmul.f32 %v1197, %v1369
        %v1422 = vmul.f32 %v1198, %v1371
        %v1423 = vmul.f32 %v1199, %v1373
        %v1424 = vmul.f32 %v1200, %v1375
        %v1425 = vmul.f32 %v1201, %v1377
        %v1426 = vmul.f32 %v1202, %v1379
        %v1427 = vmul.f32 %v1203, %v1381
        %v1428 = vmul.f32 %v1204, %v1383
        %v1429 = vmul.f32 %v1205, %v1385
        %v1430 = vmul.f32 %v1206, %v1387
        %v1431 = vmul.f32 %v1207, %v1389
        %v1432 = vmul.f32 %v1208, %v1391
        %v1433 = vmul.f32 %v1209, %v1393
        %v1434 = vmul.f32 %v1210, %v1395
        %v1435 = vmul.f32 %v1211, %v1397
        %v1436 = vmul.f32 %v1212, %v1399
        %v1437 = vmul.f32 %v1213, %v1401
        %v1438 = vmul.f32 %v1214, %v1403
        %v1439 = vmul.f32 %v1215, %v1405
        %v1440 = vmul.f32 %v1216, %v1407
        %v1441 = vmul.f32 %v1217, %v1409
        %v1442 = vpack.c.bf16 %v1411, %v1410
        %v1443 = vpack.c.bf16 %v1413, %v1412
        %v1444 = vpack.c.bf16 %v1415, %v1414
        %v1445 = vpack.c.bf16 %v1417, %v1416
        %v1446 = vpack.c.bf16 %v1419, %v1418
        %v1447 = vpack.c.bf16 %v1421, %v1420
        %v1448 = vpack.c.bf16 %v1423, %v1422
        %v1449 = vpack.c.bf16 %v1425, %v1424
        %v1450 = vpack.c.bf16 %v1427, %v1426
        %v1451 = vpack.c.bf16 %v1429, %v1428
        %v1452 = vpack.c.bf16 %v1431, %v1430
        %v1453 = vpack.c.bf16 %v1433, %v1432
        %v1454 = vpack.c.bf16 %v1435, %v1434
        %v1455 = vpack.c.bf16 %v1437, %v1436
        %v1456 = vpack.c.bf16 %v1439, %v1438
        %v1457 = vpack.c.bf16 %v1441, %v1440
        %v1474 = vunpack.c.l.b16 %v1442
        %v1475 = vunpack.c.h.b16 %v1442
        %v1476 = vunpack.c.l.b16 %v1443
        %v1477 = vunpack.c.h.b16 %v1443
        %v1478 = vunpack.c.l.b16 %v1444
        %v1479 = vunpack.c.h.b16 %v1444
        %v1480 = vunpack.c.l.b16 %v1445
        %v1481 = vunpack.c.h.b16 %v1445
        %v1482 = vunpack.c.l.b16 %v1446
        %v1483 = vunpack.c.h.b16 %v1446
        %v1484 = vunpack.c.l.b16 %v1447
        %v1485 = vunpack.c.h.b16 %v1447
        %v1486 = vunpack.c.l.b16 %v1448
        %v1487 = vunpack.c.h.b16 %v1448
        %v1488 = vunpack.c.l.b16 %v1449
        %v1489 = vunpack.c.h.b16 %v1449
        %v1490 = vunpack.c.l.b16 %v1450
        %v1491 = vunpack.c.h.b16 %v1450
        %v1492 = vunpack.c.l.b16 %v1451
        %v1493 = vunpack.c.h.b16 %v1451
        %v1494 = vunpack.c.l.b16 %v1452
        %v1495 = vunpack.c.h.b16 %v1452
        %v1496 = vunpack.c.l.b16 %v1453
        %v1497 = vunpack.c.h.b16 %v1453
        %v1498 = vunpack.c.l.b16 %v1454
        %v1499 = vunpack.c.h.b16 %v1454
        %v1500 = vunpack.c.l.b16 %v1455
        %v1501 = vunpack.c.h.b16 %v1455
        %v1502 = vunpack.c.l.b16 %v1456
        %v1503 = vunpack.c.h.b16 %v1456
        %v1504 = vunpack.c.l.b16 %v1457
        %v1505 = vunpack.c.h.b16 %v1457
        %v1506 = vpack.c.b16 %v1474, %v1474
        %v1507 = vpack.c.b16 %v1475, %v1475
        %v1508 = vpack.c.b16 %v1476, %v1476
        %v1509 = vpack.c.b16 %v1477, %v1477
        %v1510 = vpack.c.b16 %v1478, %v1478
        %v1511 = vpack.c.b16 %v1479, %v1479
        %v1512 = vpack.c.b16 %v1480, %v1480
        %v1513 = vpack.c.b16 %v1481, %v1481
        %v1514 = vpack.c.b16 %v1482, %v1482
        %v1515 = vpack.c.b16 %v1483, %v1483
        %v1516 = vpack.c.b16 %v1484, %v1484
        %v1517 = vpack.c.b16 %v1485, %v1485
        %v1518 = vpack.c.b16 %v1486, %v1486
        %v1519 = vpack.c.b16 %v1487, %v1487
        %v1520 = vpack.c.b16 %v1488, %v1488
        %v1521 = vpack.c.b16 %v1489, %v1489
        %v1522 = vpack.c.b16 %v1490, %v1490
        %v1523 = vpack.c.b16 %v1491, %v1491
        %v1524 = vpack.c.b16 %v1492, %v1492
        %v1525 = vpack.c.b16 %v1493, %v1493
        %v1526 = vpack.c.b16 %v1494, %v1494
        %v1527 = vpack.c.b16 %v1495, %v1495
        %v1528 = vpack.c.b16 %v1496, %v1496
        %v1529 = vpack.c.b16 %v1497, %v1497
        %v1530 = vpack.c.b16 %v1498, %v1498
        %v1531 = vpack.c.b16 %v1499, %v1499
        %v1532 = vpack.c.b16 %v1500, %v1500
        %v1533 = vpack.c.b16 %v1501, %v1501
        %v1534 = vpack.c.b16 %v1502, %v1502
        %v1535 = vpack.c.b16 %v1503, %v1503
        %v1536 = vpack.c.b16 %v1504, %v1504
        %v1537 = vpack.c.b16 %v1505, %v1505
        %1570 = vst [vmem:[%s333] sm:$0xf] %v1506
        %1571 = vst [vmem:[%s333 + $0x4] sm:$0xf] %v1507
        %1572 = vst [vmem:[%s333 + $0x8] sm:$0xf] %v1508
        %1573 = vst [vmem:[%s333 + $0xc] sm:$0xf] %v1509
        %1574 = vst [vmem:[%s333 + $0x10] sm:$0xf] %v1510
        %1575 = vst [vmem:[%s333 + $0x14] sm:$0xf] %v1511
        %1576 = vst [vmem:[%s333 + $0x18] sm:$0xf] %v1512
        %1577 = vst [vmem:[%s333 + $0x1c] sm:$0xf] %v1513
        %1578 = vst [vmem:[%s333 + $0x20] sm:$0xf] %v1514
        %1579 = vst [vmem:[%s333 + $0x24] sm:$0xf] %v1515
        %1580 = vst [vmem:[%s333 + $0x28] sm:$0xf] %v1516
        %1581 = vst [vmem:[%s333 + $0x2c] sm:$0xf] %v1517
        %1582 = vst [vmem:[%s333 + $0x30] sm:$0xf] %v1518
        %1583 = vst [vmem:[%s333 + $0x34] sm:$0xf] %v1519
        %1584 = vst [vmem:[%s333 + $0x38] sm:$0xf] %v1520
        %1585 = vst [vmem:[%s333 + $0x3c] sm:$0xf] %v1521
        %1586 = vst [vmem:[%s333 + $0x40] sm:$0xf] %v1522
        %1587 = vst [vmem:[%s333 + $0x44] sm:$0xf] %v1523
        %1588 = vst [vmem:[%s333 + $0x48] sm:$0xf] %v1524
        %1589 = vst [vmem:[%s333 + $0x4c] sm:$0xf] %v1525
        %1590 = vst [vmem:[%s333 + $0x50] sm:$0xf] %v1526
        %1591 = vst [vmem:[%s333 + $0x54] sm:$0xf] %v1527
        %1592 = vst [vmem:[%s333 + $0x58] sm:$0xf] %v1528
        %1593 = vst [vmem:[%s333 + $0x5c] sm:$0xf] %v1529
        %1594 = vst [vmem:[%s333 + $0x60] sm:$0xf] %v1530
        %1595 = vst [vmem:[%s333 + $0x64] sm:$0xf] %v1531
        %1596 = vst [vmem:[%s333 + $0x68] sm:$0xf] %v1532
        %1597 = vst [vmem:[%s333 + $0x6c] sm:$0xf] %v1533
        %1598 = vst [vmem:[%s333 + $0x70] sm:$0xf] %v1534
        %1599 = vst [vmem:[%s333 + $0x74] sm:$0xf] %v1535
        %1600 = vst [vmem:[%s333 + $0x78] sm:$0xf] %v1536
        %1601 = vst [vmem:[%s333 + $0x7c] sm:$0xf] %v1537
        %s1602 = smul.u32 32, %s22
        %p1603 = scmp.lt.s32.totalorder %s21, 1
        %s1604 = scalar_select %p1603, %s21, 1
        %p1605 = scmp.lt.s32.totalorder %s1602, 31
        %s1606 = scalar_select %p1605, %s1602, 31
        %s1607 = smul.addr %s1604, 32
        %s1608 = sadd.s32 %s1606, %s1607
        %s1609 = smul.addr %s1608, 4
        %s1610 = scalar_lea.vmem %s4, %s1609
        // Predicated region
        $region45: #{bottleneck_mdconv_forward.3} parent=35 // pred_check
          %p1611 = pneg %p151
        $region46: #{bottleneck_mdconv_forward.3} parent=35 // pred_check_branch
          %1613 = sbr.rel (%p1611) target = $region48
        $region47: #{bottleneck_mdconv_forward.3} parent=35 // pred_region
          %s1614 = smul.u32 32, %s22
        $region48: #{bottleneck_mdconv_forward.3} parent=35 // pred_fallthru
          _
      $region36: #{bottleneck_mdconv_forward.3} parent=5 // pred_fallthru
        _
      %p1615 = scmp.le.s32.totalorder 2, %s12
      // Predicated region
      $region49: #{bottleneck_mdconv_forward.3} parent=5 // pred_check
        %p1616 = pneg %p1615
      $region50: #{bottleneck_mdconv_forward.3} parent=5 // pred_check_branch
        %1618 = sbr.rel (%p1616) target = $region52
      $region51: #{bottleneck_mdconv_forward.3} parent=5 // pred_region
        %s1619 = ssub.s32 %s12, 2
        // Predicated region
        $region53: #{bottleneck_mdconv_forward.3} parent=51 // pred_check
          %p1620 = pneg %p157
        $region54: #{bottleneck_mdconv_forward.3} parent=51 // pred_check_branch
          %1622 = sbr.rel (%p1620) target = $region56
        $region55: #{bottleneck_mdconv_forward.3} parent=51 // pred_region
          %s1623 = smul.u32 32, %s24
          %p1624 = scmp.lt.s32.totalorder %s23, 1
          %s1625 = scalar_select %p1624, %s23, 1
          %p1626 = scmp.lt.s32.totalorder %s1623, 31
          %s1627 = scalar_select %p1626, %s1623, 31
          %s1628 = smul.addr %s1625, 32
          %s1629 = sadd.s32 %s1627, %s1628
          %s1630 = smul.addr %s1629, 4
          %s1631 = scalar_lea.vmem %s4, %s1630
        $region56: #{bottleneck_mdconv_forward.3} parent=51 // pred_fallthru
          _
      $region52: #{bottleneck_mdconv_forward.3} parent=5 // pred_fallthru
        _
    $region6: #{bottleneck_mdconv_forward.3} parent=1 // loop_footer
      %s16 = sadd.s32 1, %s12
    $region7: #{bottleneck_mdconv_forward.3} parent=1 // loop_footer_branch
      %11 = sbr.rel target = $region3
    $region8: #{bottleneck_mdconv_forward.3} parent=1 // loop_exit
      _
    %1632 = vsyncpa [#allocation4], 1
    %s1633 = scalar_lea.sflag [#allocation4], 1
    %1634 = vsyncpa %s1633, 1
    %1635 = vsyncpa [#allocation6], 1

// kernel: bottleneck_mdconv_forward.4
$region0: #{bottleneck_mdconv_forward.4}
  #allocation0 [shape = 'u32[]', space=smem, size = 0x4, offset = 0x4, fixed_abs, tag = 'smem constant byte address 0x4 - core index']
  #allocation1 [shape = 'u32[144,128]{1,0:T(1,128)}', space=vmem, size = 0x12000, scoped, tag = 'internal scratch']
  #allocation2 [shape = 'bf16[288,6]{1,0:T(16,128)(2,1)}', space=vmem, size = 0x12000, scoped, tag = 'scratch operand']
  %s0 = inlined_call_operand.vmem [shape: bf16[2,288,6], index: 0, kind: input, shape index: {}, may-alias: {0,1}]
  %s1 = inlined_call_operand.vmem [shape: bf16[2,288,6], index: 1, kind: input, shape index: {}, may-alias: {0,1}]
  %s2 = inlined_call_operand.hbm [shape: bf16[3,6,128], index: 2, kind: input, shape index: {}]
  %s3 = inlined_call_operand.hbm [shape: f32[1,128], index: 3, kind: input, shape index: {}]
  %s4 = inlined_call_operand.vmem [shape: f32[2,256,128], index: 4, kind: output, shape index: {}]
  %s5 = sld [smem:[#allocation0]]
  $region57: #{bottleneck_mdconv_forward.4} parent=0
    _
  %s7 = ssub.s32 1, %s5
  %s8 = scalar_select 0, %s7, %s5
  $region1: #{bottleneck_mdconv_forward.4} parent=0
    #allocation3 [shape = 'u8[6144]{0}', space=vmem, size = 0x1800, scoped, tag = 'input window, operand 2, single buffered']
    #allocation4 [shape = 's32[2]{0}', space=sflag, size = 0x8, scoped, tag = 'scoped memory for bottleneck_mdconv_forward.4']
    #allocation5 [shape = 'u8[512]{0}', space=vmem, size = 0x400, scoped, tag = 'input window, operand 3, single buffered']
    #allocation6 [shape = 's32[1]{0}', space=sflag, size = 0x4, scoped, tag = 'scoped memory for bottleneck_mdconv_forward.4']
    %9 = vsyncpa [#allocation4], 0
    %10 = vsyncpa [#allocation6], 0
    loop: start=0, step=1, limit=4
    $region2: #{bottleneck_mdconv_forward.4} parent=1 // loop_pre_header
      _
    $region3: #{bottleneck_mdconv_forward.4} parent=1 // loop_header
      %s12 = sphi 0, %s16
      %p13 = scmp.ge.s32.totalorder %s12, 4
      %s19 = sphi 0, %s31
      %s20 = sphi 0, %s27
      %s21 = sphi 0, %s19
      %s22 = sphi 0, %s20
      %s23 = sphi 0, %s21
      %s24 = sphi 0, %s22
      %s36 = sphi 0, %s38
      %s39 = sphi 0, %s36
      %s40 = sphi 0, %s39
      %s56 = sphi 0, %s40
      %s68 = sphi 0, %s70
      %s71 = sphi 0, %s68
      %s72 = sphi 0, %s71
      %s88 = sphi 0, %s72
      %s92 = sphi 0, %s92
      %s94 = sphi 0, %s92
      %s95 = sphi 0, %s94
      %s109 = sphi 0, %s95
      %s113 = sphi 0, %s113
      %s115 = sphi 0, %s113
      %s116 = sphi 0, %s115
      %s130 = sphi 0, %s116
      %s138 = sphi 0, %s140
      %s141 = sphi 0, %s138
      %s142 = sphi 0, %s141
      %s158 = sphi 0, %s142
    $region4: #{bottleneck_mdconv_forward.4} parent=1 // loop_header_branch
      %15 = sbr.rel (%p13) target = $region8
    $region5: #{bottleneck_mdconv_forward.4} parent=1 // loop_body
      %s17 = ssub.s32 %s12, 1
      %s18 = ssub.s32 %s12, 2
      %s25 = sadd.s32 1, %s20
      %p26 = scmp.ge.s32.totalorder %s25, 1
      %s27 = scalar_select %p26, 0, %s25
      %s28 = sadd.s32 1, %s19
      %s29 = scalar_select %p26, %s28, %s19
      %p30 = scmp.ge.s32.totalorder %s29, 2
      %s31 = scalar_select %p30, 0, %s29
      %s32 = ssub.s32 %s19, %s31
      %s33 = ssub.s32 %s20, %s27
      %s34 = sor.u32 %s32, %s33
      %p35 = scmp.eq.s32.totalorder %s34, 0
      %s37 = sadd.s32 %s36, 1
      %s38 = scalar_select %p35, %s36, %s37
      %p41 = pneg %p35
      %p42 = scmp.eq.s32.totalorder %s12, 1
      %p43 = por %p41, %p42
      %p44 = scmp.ne.s32.totalorder %s36, %s39
      %p45 = scmp.eq.s32.totalorder %s12, 0
      %p46 = por %p44, %p45
      %p47 = scmp.ne.s32.totalorder %s36, %s39
      %p48 = scmp.eq.s32.totalorder %s17, 1
      %p49 = por %p47, %p48
      %p50 = scmp.ne.s32.totalorder %s39, %s40
      %p51 = scmp.eq.s32.totalorder %s17, 0
      %p52 = por %p50, %p51
      %p53 = scmp.ne.s32.totalorder %s39, %s40
      %p54 = scmp.eq.s32.totalorder %s18, 1
      %p55 = por %p53, %p54
      %p57 = scmp.ne.s32.totalorder %s40, %s56
      %p58 = scmp.eq.s32.totalorder %s18, 0
      %p59 = por %p57, %p58
      %s60 = sadd.s32 %s20, 1
      %s61 = smul.u32 %s60, 8
      %s62 = sadd.s32 %s27, 1
      %s63 = smul.u32 %s62, 8
      %s64 = ssub.s32 %s19, %s31
      %s65 = ssub.s32 %s61, %s63
      %s66 = sor.u32 %s64, %s65
      %p67 = scmp.eq.s32.totalorder %s66, 0
      %s69 = sadd.s32 %s68, 1
      %s70 = scalar_select %p67, %s68, %s69
      %p73 = pneg %p67
      %p74 = scmp.eq.s32.totalorder %s12, 1
      %p75 = por %p73, %p74
      %p76 = scmp.ne.s32.totalorder %s68, %s71
      %p77 = scmp.eq.s32.totalorder %s12, 0
      %p78 = por %p76, %p77
      %p79 = scmp.ne.s32.totalorder %s68, %s71
      %p80 = scmp.eq.s32.totalorder %s17, 1
      %p81 = por %p79, %p80
      %p82 = scmp.ne.s32.totalorder %s71, %s72
      %p83 = scmp.eq.s32.totalorder %s17, 0
      %p84 = por %p82, %p83
      %p85 = scmp.ne.s32.totalorder %s71, %s72
      %p86 = scmp.eq.s32.totalorder %s18, 1
      %p87 = por %p85, %p86
      %p89 = scmp.ne.s32.totalorder %s72, %s88
      %p90 = scmp.eq.s32.totalorder %s18, 0
      %p91 = por %p89, %p90
      %s93 = sadd.s32 %s92, 1
      %p96 = scmp.eq.s32.totalorder %s12, 1
      %p97 = scmp.ne.s32.totalorder %s92, %s94
      %p98 = scmp.eq.s32.totalorder %s12, 0
      %p99 = por %p97, %p98
      %p100 = scmp.ne.s32.totalorder %s92, %s94
      %p101 = scmp.eq.s32.totalorder %s17, 1
      %p102 = por %p100, %p101
      %p103 = scmp.ne.s32.totalorder %s94, %s95
      %p104 = scmp.eq.s32.totalorder %s17, 0
      %p105 = por %p103, %p104
      %p106 = scmp.ne.s32.totalorder %s94, %s95
      %p107 = scmp.eq.s32.totalorder %s18, 1
      %p108 = por %p106, %p107
      %p110 = scmp.ne.s32.totalorder %s95, %s109
      %p111 = scmp.eq.s32.totalorder %s18, 0
      %p112 = por %p110, %p111
      %s114 = sadd.s32 %s113, 1
      %p117 = scmp.eq.s32.totalorder %s12, 1
      %p118 = scmp.ne.s32.totalorder %s113, %s115
      %p119 = scmp.eq.s32.totalorder %s12, 0
      %p120 = por %p118, %p119
      %p121 = scmp.ne.s32.totalorder %s113, %s115
      %p122 = scmp.eq.s32.totalorder %s17, 1
      %p123 = por %p121, %p122
      %p124 = scmp.ne.s32.totalorder %s115, %s116
      %p125 = scmp.eq.s32.totalorder %s17, 0
      %p126 = por %p124, %p125
      %p127 = scmp.ne.s32.totalorder %s115, %s116
      %p128 = scmp.eq.s32.totalorder %s18, 1
      %p129 = por %p127, %p128
      %p131 = scmp.ne.s32.totalorder %s116, %s130
      %p132 = scmp.eq.s32.totalorder %s18, 0
      %p133 = por %p131, %p132
      %s134 = ssub.s32 %s19, %s31
      %s135 = ssub.s32 %s20, %s27
      %s136 = sor.u32 %s134, %s135
      %p137 = scmp.eq.s32.totalorder %s136, 0
      %s139 = sadd.s32 %s138, 1
      %s140 = scalar_select %p137, %s138, %s139
      %p143 = pneg %p137
      %p144 = scmp.eq.s32.totalorder %s12, 1
      %p145 = por %p143, %p144
      %p146 = scmp.ne.s32.totalorder %s138, %s141
      %p147 = scmp.eq.s32.totalorder %s12, 0
      %p148 = por %p146, %p147
      %p149 = scmp.ne.s32.totalorder %s138, %s141
      %p150 = scmp.eq.s32.totalorder %s17, 1
      %p151 = por %p149, %p150
      %p152 = scmp.ne.s32.totalorder %s141, %s142
      %p153 = scmp.eq.s32.totalorder %s17, 0
      %p154 = por %p152, %p153
      %p155 = scmp.ne.s32.totalorder %s141, %s142
      %p156 = scmp.eq.s32.totalorder %s18, 1
      %p157 = por %p155, %p156
      %p159 = scmp.ne.s32.totalorder %s142, %s158
      %p160 = scmp.eq.s32.totalorder %s18, 0
      %p161 = por %p159, %p160
      %p162 = scmp.le.s32.totalorder 1, %s12
      %p163 = scmp.lt.s32.totalorder %s12, 3
      %p164 = pnand %p162, %p163
      %p165 = pneg %p164
      // Predicated region
      $region9: #{bottleneck_mdconv_forward.4} parent=5 // pred_check
        _
      $region10: #{bottleneck_mdconv_forward.4} parent=5 // pred_check_branch
        %167 = sbr.rel (%p164) target = $region12
      $region11: #{bottleneck_mdconv_forward.4} parent=5 // pred_region
        %s168 = ssub.s32 %s12, 1
        // Predicated region
        $region13: #{bottleneck_mdconv_forward.4} parent=11 // pred_check
          %p169 = pneg %p105
        $region14: #{bottleneck_mdconv_forward.4} parent=11 // pred_check_branch
          %171 = sbr.rel (%p169) target = $region16
        $region15: #{bottleneck_mdconv_forward.4} parent=11 // pred_region
          %s173 = ssub.s32 192, 192
          %174 = vsyncadd [#allocation4], %s173
          %s175 = sshll.u32 [#allocation3], 4
          %s176 = int_to_ptr.vmem [resolvable:$true] %s175
          %181 = dma.hbm_to_vmem [thread:$0]  %s2, 192, %s176, [#allocation4], 64, 64, 4
        $region16: #{bottleneck_mdconv_forward.4} parent=11 // pred_fallthru
          _
        // Predicated region
        $region17: #{bottleneck_mdconv_forward.4} parent=11 // pred_check
          %p182 = pneg %p126
        $region18: #{bottleneck_mdconv_forward.4} parent=11 // pred_check_branch
          %184 = sbr.rel (%p182) target = $region20
        $region19: #{bottleneck_mdconv_forward.4} parent=11 // pred_region
          %s186 = ssub.s32 16, 16
          %187 = vsyncadd [#allocation6], %s186
          %s189 = sshll.u32 [#allocation5], 4
          %s190 = int_to_ptr.vmem [resolvable:$true] %s189
          %192 = dma.hbm_to_vmem [thread:$0]  %s3, 16, %s190, [#allocation6]
        $region20: #{bottleneck_mdconv_forward.4} parent=11 // pred_fallthru
          _
      $region12: #{bottleneck_mdconv_forward.4} parent=5 // pred_fallthru
        _
      %p193 = scmp.lt.s32.totalorder %s12, 2
      // Predicated region
      $region21: #{bottleneck_mdconv_forward.4} parent=5 // pred_check
        %p194 = pneg %p193
      $region22: #{bottleneck_mdconv_forward.4} parent=5 // pred_check_branch
        %196 = sbr.rel (%p194) target = $region24
      $region23: #{bottleneck_mdconv_forward.4} parent=5 // pred_region
        // Predicated region
        $region25: #{bottleneck_mdconv_forward.4} parent=23 // pred_check
          %p197 = pneg %p46
        $region26: #{bottleneck_mdconv_forward.4} parent=23 // pred_check_branch
          %199 = sbr.rel (%p197) target = $region28
        $region27: #{bottleneck_mdconv_forward.4} parent=23 // pred_region
          %s200 = smul.u32 32, %s20
          %s201 = ssub.s32 36, %s200
          %p202 = scmp.lt.s32.totalorder %s201, 32
          %s203 = scalar_select %p202, %s201, 32
          %s204 = smul.u32 64, %s203
          %p205 = scmp.lt.s32.totalorder %s19, 1
          %s206 = scalar_select %p205, %s19, 1
          %p207 = scmp.lt.s32.totalorder %s200, 35
          %s208 = scalar_select %p207, %s200, 35
          %s209 = smul.addr %s206, 36
          %s210 = sadd.s32 %s208, %s209
          %s211 = smul.addr %s210, 4
          %s212 = scalar_lea.vmem %s0, %s211
          %s213 = smul.u32 32, %s20
          %s214 = ssub.s32 36, %s213
          %p215 = scmp.lt.s32.totalorder %s214, 32
          %s216 = scalar_select %p215, %s214, 32
          %s217 = smul.u32 64, %s216
        $region28: #{bottleneck_mdconv_forward.4} parent=23 // pred_fallthru
          _
        // Predicated region
        $region29: #{bottleneck_mdconv_forward.4} parent=23 // pred_check
          %p218 = pneg %p78
        $region30: #{bottleneck_mdconv_forward.4} parent=23 // pred_check_branch
          %220 = sbr.rel (%p218) target = $region32
        $region31: #{bottleneck_mdconv_forward.4} parent=23 // pred_region
          %s221 = sadd.s32 %s20, 1
          %s222 = smul.u32 %s221, 8
          %s223 = smul.u32 4, %s222
          %p224 = scmp.lt.s32.totalorder %s19, 1
          %s225 = scalar_select %p224, %s19, 1
          %p226 = scmp.lt.s32.totalorder %s223, 35
          %s227 = scalar_select %p226, %s223, 35
          %s228 = smul.addr %s225, 36
          %s229 = sadd.s32 %s227, %s228
          %s230 = smul.addr %s229, 4
          %s231 = scalar_lea.vmem %s1, %s230
          %s232 = sadd.s32 %s20, 1
          %s233 = smul.u32 %s232, 8
          %s234 = smul.u32 4, %s233
        $region32: #{bottleneck_mdconv_forward.4} parent=23 // pred_fallthru
          _
      $region24: #{bottleneck_mdconv_forward.4} parent=5 // pred_fallthru
        _
      %p235 = scmp.le.s32.totalorder 1, %s12
      %p236 = scmp.lt.s32.totalorder %s12, 3
      %p237 = pnand %p235, %p236
      %p238 = pneg %p237
      // Predicated region
      $region33: #{bottleneck_mdconv_forward.4} parent=5 // pred_check
        _
      $region34: #{bottleneck_mdconv_forward.4} parent=5 // pred_check_branch
        %240 = sbr.rel (%p237) target = $region36
      $region35: #{bottleneck_mdconv_forward.4} parent=5 // pred_region
        %s241 = ssub.s32 %s12, 1
        // Predicated region
        $region37: #{bottleneck_mdconv_forward.4} parent=35 // pred_check
          %p242 = pneg %p105
        $region38: #{bottleneck_mdconv_forward.4} parent=35 // pred_check_branch
          %244 = sbr.rel (%p242) target = $region40
        $region39: #{bottleneck_mdconv_forward.4} parent=35 // pred_region
          %245 = dma.done [#allocation4], 192
        $region40: #{bottleneck_mdconv_forward.4} parent=35 // pred_fallthru
          _
        // Predicated region
        $region41: #{bottleneck_mdconv_forward.4} parent=35 // pred_check
          %p246 = pneg %p126
        $region42: #{bottleneck_mdconv_forward.4} parent=35 // pred_check_branch
          %248 = sbr.rel (%p246) target = $region44
        $region43: #{bottleneck_mdconv_forward.4} parent=35 // pred_region
          %249 = dma.done [#allocation6], 16
        $region44: #{bottleneck_mdconv_forward.4} parent=35 // pred_fallthru
          _
        %s250 = smul.u32 32, %s22
        %s251 = ssub.s32 36, %s250
        %p252 = scmp.lt.s32.totalorder %s251, 32
        %s253 = scalar_select %p252, %s251, 32
        %s254 = smul.u32 64, %s253
        %p255 = scmp.lt.s32.totalorder %s21, 1
        %s256 = scalar_select %p255, %s21, 1
        %p257 = scmp.lt.s32.totalorder %s250, 35
        %s258 = scalar_select %p257, %s250, 35
        %s259 = smul.addr %s256, 36
        %s260 = sadd.s32 %s258, %s259
        %s261 = smul.addr %s260, 4
        %s262 = scalar_lea.vmem %s0, %s261
        %p263 = pneg %p52
        %p264 = pneg %p49
        %s265 = sadd.s32 %s22, 1
        %s266 = smul.u32 %s265, 8
        %s267 = smul.u32 4, %s266
        %p268 = scmp.lt.s32.totalorder %s21, 1
        %s269 = scalar_select %p268, %s21, 1
        %p270 = scmp.lt.s32.totalorder %s267, 35
        %s271 = scalar_select %p270, %s267, 35
        %s272 = smul.addr %s269, 36
        %s273 = sadd.s32 %s271, %s272
        %s274 = smul.addr %s273, 4
        %s275 = scalar_lea.vmem %s1, %s274
        %p276 = pneg %p84
        %p277 = pneg %p81
        %p278 = pneg %p105
        %p279 = pneg %p102
        %p280 = pneg %p126
        %p281 = pneg %p123
        %p282 = pneg %p154
        %p283 = pneg %p151
        %s284 = smul.u32 32, %s22
        %p285 = scmp.lt.s32.totalorder %s21, 1
        %s286 = scalar_select %p285, %s21, 1
        %p287 = scmp.lt.s32.totalorder %s284, 31
        %s288 = scalar_select %p287, %s284, 31
        %s289 = smul.addr %s286, 32
        %s290 = sadd.s32 %s288, %s289
        %s291 = smul.addr %s290, 8
        %s292 = scalar_lea.vmem %s4, %s291
        %s293 = smul.u32 32, %s22
        %s294 = ssub.s32 36, %s293
        %p295 = scmp.lt.s32.totalorder %s294, 32
        %s296 = scalar_select %p295, %s294, 32
        %s297 = smul.u32 64, %s296
        %p298 = scmp.lt.s32.totalorder %s21, 1
        %s299 = scalar_select %p298, %s21, 1
        %p300 = scmp.lt.s32.totalorder %s293, 35
        %s301 = scalar_select %p300, %s293, 35
        %s302 = smul.addr %s299, 36
        %s303 = sadd.s32 %s301, %s302
        %s304 = smul.addr %s303, 4
        %s305 = scalar_lea.vmem %s0, %s304
        %s306 = smul.u32 32, %s22
        %s307 = ssub.s32 36, %s306
        %p308 = scmp.lt.s32.totalorder %s307, 32
        %s309 = scalar_select %p308, %s307, 32
        %s310 = smul.u32 64, %s309
        %s311 = sadd.s32 %s22, 1
        %s312 = smul.u32 %s311, 8
        %s313 = smul.u32 4, %s312
        %p314 = scmp.lt.s32.totalorder %s21, 1
        %s315 = scalar_select %p314, %s21, 1
        %p316 = scmp.lt.s32.totalorder %s313, 35
        %s317 = scalar_select %p316, %s313, 35
        %s318 = smul.addr %s315, 36
        %s319 = sadd.s32 %s317, %s318
        %s320 = smul.addr %s319, 4
        %s321 = scalar_lea.vmem %s1, %s320
        %s322 = sadd.s32 %s22, 1
        %s323 = smul.u32 %s322, 8
        %s324 = smul.u32 4, %s323
        %s325 = smul.u32 32, %s22
        %p326 = scmp.lt.s32.totalorder %s21, 1
        %s327 = scalar_select %p326, %s21, 1
        %p328 = scmp.lt.s32.totalorder %s325, 31
        %s329 = scalar_select %p328, %s325, 31
        %s330 = smul.addr %s327, 32
        %s331 = sadd.s32 %s329, %s330
        %s332 = smul.addr %s331, 8
        %s333 = scalar_lea.vmem %s4, %s332
        %s334 = smul.u32 32, %s22
        %v336 = vld [vmem:[%s305] sm:$0xf]
        %v337 = vld [vmem:[%s305 + $0x4] sm:$0xf]
        %v338 = vld [vmem:[%s305 + $0x8] sm:$0xf]
        %v339 = vld [vmem:[%s305 + $0xc] sm:$0xf]
        %v340 = vld [vmem:[%s305 + $0x10] sm:$0xf]
        %v341 = vld [vmem:[%s305 + $0x14] sm:$0xf]
        %v342 = vld [vmem:[%s305 + $0x18] sm:$0xf]
        %v343 = vld [vmem:[%s305 + $0x1c] sm:$0xf]
        %v344 = vld [vmem:[%s305 + $0x20] sm:$0xf]
        %v345 = vld [vmem:[%s305 + $0x24] sm:$0xf]
        %v346 = vld [vmem:[%s305 + $0x28] sm:$0xf]
        %v347 = vld [vmem:[%s305 + $0x2c] sm:$0xf]
        %v348 = vld [vmem:[%s305 + $0x30] sm:$0xf]
        %v349 = vld [vmem:[%s305 + $0x34] sm:$0xf]
        %v350 = vld [vmem:[%s305 + $0x38] sm:$0xf]
        %v351 = vld [vmem:[%s305 + $0x3c] sm:$0xf]
        %v352 = vld [vmem:[%s305 + $0x40] sm:$0xf]
        %v353 = vld [vmem:[%s305 + $0x44] sm:$0xf]
        %v354 = vld [vmem:[%s305 + $0x48] sm:$0xf]
        %v355 = vld [vmem:[%s305 + $0x4c] sm:$0xf]
        %v356 = vld [vmem:[%s305 + $0x50] sm:$0xf]
        %v357 = vld [vmem:[%s305 + $0x54] sm:$0xf]
        %v358 = vld [vmem:[%s305 + $0x58] sm:$0xf]
        %v359 = vld [vmem:[%s305 + $0x5c] sm:$0xf]
        %v360 = vld [vmem:[%s305 + $0x60] sm:$0xf]
        %v361 = vld [vmem:[%s305 + $0x64] sm:$0xf]
        %v362 = vld [vmem:[%s305 + $0x68] sm:$0xf]
        %v363 = vld [vmem:[%s305 + $0x6c] sm:$0xf]
        %v364 = vld [vmem:[%s305 + $0x70] sm:$0xf]
        %v365 = vld [vmem:[%s305 + $0x74] sm:$0xf]
        %v366 = vld [vmem:[%s305 + $0x78] sm:$0xf]
        %v367 = vld [vmem:[%s305 + $0x7c] sm:$0xf]
        %v400 = vunpack.c.l.b16 %v336
        %v401 = vunpack.c.l.b16 %v337
        %v402 = vunpack.c.l.b16 %v338
        %v403 = vunpack.c.l.b16 %v339
        %v404 = vunpack.c.l.b16 %v340
        %v405 = vunpack.c.l.b16 %v341
        %v406 = vunpack.c.l.b16 %v342
        %v407 = vunpack.c.l.b16 %v343
        %v408 = vunpack.c.l.b16 %v344
        %v409 = vunpack.c.l.b16 %v345
        %v410 = vunpack.c.l.b16 %v346
        %v411 = vunpack.c.l.b16 %v347
        %v412 = vunpack.c.l.b16 %v348
        %v413 = vunpack.c.l.b16 %v349
        %v414 = vunpack.c.l.b16 %v350
        %v415 = vunpack.c.l.b16 %v351
        %v416 = vunpack.c.l.b16 %v352
        %v417 = vunpack.c.l.b16 %v353
        %v418 = vunpack.c.l.b16 %v354
        %v419 = vunpack.c.l.b16 %v355
        %v420 = vunpack.c.l.b16 %v356
        %v421 = vunpack.c.l.b16 %v357
        %v422 = vunpack.c.l.b16 %v358
        %v423 = vunpack.c.l.b16 %v359
        %v424 = vunpack.c.l.b16 %v360
        %v425 = vunpack.c.l.b16 %v361
        %v426 = vunpack.c.l.b16 %v362
        %v427 = vunpack.c.l.b16 %v363
        %v428 = vunpack.c.l.b16 %v364
        %v429 = vunpack.c.l.b16 %v365
        %v430 = vunpack.c.l.b16 %v366
        %v431 = vunpack.c.l.b16 %v367
        %v432 = vpack.c.b16 %v401, %v400
        %v433 = vpack.c.b16 %v403, %v402
        %v434 = vpack.c.b16 %v405, %v404
        %v435 = vpack.c.b16 %v407, %v406
        %v436 = vpack.c.b16 %v409, %v408
        %v437 = vpack.c.b16 %v411, %v410
        %v438 = vpack.c.b16 %v413, %v412
        %v439 = vpack.c.b16 %v415, %v414
        %v440 = vpack.c.b16 %v417, %v416
        %v441 = vpack.c.b16 %v419, %v418
        %v442 = vpack.c.b16 %v421, %v420
        %v443 = vpack.c.b16 %v423, %v422
        %v444 = vpack.c.b16 %v425, %v424
        %v445 = vpack.c.b16 %v427, %v426
        %v446 = vpack.c.b16 %v429, %v428
        %v447 = vpack.c.b16 %v431, %v430
        %vm464 = vcmask 48128
        %465 = vst.msk [vmem:[#allocation2] sm:$0xff] %vm464, %v432
        %466 = vst.msk [vmem:[#allocation2 + $0x8] sm:$0xff] %vm464, %v433
        %467 = vst.msk [vmem:[#allocation2 + $0x10] sm:$0xff] %vm464, %v434
        %468 = vst.msk [vmem:[#allocation2 + $0x18] sm:$0xff] %vm464, %v435
        %469 = vst.msk [vmem:[#allocation2 + $0x20] sm:$0xff] %vm464, %v436
        %470 = vst.msk [vmem:[#allocation2 + $0x28] sm:$0xff] %vm464, %v437
        %471 = vst.msk [vmem:[#allocation2 + $0x30] sm:$0xff] %vm464, %v438
        %472 = vst.msk [vmem:[#allocation2 + $0x38] sm:$0xff] %vm464, %v439
        %473 = vst.msk [vmem:[#allocation2 + $0x40] sm:$0xff] %vm464, %v440
        %474 = vst.msk [vmem:[#allocation2 + $0x48] sm:$0xff] %vm464, %v441
        %475 = vst.msk [vmem:[#allocation2 + $0x50] sm:$0xff] %vm464, %v442
        %476 = vst.msk [vmem:[#allocation2 + $0x58] sm:$0xff] %vm464, %v443
        %477 = vst.msk [vmem:[#allocation2 + $0x60] sm:$0xff] %vm464, %v444
        %478 = vst.msk [vmem:[#allocation2 + $0x68] sm:$0xff] %vm464, %v445
        %479 = vst.msk [vmem:[#allocation2 + $0x70] sm:$0xff] %vm464, %v446
        %480 = vst.msk [vmem:[#allocation2 + $0x78] sm:$0xff] %vm464, %v447
        %v481 = vld [vmem:[%s321] sm:$0xf]
        %v482 = vld [vmem:[%s321 + $0x4] sm:$0xf]
        %v483 = vld [vmem:[%s321 + $0x8] sm:$0xf]
        %v484 = vld [vmem:[%s321 + $0xc] sm:$0xf]
        %v489 = vunpack.c.l.b16 %v481
        %v490 = vunpack.c.l.b16 %v482
        %v491 = vunpack.c.l.b16 %v483
        %v492 = vunpack.c.l.b16 %v484
        %v493 = vpack.c.b16 %v490, %v489
        %v494 = vpack.c.b16 %v492, %v491
        %497 = vst.msk [vmem:[#allocation2 + $0x80] sm:$0xff] %vm464, %v493
        %498 = vst.msk [vmem:[#allocation2 + $0x88] sm:$0xff] %vm464, %v494
        %v499 = vld [vmem:[#allocation2] sm:$0xff]
        %v500 = vld [vmem:[#allocation2 + $0x8] sm:$0xff]
        %v501 = vld [vmem:[#allocation2 + $0x10] sm:$0xff]
        %v502 = vld [vmem:[#allocation2 + $0x18] sm:$0xff]
        %v503 = vld [vmem:[#allocation2 + $0x20] sm:$0xff]
        %v504 = vld [vmem:[#allocation2 + $0x28] sm:$0xff]
        %v505 = vld [vmem:[#allocation2 + $0x30] sm:$0xff]
        %v506 = vld [vmem:[#allocation2 + $0x38] sm:$0xff]
        %v507 = vld [vmem:[#allocation2 + $0x40] sm:$0xff]
        %v508 = vld [vmem:[#allocation2 + $0x48] sm:$0xff]
        %v509 = vld [vmem:[#allocation2 + $0x50] sm:$0xff]
        %v510 = vld [vmem:[#allocation2 + $0x58] sm:$0xff]
        %v511 = vld [vmem:[#allocation2 + $0x60] sm:$0xff]
        %v512 = vld [vmem:[#allocation2 + $0x68] sm:$0xff]
        %v513 = vld [vmem:[#allocation2 + $0x70] sm:$0xff]
        %v514 = vld [vmem:[#allocation2 + $0x78] sm:$0xff]
        %v515 = vld [vmem:[#allocation3] sm:$0x7]
        %v516 = vld [vmem:[#allocation2 + $0x80] sm:$0xff]
        %s517 = scalar_lea.vmem [#allocation3], 4
        %v518 = vld [vmem:[%s517] sm:$0x7]
        %v520 = vsel %vm464, %v500, 0
        %v523 = vsel %vm464, %v501, 0
        %v526 = vsel %vm464, %v502, 0
        %v529 = vsel %vm464, %v503, 0
        %v532 = vsel %vm464, %v504, 0
        %v535 = vsel %vm464, %v505, 0
        %v538 = vsel %vm464, %v506, 0
        %v541 = vsel %vm464, %v507, 0
        %v544 = vsel %vm464, %v508, 0
        %v547 = vsel %vm464, %v509, 0
        %v550 = vsel %vm464, %v510, 0
        %v553 = vsel %vm464, %v511, 0
        %v556 = vsel %vm464, %v512, 0
        %v559 = vsel %vm464, %v513, 0
        %v562 = vsel %vm464, %v514, 0
        %v565 = vsel %vm464, %v516, 0
        %vm567 = vcmask 1042432
        %v569 = vsel %vm567, %v518, 0
        %571 = vmatprep.subr.bf16.mxu0 0
        %572 = vmatpush1.bf16.msra.mxu0 %v569
        %573 = vmatprep.subr.bf16.mxu0 0
        %574 = vmatpush1.bf16.msra.mxu0 0
        %575 = vmatprep.subr.bf16.mxu0 0
        %576 = vmatpush1.bf16.msra.mxu0 0
        %577 = vmatprep.subr.bf16.mxu0 0
        %578 = vmatpush1.bf16.msra.mxu0 0
        %579 = vmatprep.subr.bf16.mxu0 0
        %580 = vmatpush1.bf16.msra.mxu0 0
        %581 = vmatprep.subr.bf16.mxu0 0
        %582 = vmatpush1.bf16.msra.mxu0 0
        %583 = vmatprep.subr.bf16.mxu0 0
        %584 = vmatpush1.bf16.msra.mxu0 0
        %585 = vmatprep.subr.bf16.mxu0 0
        %586 = vmatpush1.bf16.msra.mxu0 0
        %587 = vmatprep.subr.bf16.mxu0 0
        %588 = vmatpush1.bf16.msra.mxu0 0
        %589 = vmatprep.subr.bf16.mxu0 0
        %590 = vmatpush1.bf16.msra.mxu0 0
        %591 = vmatprep.subr.bf16.mxu0 0
        %592 = vmatpush1.bf16.msra.mxu0 0
        %593 = vmatprep.subr.bf16.mxu0 0
        %594 = vmatpush1.bf16.msra.mxu0 0
        %595 = vmatprep.subr.bf16.mxu0 0
        %596 = vmatpush1.bf16.msra.mxu0 0
        %597 = vmatprep.subr.bf16.mxu0 0
        %598 = vmatpush1.bf16.msra.mxu0 0
        %599 = vmatprep.subr.bf16.mxu0 0
        %600 = vmatpush1.bf16.msra.mxu0 0
        %601 = vmatprep.subr.bf16.mxu0 0
        %602 = vmatpush1.bf16.msra.mxu0 0
        %603 = vmatprep.mubr.bf16.mxu0 0
        %604 = vmatmul.mubr.bf16.gmra.mrb[0].mxu0 %v520
        %v605 = vpop.f32.mrb[0].mxu0
        %v606 = vadd.f32 0.0, %v605
        %v607 = vpop.f32.mrb[0].mxu0
        %v608 = vpop.f32.mrb[0].mxu0
        %v609 = vadd.f32 0.0, %v608
        %v610 = vpop.f32.mrb[0].mxu0
        %611 = vmatprep.mubr.bf16.mxu0 0
        %612 = vmatmul.mubr.bf16.gmra.mrb[0].mxu0 %v523
        %v613 = vpop.f32.mrb[0].mxu0
        %v614 = vadd.f32 0.0, %v613
        %v615 = vpop.f32.mrb[0].mxu0
        %v616 = vpop.f32.mrb[0].mxu0
        %v617 = vadd.f32 0.0, %v616
        %v618 = vpop.f32.mrb[0].mxu0
        %619 = vmatprep.mubr.bf16.mxu0 0
        %620 = vmatmul.mubr.bf16.gmra.mrb[0].mxu0 %v526
        %v621 = vpop.f32.mrb[0].mxu0
        %v622 = vadd.f32 0.0, %v621
        %v623 = vpop.f32.mrb[0].mxu0
        %v624 = vpop.f32.mrb[0].mxu0
        %v625 = vadd.f32 0.0, %v624
        %v626 = vpop.f32.mrb[0].mxu0
        %627 = vmatprep.mubr.bf16.mxu0 0
        %628 = vmatmul.mubr.bf16.gmra.mrb[0].mxu0 %v529
        %v629 = vpop.f32.mrb[0].mxu0
        %v630 = vadd.f32 0.0, %v629
        %v631 = vpop.f32.mrb[0].mxu0
        %v632 = vpop.f32.mrb[0].mxu0
        %v633 = vadd.f32 0.0, %v632
        %v634 = vpop.f32.mrb[0].mxu0
        %635 = vmatprep.mubr.bf16.mxu0 0
        %636 = vmatmul.mubr.bf16.gmra.mrb[0].mxu0 %v532
        %v637 = vpop.f32.mrb[0].mxu0
        %v638 = vadd.f32 0.0, %v637
        %v639 = vpop.f32.mrb[0].mxu0
        %v640 = vpop.f32.mrb[0].mxu0
        %v641 = vadd.f32 0.0, %v640
        %v642 = vpop.f32.mrb[0].mxu0
        %643 = vmatprep.mubr.bf16.mxu0 0
        %644 = vmatmul.mubr.bf16.gmra.mrb[0].mxu0 %v535
        %v645 = vpop.f32.mrb[0].mxu0
        %v646 = vadd.f32 0.0, %v645
        %v647 = vpop.f32.mrb[0].mxu0
        %v648 = vpop.f32.mrb[0].mxu0
        %v649 = vadd.f32 0.0, %v648
        %v650 = vpop.f32.mrb[0].mxu0
        %651 = vmatprep.mubr.bf16.mxu0 0
        %652 = vmatmul.mubr.bf16.gmra.mrb[0].mxu0 %v538
        %v653 = vpop.f32.mrb[0].mxu0
        %v654 = vadd.f32 0.0, %v653
        %v655 = vpop.f32.mrb[0].mxu0
        %v656 = vpop.f32.mrb[0].mxu0
        %v657 = vadd.f32 0.0, %v656
        %v658 = vpop.f32.mrb[0].mxu0
        %659 = vmatprep.mubr.bf16.mxu0 0
        %660 = vmatmul.mubr.bf16.gmra.mrb[0].mxu0 %v541
        %v661 = vpop.f32.mrb[0].mxu0
        %v662 = vadd.f32 0.0, %v661
        %v663 = vpop.f32.mrb[0].mxu0
        %v664 = vpop.f32.mrb[0].mxu0
        %v665 = vadd.f32 0.0, %v664
        %v666 = vpop.f32.mrb[0].mxu0
        %667 = vmatprep.mubr.bf16.mxu0 0
        %668 = vmatmul.mubr.bf16.gmra.mrb[0].mxu0 %v544
        %v669 = vpop.f32.mrb[0].mxu0
        %v670 = vadd.f32 0.0, %v669
        %v671 = vpop.f32.mrb[0].mxu0
        %v672 = vpop.f32.mrb[0].mxu0
        %v673 = vadd.f32 0.0, %v672
        %v674 = vpop.f32.mrb[0].mxu0
        %675 = vmatprep.mubr.bf16.mxu0 0
        %676 = vmatmul.mubr.bf16.gmra.mrb[0].mxu0 %v547
        %v677 = vpop.f32.mrb[0].mxu0
        %v678 = vadd.f32 0.0, %v677
        %v679 = vpop.f32.mrb[0].mxu0
        %v680 = vpop.f32.mrb[0].mxu0
        %v681 = vadd.f32 0.0, %v680
        %v682 = vpop.f32.mrb[0].mxu0
        %683 = vmatprep.mubr.bf16.mxu0 0
        %684 = vmatmul.mubr.bf16.gmra.mrb[0].mxu0 %v550
        %v685 = vpop.f32.mrb[0].mxu0
        %v686 = vadd.f32 0.0, %v685
        %v687 = vpop.f32.mrb[0].mxu0
        %v688 = vpop.f32.mrb[0].mxu0
        %v689 = vadd.f32 0.0, %v688
        %v690 = vpop.f32.mrb[0].mxu0
        %691 = vmatprep.mubr.bf16.mxu0 0
        %692 = vmatmul.mubr.bf16.gmra.mrb[0].mxu0 %v553
        %v693 = vpop.f32.mrb[0].mxu0
        %v694 = vadd.f32 0.0, %v693
        %v695 = vpop.f32.mrb[0].mxu0
        %v696 = vpop.f32.mrb[0].mxu0
        %v697 = vadd.f32 0.0, %v696
        %v698 = vpop.f32.mrb[0].mxu0
        %699 = vmatprep.mubr.bf16.mxu0 0
        %700 = vmatmul.mubr.bf16.gmra.mrb[0].mxu0 %v556
        %v701 = vpop.f32.mrb[0].mxu0
        %v702 = vadd.f32 0.0, %v701
        %v703 = vpop.f32.mrb[0].mxu0
        %v704 = vpop.f32.mrb[0].mxu0
        %v705 = vadd.f32 0.0, %v704
        %v706 = vpop.f32.mrb[0].mxu0
        %707 = vmatprep.mubr.bf16.mxu0 0
        %708 = vmatmul.mubr.bf16.gmra.mrb[0].mxu0 %v559
        %v709 = vpop.f32.mrb[0].mxu0
        %v710 = vadd.f32 0.0, %v709
        %v711 = vpop.f32.mrb[0].mxu0
        %v712 = vpop.f32.mrb[0].mxu0
        %v713 = vadd.f32 0.0, %v712
        %v714 = vpop.f32.mrb[0].mxu0
        %715 = vmatprep.mubr.bf16.mxu0 0
        %716 = vmatmul.mubr.bf16.gmra.mrb[0].mxu0 %v562
        %v717 = vpop.f32.mrb[0].mxu0
        %v718 = vadd.f32 0.0, %v717
        %v719 = vpop.f32.mrb[0].mxu0
        %v720 = vpop.f32.mrb[0].mxu0
        %v721 = vadd.f32 0.0, %v720
        %v722 = vpop.f32.mrb[0].mxu0
        %723 = vmatprep.mubr.bf16.mxu0 0
        %724 = vmatmul.mubr.bf16.gmra.mrb[0].mxu0 %v565
        %v725 = vpop.f32.mrb[0].mxu0
        %v726 = vadd.f32 0.0, %v725
        %v727 = vpop.f32.mrb[0].mxu0
        %v728 = vpop.f32.mrb[0].mxu0
        %v729 = vadd.f32 0.0, %v728
        %v730 = vpop.f32.mrb[0].mxu0
        %731 = vdwg.mxu0
        %v733 = vsel %vm464, %v499, 0
        %v736 = vsel %vm567, %v515, 0
        %738 = vmatprep.subr.bf16.mxu0 0
        %739 = vmatpush1.bf16.msra.mxu0 %v736
        %740 = vmatprep.subr.bf16.mxu0 0
        %741 = vmatpush1.bf16.msra.mxu0 0
        %742 = vmatprep.subr.bf16.mxu0 0
        %743 = vmatpush1.bf16.msra.mxu0 0
        %744 = vmatprep.subr.bf16.mxu0 0
        %745 = vmatpush1.bf16.msra.mxu0 0
        %746 = vmatprep.subr.bf16.mxu0 0
        %747 = vmatpush1.bf16.msra.mxu0 0
        %748 = vmatprep.subr.bf16.mxu0 0
        %749 = vmatpush1.bf16.msra.mxu0 0
        %750 = vmatprep.subr.bf16.mxu0 0
        %751 = vmatpush1.bf16.msra.mxu0 0
        %752 = vmatprep.subr.bf16.mxu0 0
        %753 = vmatpush1.bf16.msra.mxu0 0
        %754 = vmatprep.subr.bf16.mxu0 0
        %755 = vmatpush1.bf16.msra.mxu0 0
        %756 = vmatprep.subr.bf16.mxu0 0
        %757 = vmatpush1.bf16.msra.mxu0 0
        %758 = vmatprep.subr.bf16.mxu0 0
        %759 = vmatpush1.bf16.msra.mxu0 0
        %760 = vmatprep.subr.bf16.mxu0 0
        %761 = vmatpush1.bf16.msra.mxu0 0
        %762 = vmatprep.subr.bf16.mxu0 0
        %763 = vmatpush1.bf16.msra.mxu0 0
        %764 = vmatprep.subr.bf16.mxu0 0
        %765 = vmatpush1.bf16.msra.mxu0 0
        %766 = vmatprep.subr.bf16.mxu0 0
        %767 = vmatpush1.bf16.msra.mxu0 0
        %768 = vmatprep.subr.bf16.mxu0 0
        %769 = vmatpush1.bf16.msra.mxu0 0
        %770 = vmatprep.mubr.bf16.mxu0 0
        %771 = vmatmul.mubr.bf16.gmra.mrb[0].mxu0 %v733
        %v772 = vpop.f32.mrb[0].mxu0
        %v773 = vadd.f32 %v606, %v772
        %v774 = vpop.f32.mrb[0].mxu0
        %v775 = vpop.f32.mrb[0].mxu0
        %v776 = vadd.f32 %v609, %v775
        %v777 = vpop.f32.mrb[0].mxu0
        %778 = vmatprep.mubr.bf16.mxu0 0
        %779 = vmatmul.mubr.bf16.gmra.mrb[0].mxu0 %v520
        %v780 = vpop.f32.mrb[0].mxu0
        %v781 = vadd.f32 %v614, %v780
        %v782 = vpop.f32.mrb[0].mxu0
        %v783 = vpop.f32.mrb[0].mxu0
        %v784 = vadd.f32 %v617, %v783
        %v785 = vpop.f32.mrb[0].mxu0
        %786 = vmatprep.mubr.bf16.mxu0 0
        %787 = vmatmul.mubr.bf16.gmra.mrb[0].mxu0 %v523
        %v788 = vpop.f32.mrb[0].mxu0
        %v789 = vadd.f32 %v622, %v788
        %v790 = vpop.f32.mrb[0].mxu0
        %v791 = vpop.f32.mrb[0].mxu0
        %v792 = vadd.f32 %v625, %v791
        %v793 = vpop.f32.mrb[0].mxu0
        %794 = vmatprep.mubr.bf16.mxu0 0
        %795 = vmatmul.mubr.bf16.gmra.mrb[0].mxu0 %v526
        %v796 = vpop.f32.mrb[0].mxu0
        %v797 = vadd.f32 %v630, %v796
        %v798 = vpop.f32.mrb[0].mxu0
        %v799 = vpop.f32.mrb[0].mxu0
        %v800 = vadd.f32 %v633, %v799
        %v801 = vpop.f32.mrb[0].mxu0
        %802 = vmatprep.mubr.bf16.mxu0 0
        %803 = vmatmul.mubr.bf16.gmra.mrb[0].mxu0 %v529
        %v804 = vpop.f32.mrb[0].mxu0
        %v805 = vadd.f32 %v638, %v804
        %v806 = vpop.f32.mrb[0].mxu0
        %v807 = vpop.f32.mrb[0].mxu0
        %v808 = vadd.f32 %v641, %v807
        %v809 = vpop.f32.mrb[0].mxu0
        %810 = vmatprep.mubr.bf16.mxu0 0
        %811 = vmatmul.mubr.bf16.gmra.mrb[0].mxu0 %v532
        %v812 = vpop.f32.mrb[0].mxu0
        %v813 = vadd.f32 %v646, %v812
        %v814 = vpop.f32.mrb[0].mxu0
        %v815 = vpop.f32.mrb[0].mxu0
        %v816 = vadd.f32 %v649, %v815
        %v817 = vpop.f32.mrb[0].mxu0
        %818 = vmatprep.mubr.bf16.mxu0 0
        %819 = vmatmul.mubr.bf16.gmra.mrb[0].mxu0 %v535
        %v820 = vpop.f32.mrb[0].mxu0
        %v821 = vadd.f32 %v654, %v820
        %v822 = vpop.f32.mrb[0].mxu0
        %v823 = vpop.f32.mrb[0].mxu0
        %v824 = vadd.f32 %v657, %v823
        %v825 = vpop.f32.mrb[0].mxu0
        %826 = vmatprep.mubr.bf16.mxu0 0
        %827 = vmatmul.mubr.bf16.gmra.mrb[0].mxu0 %v538
        %v828 = vpop.f32.mrb[0].mxu0
        %v829 = vadd.f32 %v662, %v828
        %v830 = vpop.f32.mrb[0].mxu0
        %v831 = vpop.f32.mrb[0].mxu0
        %v832 = vadd.f32 %v665, %v831
        %v833 = vpop.f32.mrb[0].mxu0
        %834 = vmatprep.mubr.bf16.mxu0 0
        %835 = vmatmul.mubr.bf16.gmra.mrb[0].mxu0 %v541
        %v836 = vpop.f32.mrb[0].mxu0
        %v837 = vadd.f32 %v670, %v836
        %v838 = vpop.f32.mrb[0].mxu0
        %v839 = vpop.f32.mrb[0].mxu0
        %v840 = vadd.f32 %v673, %v839
        %v841 = vpop.f32.mrb[0].mxu0
        %842 = vmatprep.mubr.bf16.mxu0 0
        %843 = vmatmul.mubr.bf16.gmra.mrb[0].mxu0 %v544
        %v844 = vpop.f32.mrb[0].mxu0
        %v845 = vadd.f32 %v678, %v844
        %v846 = vpop.f32.mrb[0].mxu0
        %v847 = vpop.f32.mrb[0].mxu0
        %v848 = vadd.f32 %v681, %v847
        %v849 = vpop.f32.mrb[0].mxu0
        %850 = vmatprep.mubr.bf16.mxu0 0
        %851 = vmatmul.mubr.bf16.gmra.mrb[0].mxu0 %v547
        %v852 = vpop.f32.mrb[0].mxu0
        %v853 = vadd.f32 %v686, %v852
        %v854 = vpop.f32.mrb[0].mxu0
        %v855 = vpop.f32.mrb[0].mxu0
        %v856 = vadd.f32 %v689, %v855
        %v857 = vpop.f32.mrb[0].mxu0
        %858 = vmatprep.mubr.bf16.mxu0 0
        %859 = vmatmul.mubr.bf16.gmra.mrb[0].mxu0 %v550
        %v860 = vpop.f32.mrb[0].mxu0
        %v861 = vadd.f32 %v694, %v860
        %v862 = vpop.f32.mrb[0].mxu0
        %v863 = vpop.f32.mrb[0].mxu0
        %v864 = vadd.f32 %v697, %v863
        %v865 = vpop.f32.mrb[0].mxu0
        %866 = vmatprep.mubr.bf16.mxu0 0
        %867 = vmatmul.mubr.bf16.gmra.mrb[0].mxu0 %v553
        %v868 = vpop.f32.mrb[0].mxu0
        %v869 = vadd.f32 %v702, %v868
        %v870 = vpop.f32.mrb[0].mxu0
        %v871 = vpop.f32.mrb[0].mxu0
        %v872 = vadd.f32 %v705, %v871
        %v873 = vpop.f32.mrb[0].mxu0
        %874 = vmatprep.mubr.bf16.mxu0 0
        %875 = vmatmul.mubr.bf16.gmra.mrb[0].mxu0 %v556
        %v876 = vpop.f32.mrb[0].mxu0
        %v877 = vadd.f32 %v710, %v876
        %v878 = vpop.f32.mrb[0].mxu0
        %v879 = vpop.f32.mrb[0].mxu0
        %v880 = vadd.f32 %v713, %v879
        %v881 = vpop.f32.mrb[0].mxu0
        %882 = vmatprep.mubr.bf16.mxu0 0
        %883 = vmatmul.mubr.bf16.gmra.mrb[0].mxu0 %v559
        %v884 = vpop.f32.mrb[0].mxu0
        %v885 = vadd.f32 %v718, %v884
        %v886 = vpop.f32.mrb[0].mxu0
        %v887 = vpop.f32.mrb[0].mxu0
        %v888 = vadd.f32 %v721, %v887
        %v889 = vpop.f32.mrb[0].mxu0
        %890 = vmatprep.mubr.bf16.mxu0 0
        %891 = vmatmul.mubr.bf16.gmra.mrb[0].mxu0 %v562
        %v892 = vpop.f32.mrb[0].mxu0
        %v893 = vadd.f32 %v726, %v892
        %v894 = vpop.f32.mrb[0].mxu0
        %v895 = vpop.f32.mrb[0].mxu0
        %v896 = vadd.f32 %v729, %v895
        %v897 = vpop.f32.mrb[0].mxu0
        %898 = vdwg.mxu0
        %v899 = vld [vmem:[#allocation2 + $0x10] sm:$0xff]
        %v900 = vld [vmem:[#allocation2 + $0x18] sm:$0xff]
        %v901 = vld [vmem:[#allocation2 + $0x20] sm:$0xff]
        %v902 = vld [vmem:[#allocation2 + $0x28] sm:$0xff]
        %v903 = vld [vmem:[#allocation2 + $0x30] sm:$0xff]
        %v904 = vld [vmem:[#allocation2 + $0x38] sm:$0xff]
        %v905 = vld [vmem:[#allocation2 + $0x40] sm:$0xff]
        %v906 = vld [vmem:[#allocation2 + $0x48] sm:$0xff]
        %v907 = vld [vmem:[#allocation2 + $0x50] sm:$0xff]
        %v908 = vld [vmem:[#allocation2 + $0x58] sm:$0xff]
        %v909 = vld [vmem:[#allocation2 + $0x60] sm:$0xff]
        %v910 = vld [vmem:[#allocation2 + $0x68] sm:$0xff]
        %v911 = vld [vmem:[#allocation2 + $0x70] sm:$0xff]
        %v912 = vld [vmem:[#allocation2 + $0x78] sm:$0xff]
        %v913 = vld [vmem:[#allocation2 + $0x80] sm:$0xff]
        %v914 = vld [vmem:[#allocation2 + $0x88] sm:$0xff]
        %s915 = scalar_lea.vmem [#allocation3], 8
        %v916 = vld [vmem:[%s915] sm:$0x7]
        %v918 = vsel %vm464, %v899, 0
        %v921 = vsel %vm464, %v900, 0
        %v924 = vsel %vm464, %v901, 0
        %v927 = vsel %vm464, %v902, 0
        %v930 = vsel %vm464, %v903, 0
        %v933 = vsel %vm464, %v904, 0
        %v936 = vsel %vm464, %v905, 0
        %v939 = vsel %vm464, %v906, 0
        %v942 = vsel %vm464, %v907, 0
        %v945 = vsel %vm464, %v908, 0
        %v948 = vsel %vm464, %v909, 0
        %v951 = vsel %vm464, %v910, 0
        %v954 = vsel %vm464, %v911, 0
        %v957 = vsel %vm464, %v912, 0
        %v960 = vsel %vm464, %v913, 0
        %v963 = vsel %vm464, %v914, 0
        %v966 = vsel %vm567, %v916, 0
        %968 = vmatprep.subr.bf16.mxu0 0
        %969 = vmatpush1.bf16.msra.mxu0 %v966
        %970 = vmatprep.subr.bf16.mxu0 0
        %971 = vmatpush1.bf16.msra.mxu0 0
        %972 = vmatprep.subr.bf16.mxu0 0
        %973 = vmatpush1.bf16.msra.mxu0 0
        %974 = vmatprep.subr.bf16.mxu0 0
        %975 = vmatpush1.bf16.msra.mxu0 0
        %976 = vmatprep.subr.bf16.mxu0 0
        %977 = vmatpush1.bf16.msra.mxu0 0
        %978 = vmatprep.subr.bf16.mxu0 0
        %979 = vmatpush1.bf16.msra.mxu0 0
        %980 = vmatprep.subr.bf16.mxu0 0
        %981 = vmatpush1.bf16.msra.mxu0 0
        %982 = vmatprep.subr.bf16.mxu0 0
        %983 = vmatpush1.bf16.msra.mxu0 0
        %984 = vmatprep.subr.bf16.mxu0 0
        %985 = vmatpush1.bf16.msra.mxu0 0
        %986 = vmatprep.subr.bf16.mxu0 0
        %987 = vmatpush1.bf16.msra.mxu0 0
        %988 = vmatprep.subr.bf16.mxu0 0
        %989 = vmatpush1.bf16.msra.mxu0 0
        %990 = vmatprep.subr.bf16.mxu0 0
        %991 = vmatpush1.bf16.msra.mxu0 0
        %992 = vmatprep.subr.bf16.mxu0 0
        %993 = vmatpush1.bf16.msra.mxu0 0
        %994 = vmatprep.subr.bf16.mxu0 0
        %995 = vmatpush1.bf16.msra.mxu0 0
        %996 = vmatprep.subr.bf16.mxu0 0
        %997 = vmatpush1.bf16.msra.mxu0 0
        %998 = vmatprep.subr.bf16.mxu0 0
        %999 = vmatpush1.bf16.msra.mxu0 0
        %1000 = vmatprep.mubr.bf16.mxu0 0
        %1001 = vmatmul.mubr.bf16.gmra.mrb[0].mxu0 %v918
        %v1002 = vpop.f32.mrb[0].mxu0
        %v1003 = vadd.f32 0.0, %v1002
        %v1004 = vpop.f32.mrb[0].mxu0
        %v1005 = vpop.f32.mrb[0].mxu0
        %v1006 = vadd.f32 0.0, %v1005
        %v1007 = vpop.f32.mrb[0].mxu0
        %1008 = vmatprep.mubr.bf16.mxu0 0
        %1009 = vmatmul.mubr.bf16.gmra.mrb[0].mxu0 %v921
        %v1010 = vpop.f32.mrb[0].mxu0
        %v1011 = vadd.f32 0.0, %v1010
        %v1012 = vpop.f32.mrb[0].mxu0
        %v1013 = vpop.f32.mrb[0].mxu0
        %v1014 = vadd.f32 0.0, %v1013
        %v1015 = vpop.f32.mrb[0].mxu0
        %1016 = vmatprep.mubr.bf16.mxu0 0
        %1017 = vmatmul.mubr.bf16.gmra.mrb[0].mxu0 %v924
        %v1018 = vpop.f32.mrb[0].mxu0
        %v1019 = vadd.f32 0.0, %v1018
        %v1020 = vpop.f32.mrb[0].mxu0
        %v1021 = vpop.f32.mrb[0].mxu0
        %v1022 = vadd.f32 0.0, %v1021
        %v1023 = vpop.f32.mrb[0].mxu0
        %1024 = vmatprep.mubr.bf16.mxu0 0
        %1025 = vmatmul.mubr.bf16.gmra.mrb[0].mxu0 %v927
        %v1026 = vpop.f32.mrb[0].mxu0
        %v1027 = vadd.f32 0.0, %v1026
        %v1028 = vpop.f32.mrb[0].mxu0
        %v1029 = vpop.f32.mrb[0].mxu0
        %v1030 = vadd.f32 0.0, %v1029
        %v1031 = vpop.f32.mrb[0].mxu0
        %1032 = vmatprep.mubr.bf16.mxu0 0
        %1033 = vmatmul.mubr.bf16.gmra.mrb[0].mxu0 %v930
        %v1034 = vpop.f32.mrb[0].mxu0
        %v1035 = vadd.f32 0.0, %v1034
        %v1036 = vpop.f32.mrb[0].mxu0
        %v1037 = vpop.f32.mrb[0].mxu0
        %v1038 = vadd.f32 0.0, %v1037
        %v1039 = vpop.f32.mrb[0].mxu0
        %1040 = vmatprep.mubr.bf16.mxu0 0
        %1041 = vmatmul.mubr.bf16.gmra.mrb[0].mxu0 %v933
        %v1042 = vpop.f32.mrb[0].mxu0
        %v1043 = vadd.f32 0.0, %v1042
        %v1044 = vpop.f32.mrb[0].mxu0
        %v1045 = vpop.f32.mrb[0].mxu0
        %v1046 = vadd.f32 0.0, %v1045
        %v1047 = vpop.f32.mrb[0].mxu0
        %1048 = vmatprep.mubr.bf16.mxu0 0
        %1049 = vmatmul.mubr.bf16.gmra.mrb[0].mxu0 %v936
        %v1050 = vpop.f32.mrb[0].mxu0
        %v1051 = vadd.f32 0.0, %v1050
        %v1052 = vpop.f32.mrb[0].mxu0
        %v1053 = vpop.f32.mrb[0].mxu0
        %v1054 = vadd.f32 0.0, %v1053
        %v1055 = vpop.f32.mrb[0].mxu0
        %1056 = vmatprep.mubr.bf16.mxu0 0
        %1057 = vmatmul.mubr.bf16.gmra.mrb[0].mxu0 %v939
        %v1058 = vpop.f32.mrb[0].mxu0
        %v1059 = vadd.f32 0.0, %v1058
        %v1060 = vpop.f32.mrb[0].mxu0
        %v1061 = vpop.f32.mrb[0].mxu0
        %v1062 = vadd.f32 0.0, %v1061
        %v1063 = vpop.f32.mrb[0].mxu0
        %1064 = vmatprep.mubr.bf16.mxu0 0
        %1065 = vmatmul.mubr.bf16.gmra.mrb[0].mxu0 %v942
        %v1066 = vpop.f32.mrb[0].mxu0
        %v1067 = vadd.f32 0.0, %v1066
        %v1068 = vpop.f32.mrb[0].mxu0
        %v1069 = vpop.f32.mrb[0].mxu0
        %v1070 = vadd.f32 0.0, %v1069
        %v1071 = vpop.f32.mrb[0].mxu0
        %1072 = vmatprep.mubr.bf16.mxu0 0
        %1073 = vmatmul.mubr.bf16.gmra.mrb[0].mxu0 %v945
        %v1074 = vpop.f32.mrb[0].mxu0
        %v1075 = vadd.f32 0.0, %v1074
        %v1076 = vpop.f32.mrb[0].mxu0
        %v1077 = vpop.f32.mrb[0].mxu0
        %v1078 = vadd.f32 0.0, %v1077
        %v1079 = vpop.f32.mrb[0].mxu0
        %1080 = vmatprep.mubr.bf16.mxu0 0
        %1081 = vmatmul.mubr.bf16.gmra.mrb[0].mxu0 %v948
        %v1082 = vpop.f32.mrb[0].mxu0
        %v1083 = vadd.f32 0.0, %v1082
        %v1084 = vpop.f32.mrb[0].mxu0
        %v1085 = vpop.f32.mrb[0].mxu0
        %v1086 = vadd.f32 0.0, %v1085
        %v1087 = vpop.f32.mrb[0].mxu0
        %1088 = vmatprep.mubr.bf16.mxu0 0
        %1089 = vmatmul.mubr.bf16.gmra.mrb[0].mxu0 %v951
        %v1090 = vpop.f32.mrb[0].mxu0
        %v1091 = vadd.f32 0.0, %v1090
        %v1092 = vpop.f32.mrb[0].mxu0
        %v1093 = vpop.f32.mrb[0].mxu0
        %v1094 = vadd.f32 0.0, %v1093
        %v1095 = vpop.f32.mrb[0].mxu0
        %1096 = vmatprep.mubr.bf16.mxu0 0
        %1097 = vmatmul.mubr.bf16.gmra.mrb[0].mxu0 %v954
        %v1098 = vpop.f32.mrb[0].mxu0
        %v1099 = vadd.f32 0.0, %v1098
        %v1100 = vpop.f32.mrb[0].mxu0
        %v1101 = vpop.f32.mrb[0].mxu0
        %v1102 = vadd.f32 0.0, %v1101
        %v1103 = vpop.f32.mrb[0].mxu0
        %1104 = vmatprep.mubr.bf16.mxu0 0
        %1105 = vmatmul.mubr.bf16.gmra.mrb[0].mxu0 %v957
        %v1106 = vpop.f32.mrb[0].mxu0
        %v1107 = vadd.f32 0.0, %v1106
        %v1108 = vpop.f32.mrb[0].mxu0
        %v1109 = vpop.f32.mrb[0].mxu0
        %v1110 = vadd.f32 0.0, %v1109
        %v1111 = vpop.f32.mrb[0].mxu0
        %1112 = vmatprep.mubr.bf16.mxu0 0
        %1113 = vmatmul.mubr.bf16.gmra.mrb[0].mxu0 %v960
        %v1114 = vpop.f32.mrb[0].mxu0
        %v1115 = vadd.f32 0.0, %v1114
        %v1116 = vpop.f32.mrb[0].mxu0
        %v1117 = vpop.f32.mrb[0].mxu0
        %v1118 = vadd.f32 0.0, %v1117
        %v1119 = vpop.f32.mrb[0].mxu0
        %1120 = vmatprep.mubr.bf16.mxu0 0
        %1121 = vmatmul.mubr.bf16.gmra.mrb[0].mxu0 %v963
        %v1122 = vpop.f32.mrb[0].mxu0
        %v1123 = vadd.f32 0.0, %v1122
        %v1124 = vpop.f32.mrb[0].mxu0
        %v1125 = vpop.f32.mrb[0].mxu0
        %v1126 = vadd.f32 0.0, %v1125
        %v1127 = vpop.f32.mrb[0].mxu0
        %1128 = vdwg.mxu0
        %v1129 = vadd.f32 %v773, %v1003
        %v1130 = vadd.f32 %v776, %v1006
        %v1131 = vadd.f32 %v781, %v1011
        %v1132 = vadd.f32 %v784, %v1014
        %v1133 = vadd.f32 %v789, %v1019
        %v1134 = vadd.f32 %v792, %v1022
        %v1135 = vadd.f32 %v797, %v1027
        %v1136 = vadd.f32 %v800, %v1030
        %v1137 = vadd.f32 %v805, %v1035
        %v1138 = vadd.f32 %v808, %v1038
        %v1139 = vadd.f32 %v813, %v1043
        %v1140 = vadd.f32 %v816, %v1046
        %v1141 = vadd.f32 %v821, %v1051
        %v1142 = vadd.f32 %v824, %v1054
        %v1143 = vadd.f32 %v829, %v1059
        %v1144 = vadd.f32 %v832, %v1062
        %v1145 = vadd.f32 %v837, %v1067
        %v1146 = vadd.f32 %v840, %v1070
        %v1147 = vadd.f32 %v845, %v1075
        %v1148 = vadd.f32 %v848, %v1078
        %v1149 = vadd.f32 %v853, %v1083
        %v1150 = vadd.f32 %v856, %v1086
        %v1151 = vadd.f32 %v861, %v1091
        %v1152 = vadd.f32 %v864, %v1094
        %v1153 = vadd.f32 %v869, %v1099
        %v1154 = vadd.f32 %v872, %v1102
        %v1155 = vadd.f32 %v877, %v1107
        %v1156 = vadd.f32 %v880, %v1110
        %v1157 = vadd.f32 %v885, %v1115
        %v1158 = vadd.f32 %v888, %v1118
        %v1159 = vadd.f32 %v893, %v1123
        %v1160 = vadd.f32 %v896, %v1126
        %v1161 = vld [vmem:[#allocation5] sm:$0x1]
        %v1163 = vlaneseq
        %v1164 = vshrl.u32 %v1163, 7
        %v1165 = vsub.s32 0, %v1164
        %v1166 = vrot.slane %v1161, %v1165
        %v1168 = vadd.f32 %v1129, %v1166
        %v1169 = vadd.f32 %v1130, %v1166
        %v1170 = vadd.f32 %v1131, %v1166
        %v1171 = vadd.f32 %v1132, %v1166
        %v1172 = vadd.f32 %v1133, %v1166
        %v1173 = vadd.f32 %v1134, %v1166
        %v1174 = vadd.f32 %v1135, %v1166
        %v1175 = vadd.f32 %v1136, %v1166
        %v1176 = vadd.f32 %v1137, %v1166
        %v1177 = vadd.f32 %v1138, %v1166
        %v1178 = vadd.f32 %v1139, %v1166
        %v1179 = vadd.f32 %v1140, %v1166
        %v1180 = vadd.f32 %v1141, %v1166
        %v1181 = vadd.f32 %v1142, %v1166
        %v1182 = vadd.f32 %v1143, %v1166
        %v1183 = vadd.f32 %v1144, %v1166
        %v1184 = vadd.f32 %v1145, %v1166
        %v1185 = vadd.f32 %v1146, %v1166
        %v1186 = vadd.f32 %v1147, %v1166
        %v1187 = vadd.f32 %v1148, %v1166
        %v1188 = vadd.f32 %v1149, %v1166
        %v1189 = vadd.f32 %v1150, %v1166
        %v1190 = vadd.f32 %v1151, %v1166
        %v1191 = vadd.f32 %v1152, %v1166
        %v1192 = vadd.f32 %v1153, %v1166
        %v1193 = vadd.f32 %v1154, %v1166
        %v1194 = vadd.f32 %v1155, %v1166
        %v1195 = vadd.f32 %v1156, %v1166
        %v1196 = vadd.f32 %v1157, %v1166
        %v1197 = vadd.f32 %v1158, %v1166
        %v1198 = vadd.f32 %v1159, %v1166
        %v1199 = vadd.f32 %v1160, %v1166
        %v1200 = vlaneseq
        %v1201 = vand.u32 %v1200, 127
        %vm1202 = vcmp.ge.s32.totalorder %v1201, 18
        %vm1203 = vcmp.lt.s32.totalorder %v1201, 27
        %vm1204 = vmand %vm1202, %vm1203
        %v1205 = vxor.u32 %v1168, 2147483648
        %v1206 = vxor.u32 %v1169, 2147483648
        %v1207 = vxor.u32 %v1170, 2147483648
        %v1208 = vxor.u32 %v1171, 2147483648
        %v1209 = vxor.u32 %v1172, 2147483648
        %v1210 = vxor.u32 %v1173, 2147483648
        %v1211 = vxor.u32 %v1174, 2147483648
        %v1212 = vxor.u32 %v1175, 2147483648
        %v1213 = vxor.u32 %v1176, 2147483648
        %v1214 = vxor.u32 %v1177, 2147483648
        %v1215 = vxor.u32 %v1178, 2147483648
        %v1216 = vxor.u32 %v1179, 2147483648
        %v1217 = vxor.u32 %v1180, 2147483648
        %v1218 = vxor.u32 %v1181, 2147483648
        %v1219 = vxor.u32 %v1182, 2147483648
        %v1220 = vxor.u32 %v1183, 2147483648
        %v1221 = vxor.u32 %v1184, 2147483648
        %v1222 = vxor.u32 %v1185, 2147483648
        %v1223 = vxor.u32 %v1186, 2147483648
        %v1224 = vxor.u32 %v1187, 2147483648
        %v1225 = vxor.u32 %v1188, 2147483648
        %v1226 = vxor.u32 %v1189, 2147483648
        %v1227 = vxor.u32 %v1190, 2147483648
        %v1228 = vxor.u32 %v1191, 2147483648
        %v1229 = vxor.u32 %v1192, 2147483648
        %v1230 = vxor.u32 %v1193, 2147483648
        %v1231 = vxor.u32 %v1194, 2147483648
        %v1232 = vxor.u32 %v1195, 2147483648
        %v1233 = vxor.u32 %v1196, 2147483648
        %v1234 = vxor.u32 %v1197, 2147483648
        %v1235 = vxor.u32 %v1198, 2147483648
        %v1236 = vxor.u32 %v1199, 2147483648
        %v1237 = vmul.f32 %v1205, 1.442695
        %v1238 = vpow.pop %v1237
        %v1239 = vmul.f32 %v1206, 1.442695
        %v1240 = vpow.pop %v1239
        %v1241 = vmul.f32 %v1207, 1.442695
        %v1242 = vpow.pop %v1241
        %v1243 = vmul.f32 %v1208, 1.442695
        %v1244 = vpow.pop %v1243
        %v1245 = vmul.f32 %v1209, 1.442695
        %v1246 = vpow.pop %v1245
        %v1247 = vmul.f32 %v1210, 1.442695
        %v1248 = vpow.pop %v1247
        %v1249 = vmul.f32 %v1211, 1.442695
        %v1250 = vpow.pop %v1249
        %v1251 = vmul.f32 %v1212, 1.442695
        %v1252 = vpow.pop %v1251
        %v1253 = vmul.f32 %v1213, 1.442695
        %v1254 = vpow.pop %v1253
        %v1255 = vmul.f32 %v1214, 1.442695
        %v1256 = vpow.pop %v1255
        %v1257 = vmul.f32 %v1215, 1.442695
        %v1258 = vpow.pop %v1257
        %v1259 = vmul.f32 %v1216, 1.442695
        %v1260 = vpow.pop %v1259
        %v1261 = vmul.f32 %v1217, 1.442695
        %v1262 = vpow.pop %v1261
        %v1263 = vmul.f32 %v1218, 1.442695
        %v1264 = vpow.pop %v1263
        %v1265 = vmul.f32 %v1219, 1.442695
        %v1266 = vpow.pop %v1265
        %v1267 = vmul.f32 %v1220, 1.442695
        %v1268 = vpow.pop %v1267
        %v1269 = vmul.f32 %v1221, 1.442695
        %v1270 = vpow.pop %v1269
        %v1271 = vmul.f32 %v1222, 1.442695
        %v1272 = vpow.pop %v1271
        %v1273 = vmul.f32 %v1223, 1.442695
        %v1274 = vpow.pop %v1273
        %v1275 = vmul.f32 %v1224, 1.442695
        %v1276 = vpow.pop %v1275
        %v1277 = vmul.f32 %v1225, 1.442695
        %v1278 = vpow.pop %v1277
        %v1279 = vmul.f32 %v1226, 1.442695
        %v1280 = vpow.pop %v1279
        %v1281 = vmul.f32 %v1227, 1.442695
        %v1282 = vpow.pop %v1281
        %v1283 = vmul.f32 %v1228, 1.442695
        %v1284 = vpow.pop %v1283
        %v1285 = vmul.f32 %v1229, 1.442695
        %v1286 = vpow.pop %v1285
        %v1287 = vmul.f32 %v1230, 1.442695
        %v1288 = vpow.pop %v1287
        %v1289 = vmul.f32 %v1231, 1.442695
        %v1290 = vpow.pop %v1289
        %v1291 = vmul.f32 %v1232, 1.442695
        %v1292 = vpow.pop %v1291
        %v1293 = vmul.f32 %v1233, 1.442695
        %v1294 = vpow.pop %v1293
        %v1295 = vmul.f32 %v1234, 1.442695
        %v1296 = vpow.pop %v1295
        %v1297 = vmul.f32 %v1235, 1.442695
        %v1298 = vpow.pop %v1297
        %v1299 = vmul.f32 %v1236, 1.442695
        %v1300 = vpow.pop %v1299
        %v1301 = vadd.f32 %v1238, 1.0
        %v1302 = vadd.f32 %v1240, 1.0
        %v1303 = vadd.f32 %v1242, 1.0
        %v1304 = vadd.f32 %v1244, 1.0
        %v1305 = vadd.f32 %v1246, 1.0
        %v1306 = vadd.f32 %v1248, 1.0
        %v1307 = vadd.f32 %v1250, 1.0
        %v1308 = vadd.f32 %v1252, 1.0
        %v1309 = vadd.f32 %v1254, 1.0
        %v1310 = vadd.f32 %v1256, 1.0
        %v1311 = vadd.f32 %v1258, 1.0
        %v1312 = vadd.f32 %v1260, 1.0
        %v1313 = vadd.f32 %v1262, 1.0
        %v1314 = vadd.f32 %v1264, 1.0
        %v1315 = vadd.f32 %v1266, 1.0
        %v1316 = vadd.f32 %v1268, 1.0
        %v1317 = vadd.f32 %v1270, 1.0
        %v1318 = vadd.f32 %v1272, 1.0
        %v1319 = vadd.f32 %v1274, 1.0
        %v1320 = vadd.f32 %v1276, 1.0
        %v1321 = vadd.f32 %v1278, 1.0
        %v1322 = vadd.f32 %v1280, 1.0
        %v1323 = vadd.f32 %v1282, 1.0
        %v1324 = vadd.f32 %v1284, 1.0
        %v1325 = vadd.f32 %v1286, 1.0
        %v1326 = vadd.f32 %v1288, 1.0
        %v1327 = vadd.f32 %v1290, 1.0
        %v1328 = vadd.f32 %v1292, 1.0
        %v1329 = vadd.f32 %v1294, 1.0
        %v1330 = vadd.f32 %v1296, 1.0
        %v1331 = vadd.f32 %v1298, 1.0
        %v1332 = vadd.f32 %v1300, 1.0
        %v1333 = vrcp.pop %v1301
        %v1334 = vmul.f32 1.0, %v1333
        %v1335 = vrcp.pop %v1302
        %v1336 = vmul.f32 1.0, %v1335
        %v1337 = vrcp.pop %v1303
        %v1338 = vmul.f32 1.0, %v1337
        %v1339 = vrcp.pop %v1304
        %v1340 = vmul.f32 1.0, %v1339
        %v1341 = vrcp.pop %v1305
        %v1342 = vmul.f32 1.0, %v1341
        %v1343 = vrcp.pop %v1306
        %v1344 = vmul.f32 1.0, %v1343
        %v1345 = vrcp.pop %v1307
        %v1346 = vmul.f32 1.0, %v1345
        %v1347 = vrcp.pop %v1308
        %v1348 = vmul.f32 1.0, %v1347
        %v1349 = vrcp.pop %v1309
        %v1350 = vmul.f32 1.0, %v1349
        %v1351 = vrcp.pop %v1310
        %v1352 = vmul.f32 1.0, %v1351
        %v1353 = vrcp.pop %v1311
        %v1354 = vmul.f32 1.0, %v1353
        %v1355 = vrcp.pop %v1312
        %v1356 = vmul.f32 1.0, %v1355
        %v1357 = vrcp.pop %v1313
        %v1358 = vmul.f32 1.0, %v1357
        %v1359 = vrcp.pop %v1314
        %v1360 = vmul.f32 1.0, %v1359
        %v1361 = vrcp.pop %v1315
        %v1362 = vmul.f32 1.0, %v1361
        %v1363 = vrcp.pop %v1316
        %v1364 = vmul.f32 1.0, %v1363
        %v1365 = vrcp.pop %v1317
        %v1366 = vmul.f32 1.0, %v1365
        %v1367 = vrcp.pop %v1318
        %v1368 = vmul.f32 1.0, %v1367
        %v1369 = vrcp.pop %v1319
        %v1370 = vmul.f32 1.0, %v1369
        %v1371 = vrcp.pop %v1320
        %v1372 = vmul.f32 1.0, %v1371
        %v1373 = vrcp.pop %v1321
        %v1374 = vmul.f32 1.0, %v1373
        %v1375 = vrcp.pop %v1322
        %v1376 = vmul.f32 1.0, %v1375
        %v1377 = vrcp.pop %v1323
        %v1378 = vmul.f32 1.0, %v1377
        %v1379 = vrcp.pop %v1324
        %v1380 = vmul.f32 1.0, %v1379
        %v1381 = vrcp.pop %v1325
        %v1382 = vmul.f32 1.0, %v1381
        %v1383 = vrcp.pop %v1326
        %v1384 = vmul.f32 1.0, %v1383
        %v1385 = vrcp.pop %v1327
        %v1386 = vmul.f32 1.0, %v1385
        %v1387 = vrcp.pop %v1328
        %v1388 = vmul.f32 1.0, %v1387
        %v1389 = vrcp.pop %v1329
        %v1390 = vmul.f32 1.0, %v1389
        %v1391 = vrcp.pop %v1330
        %v1392 = vmul.f32 1.0, %v1391
        %v1393 = vrcp.pop %v1331
        %v1394 = vmul.f32 1.0, %v1393
        %v1395 = vrcp.pop %v1332
        %v1396 = vmul.f32 1.0, %v1395
        %v1397 = vsel %vm1204, %v1334, %v1168
        %v1398 = vsel %vm1204, %v1336, %v1169
        %v1399 = vsel %vm1204, %v1338, %v1170
        %v1400 = vsel %vm1204, %v1340, %v1171
        %v1401 = vsel %vm1204, %v1342, %v1172
        %v1402 = vsel %vm1204, %v1344, %v1173
        %v1403 = vsel %vm1204, %v1346, %v1174
        %v1404 = vsel %vm1204, %v1348, %v1175
        %v1405 = vsel %vm1204, %v1350, %v1176
        %v1406 = vsel %vm1204, %v1352, %v1177
        %v1407 = vsel %vm1204, %v1354, %v1178
        %v1408 = vsel %vm1204, %v1356, %v1179
        %v1409 = vsel %vm1204, %v1358, %v1180
        %v1410 = vsel %vm1204, %v1360, %v1181
        %v1411 = vsel %vm1204, %v1362, %v1182
        %v1412 = vsel %vm1204, %v1364, %v1183
        %v1413 = vsel %vm1204, %v1366, %v1184
        %v1414 = vsel %vm1204, %v1368, %v1185
        %v1415 = vsel %vm1204, %v1370, %v1186
        %v1416 = vsel %vm1204, %v1372, %v1187
        %v1417 = vsel %vm1204, %v1374, %v1188
        %v1418 = vsel %vm1204, %v1376, %v1189
        %v1419 = vsel %vm1204, %v1378, %v1190
        %v1420 = vsel %vm1204, %v1380, %v1191
        %v1421 = vsel %vm1204, %v1382, %v1192
        %v1422 = vsel %vm1204, %v1384, %v1193
        %v1423 = vsel %vm1204, %v1386, %v1194
        %v1424 = vsel %vm1204, %v1388, %v1195
        %v1425 = vsel %vm1204, %v1390, %v1196
        %v1426 = vsel %vm1204, %v1392, %v1197
        %v1427 = vsel %vm1204, %v1394, %v1198
        %v1428 = vsel %vm1204, %v1396, %v1199
        %1429 = vst [vmem:[%s333] sm:$0xff] %v1397
        %1430 = vst [vmem:[%s333 + $0x8] sm:$0xff] %v1398
        %1431 = vst [vmem:[%s333 + $0x10] sm:$0xff] %v1399
        %1432 = vst [vmem:[%s333 + $0x18] sm:$0xff] %v1400
        %1433 = vst [vmem:[%s333 + $0x20] sm:$0xff] %v1401
        %1434 = vst [vmem:[%s333 + $0x28] sm:$0xff] %v1402
        %1435 = vst [vmem:[%s333 + $0x30] sm:$0xff] %v1403
        %1436 = vst [vmem:[%s333 + $0x38] sm:$0xff] %v1404
        %1437 = vst [vmem:[%s333 + $0x40] sm:$0xff] %v1405
        %1438 = vst [vmem:[%s333 + $0x48] sm:$0xff] %v1406
        %1439 = vst [vmem:[%s333 + $0x50] sm:$0xff] %v1407
        %1440 = vst [vmem:[%s333 + $0x58] sm:$0xff] %v1408
        %1441 = vst [vmem:[%s333 + $0x60] sm:$0xff] %v1409
        %1442 = vst [vmem:[%s333 + $0x68] sm:$0xff] %v1410
        %1443 = vst [vmem:[%s333 + $0x70] sm:$0xff] %v1411
        %1444 = vst [vmem:[%s333 + $0x78] sm:$0xff] %v1412
        %1445 = vst [vmem:[%s333 + $0x80] sm:$0xff] %v1413
        %1446 = vst [vmem:[%s333 + $0x88] sm:$0xff] %v1414
        %1447 = vst [vmem:[%s333 + $0x90] sm:$0xff] %v1415
        %1448 = vst [vmem:[%s333 + $0x98] sm:$0xff] %v1416
        %1449 = vst [vmem:[%s333 + $0xa0] sm:$0xff] %v1417
        %1450 = vst [vmem:[%s333 + $0xa8] sm:$0xff] %v1418
        %1451 = vst [vmem:[%s333 + $0xb0] sm:$0xff] %v1419
        %1452 = vst [vmem:[%s333 + $0xb8] sm:$0xff] %v1420
        %1453 = vst [vmem:[%s333 + $0xc0] sm:$0xff] %v1421
        %1454 = vst [vmem:[%s333 + $0xc8] sm:$0xff] %v1422
        %1455 = vst [vmem:[%s333 + $0xd0] sm:$0xff] %v1423
        %1456 = vst [vmem:[%s333 + $0xd8] sm:$0xff] %v1424
        %1457 = vst [vmem:[%s333 + $0xe0] sm:$0xff] %v1425
        %1458 = vst [vmem:[%s333 + $0xe8] sm:$0xff] %v1426
        %1459 = vst [vmem:[%s333 + $0xf0] sm:$0xff] %v1427
        %1460 = vst [vmem:[%s333 + $0xf8] sm:$0xff] %v1428
        %s1461 = smul.u32 32, %s22
        %p1462 = scmp.lt.s32.totalorder %s21, 1
        %s1463 = scalar_select %p1462, %s21, 1
        %p1464 = scmp.lt.s32.totalorder %s1461, 31
        %s1465 = scalar_select %p1464, %s1461, 31
        %s1466 = smul.addr %s1463, 32
        %s1467 = sadd.s32 %s1465, %s1466
        %s1468 = smul.addr %s1467, 8
        %s1469 = scalar_lea.vmem %s4, %s1468
        // Predicated region
        $region45: #{bottleneck_mdconv_forward.4} parent=35 // pred_check
          %p1470 = pneg %p151
        $region46: #{bottleneck_mdconv_forward.4} parent=35 // pred_check_branch
          %1472 = sbr.rel (%p1470) target = $region48
        $region47: #{bottleneck_mdconv_forward.4} parent=35 // pred_region
          %s1473 = smul.u32 32, %s22
        $region48: #{bottleneck_mdconv_forward.4} parent=35 // pred_fallthru
          _
      $region36: #{bottleneck_mdconv_forward.4} parent=5 // pred_fallthru
        _
      %p1474 = scmp.le.s32.totalorder 2, %s12
      // Predicated region
      $region49: #{bottleneck_mdconv_forward.4} parent=5 // pred_check
        %p1475 = pneg %p1474
      $region50: #{bottleneck_mdconv_forward.4} parent=5 // pred_check_branch
        %1477 = sbr.rel (%p1475) target = $region52
      $region51: #{bottleneck_mdconv_forward.4} parent=5 // pred_region
        %s1478 = ssub.s32 %s12, 2
        // Predicated region
        $region53: #{bottleneck_mdconv_forward.4} parent=51 // pred_check
          %p1479 = pneg %p157
        $region54: #{bottleneck_mdconv_forward.4} parent=51 // pred_check_branch
          %1481 = sbr.rel (%p1479) target = $region56
        $region55: #{bottleneck_mdconv_forward.4} parent=51 // pred_region
          %s1482 = smul.u32 32, %s24
          %p1483 = scmp.lt.s32.totalorder %s23, 1
          %s1484 = scalar_select %p1483, %s23, 1
          %p1485 = scmp.lt.s32.totalorder %s1482, 31
          %s1486 = scalar_select %p1485, %s1482, 31
          %s1487 = smul.addr %s1484, 32
          %s1488 = sadd.s32 %s1486, %s1487
          %s1489 = smul.addr %s1488, 8
          %s1490 = scalar_lea.vmem %s4, %s1489
        $region56: #{bottleneck_mdconv_forward.4} parent=51 // pred_fallthru
          _
      $region52: #{bottleneck_mdconv_forward.4} parent=5 // pred_fallthru
        _
    $region6: #{bottleneck_mdconv_forward.4} parent=1 // loop_footer
      %s16 = sadd.s32 1, %s12
    $region7: #{bottleneck_mdconv_forward.4} parent=1 // loop_footer_branch
      %11 = sbr.rel target = $region3
    $region8: #{bottleneck_mdconv_forward.4} parent=1 // loop_exit
      _
    %1491 = vsyncpa [#allocation4], 1
    %s1492 = scalar_lea.sflag [#allocation4], 1
    %1493 = vsyncpa %s1492, 1
    %1494 = vsyncpa [#allocation6], 1

// kernel: bottleneck_mdconv_forward.5
$region0: #{bottleneck_mdconv_forward.5}
  #allocation0 [shape = 'u32[]', space=smem, size = 0x4, offset = 0x4, fixed_abs, tag = 'smem constant byte address 0x4 - core index']
  #allocation1 [shape = 'u32[144,128]{1,0:T(1,128)}', space=vmem, size = 0x12000, scoped, tag = 'internal scratch']
  %s0 = inlined_call_operand.vmem [shape: bf16[2,256,18], index: 0, kind: input, shape index: {}]
  %s1 = inlined_call_operand.vmem [shape: bf16[18,128], index: 1, kind: input, shape index: {}]
  %s2 = inlined_call_operand.vmem [shape: f32[1,128], index: 2, kind: input, shape index: {}]
  %s3 = inlined_call_operand.vmem [shape: f32[2,256,128], index: 3, kind: output, shape index: {}]
  %s4 = sld [smem:[#allocation0]]
  $region45: #{bottleneck_mdconv_forward.5} parent=0
    _
  %s6 = ssub.s32 1, %s4
  %s7 = scalar_select 0, %s6, %s4
  loop: start=0, step=1, limit=4
  $region2: #{bottleneck_mdconv_forward.5} parent=0 // loop_pre_header
    _
  $region3: #{bottleneck_mdconv_forward.5} parent=0 // loop_header
    %s9 = sphi 0, %s13
    %p10 = scmp.ge.s32.totalorder %s9, 4
    %s16 = sphi 0, %s28
    %s17 = sphi 0, %s24
    %s18 = sphi 0, %s16
    %s19 = sphi 0, %s17
    %s20 = sphi 0, %s18
    %s21 = sphi 0, %s19
    %s33 = sphi 0, %s35
    %s36 = sphi 0, %s33
    %s37 = sphi 0, %s36
    %s53 = sphi 0, %s37
    %s57 = sphi 0, %s57
    %s59 = sphi 0, %s57
    %s60 = sphi 0, %s59
    %s74 = sphi 0, %s60
    %s78 = sphi 0, %s78
    %s80 = sphi 0, %s78
    %s81 = sphi 0, %s80
    %s95 = sphi 0, %s81
    %s103 = sphi 0, %s105
    %s106 = sphi 0, %s103
    %s107 = sphi 0, %s106
    %s123 = sphi 0, %s107
  $region4: #{bottleneck_mdconv_forward.5} parent=0 // loop_header_branch
    %12 = sbr.rel (%p10) target = $region8
  $region5: #{bottleneck_mdconv_forward.5} parent=0 // loop_body
    %s14 = ssub.s32 %s9, 1
    %s15 = ssub.s32 %s9, 2
    %s22 = sadd.s32 1, %s17
    %p23 = scmp.ge.s32.totalorder %s22, 1
    %s24 = scalar_select %p23, 0, %s22
    %s25 = sadd.s32 1, %s16
    %s26 = scalar_select %p23, %s25, %s16
    %p27 = scmp.ge.s32.totalorder %s26, 2
    %s28 = scalar_select %p27, 0, %s26
    %s29 = ssub.s32 %s16, %s28
    %s30 = ssub.s32 %s17, %s24
    %s31 = sor.u32 %s29, %s30
    %p32 = scmp.eq.s32.totalorder %s31, 0
    %s34 = sadd.s32 %s33, 1
    %s35 = scalar_select %p32, %s33, %s34
    %p38 = pneg %p32
    %p39 = scmp.eq.s32.totalorder %s9, 1
    %p40 = por %p38, %p39
    %p41 = scmp.ne.s32.totalorder %s33, %s36
    %p42 = scmp.eq.s32.totalorder %s9, 0
    %p43 = por %p41, %p42
    %p44 = scmp.ne.s32.totalorder %s33, %s36
    %p45 = scmp.eq.s32.totalorder %s14, 1
    %p46 = por %p44, %p45
    %p47 = scmp.ne.s32.totalorder %s36, %s37
    %p48 = scmp.eq.s32.totalorder %s14, 0
    %p49 = por %p47, %p48
    %p50 = scmp.ne.s32.totalorder %s36, %s37
    %p51 = scmp.eq.s32.totalorder %s15, 1
    %p52 = por %p50, %p51
    %p54 = scmp.ne.s32.totalorder %s37, %s53
    %p55 = scmp.eq.s32.totalorder %s15, 0
    %p56 = por %p54, %p55
    %s58 = sadd.s32 %s57, 1
    %p61 = scmp.eq.s32.totalorder %s9, 1
    %p62 = scmp.ne.s32.totalorder %s57, %s59
    %p63 = scmp.eq.s32.totalorder %s9, 0
    %p64 = por %p62, %p63
    %p65 = scmp.ne.s32.totalorder %s57, %s59
    %p66 = scmp.eq.s32.totalorder %s14, 1
    %p67 = por %p65, %p66
    %p68 = scmp.ne.s32.totalorder %s59, %s60
    %p69 = scmp.eq.s32.totalorder %s14, 0
    %p70 = por %p68, %p69
    %p71 = scmp.ne.s32.totalorder %s59, %s60
    %p72 = scmp.eq.s32.totalorder %s15, 1
    %p73 = por %p71, %p72
    %p75 = scmp.ne.s32.totalorder %s60, %s74
    %p76 = scmp.eq.s32.totalorder %s15, 0
    %p77 = por %p75, %p76
    %s79 = sadd.s32 %s78, 1
    %p82 = scmp.eq.s32.totalorder %s9, 1
    %p83 = scmp.ne.s32.totalorder %s78, %s80
    %p84 = scmp.eq.s32.totalorder %s9, 0
    %p85 = por %p83, %p84
    %p86 = scmp.ne.s32.totalorder %s78, %s80
    %p87 = scmp.eq.s32.totalorder %s14, 1
    %p88 = por %p86, %p87
    %p89 = scmp.ne.s32.totalorder %s80, %s81
    %p90 = scmp.eq.s32.totalorder %s14, 0
    %p91 = por %p89, %p90
    %p92 = scmp.ne.s32.totalorder %s80, %s81
    %p93 = scmp.eq.s32.totalorder %s15, 1
    %p94 = por %p92, %p93
    %p96 = scmp.ne.s32.totalorder %s81, %s95
    %p97 = scmp.eq.s32.totalorder %s15, 0
    %p98 = por %p96, %p97
    %s99 = ssub.s32 %s16, %s28
    %s100 = ssub.s32 %s17, %s24
    %s101 = sor.u32 %s99, %s100
    %p102 = scmp.eq.s32.totalorder %s101, 0
    %s104 = sadd.s32 %s103, 1
    %s105 = scalar_select %p102, %s103, %s104
    %p108 = pneg %p102
    %p109 = scmp.eq.s32.totalorder %s9, 1
    %p110 = por %p108, %p109
    %p111 = scmp.ne.s32.totalorder %s103, %s106
    %p112 = scmp.eq.s32.totalorder %s9, 0
    %p113 = por %p111, %p112
    %p114 = scmp.ne.s32.totalorder %s103, %s106
    %p115 = scmp.eq.s32.totalorder %s14, 1
    %p116 = por %p114, %p115
    %p117 = scmp.ne.s32.totalorder %s106, %s107
    %p118 = scmp.eq.s32.totalorder %s14, 0
    %p119 = por %p117, %p118
    %p120 = scmp.ne.s32.totalorder %s106, %s107
    %p121 = scmp.eq.s32.totalorder %s15, 1
    %p122 = por %p120, %p121
    %p124 = scmp.ne.s32.totalorder %s107, %s123
    %p125 = scmp.eq.s32.totalorder %s15, 0
    %p126 = por %p124, %p125
    %p127 = scmp.le.s32.totalorder 1, %s9
    %p128 = scmp.lt.s32.totalorder %s9, 3
    %p129 = pnand %p127, %p128
    %p130 = pneg %p129
    // Predicated region
    $region9: #{bottleneck_mdconv_forward.5} parent=5 // pred_check
      _
    $region10: #{bottleneck_mdconv_forward.5} parent=5 // pred_check_branch
      %132 = sbr.rel (%p129) target = $region12
    $region11: #{bottleneck_mdconv_forward.5} parent=5 // pred_region
      %s133 = ssub.s32 %s9, 1
      // Predicated region
      $region13: #{bottleneck_mdconv_forward.5} parent=11 // pred_check
        %p134 = pneg %p70
      $region14: #{bottleneck_mdconv_forward.5} parent=11 // pred_check_branch
        %136 = sbr.rel (%p134) target = $region16
      $region15: #{bottleneck_mdconv_forward.5} parent=11 // pred_region
        _
      $region16: #{bottleneck_mdconv_forward.5} parent=11 // pred_fallthru
        _
      // Predicated region
      $region17: #{bottleneck_mdconv_forward.5} parent=11 // pred_check
        %p137 = pneg %p91
      $region18: #{bottleneck_mdconv_forward.5} parent=11 // pred_check_branch
        %139 = sbr.rel (%p137) target = $region20
      $region19: #{bottleneck_mdconv_forward.5} parent=11 // pred_region
        _
      $region20: #{bottleneck_mdconv_forward.5} parent=11 // pred_fallthru
        _
    $region12: #{bottleneck_mdconv_forward.5} parent=5 // pred_fallthru
      _
    %p140 = scmp.lt.s32.totalorder %s9, 2
    // Predicated region
    $region21: #{bottleneck_mdconv_forward.5} parent=5 // pred_check
      %p141 = pneg %p140
    $region22: #{bottleneck_mdconv_forward.5} parent=5 // pred_check_branch
      %143 = sbr.rel (%p141) target = $region24
    $region23: #{bottleneck_mdconv_forward.5} parent=5 // pred_region
      // Predicated region
      $region25: #{bottleneck_mdconv_forward.5} parent=23 // pred_check
        %p144 = pneg %p43
      $region26: #{bottleneck_mdconv_forward.5} parent=23 // pred_check_branch
        %146 = sbr.rel (%p144) target = $region28
      $region27: #{bottleneck_mdconv_forward.5} parent=23 // pred_region
        %s147 = smul.u32 32, %s17
        %p148 = scmp.lt.s32.totalorder %s16, 1
        %s149 = scalar_select %p148, %s16, 1
        %p150 = scmp.lt.s32.totalorder %s147, 31
        %s151 = scalar_select %p150, %s147, 31
        %s152 = smul.addr %s149, 32
        %s153 = sadd.s32 %s151, %s152
        %s154 = smul.addr %s153, 4
        %s155 = scalar_lea.vmem %s0, %s154
        %s156 = smul.u32 32, %s17
      $region28: #{bottleneck_mdconv_forward.5} parent=23 // pred_fallthru
        _
    $region24: #{bottleneck_mdconv_forward.5} parent=5 // pred_fallthru
      _
    %p157 = scmp.le.s32.totalorder 1, %s9
    %p158 = scmp.lt.s32.totalorder %s9, 3
    %p159 = pnand %p157, %p158
    %p160 = pneg %p159
    // Predicated region
    $region29: #{bottleneck_mdconv_forward.5} parent=5 // pred_check
      _
    $region30: #{bottleneck_mdconv_forward.5} parent=5 // pred_check_branch
      %162 = sbr.rel (%p159) target = $region32
    $region31: #{bottleneck_mdconv_forward.5} parent=5 // pred_region
      %s163 = ssub.s32 %s9, 1
      %s164 = smul.u32 32, %s19
      %p165 = scmp.lt.s32.totalorder %s18, 1
      %s166 = scalar_select %p165, %s18, 1
      %p167 = scmp.lt.s32.totalorder %s164, 31
      %s168 = scalar_select %p167, %s164, 31
      %s169 = smul.addr %s166, 32
      %s170 = sadd.s32 %s168, %s169
      %s171 = smul.addr %s170, 4
      %s172 = scalar_lea.vmem %s0, %s171
      %p173 = pneg %p49
      %p174 = pneg %p46
      %p175 = pneg %p70
      %p176 = pneg %p67
      %p177 = pneg %p91
      %p178 = pneg %p88
      %p179 = pneg %p119
      %p180 = pneg %p116
      %s181 = smul.u32 32, %s19
      %p182 = scmp.lt.s32.totalorder %s18, 1
      %s183 = scalar_select %p182, %s18, 1
      %p184 = scmp.lt.s32.totalorder %s181, 31
      %s185 = scalar_select %p184, %s181, 31
      %s186 = smul.addr %s183, 32
      %s187 = sadd.s32 %s185, %s186
      %s188 = smul.addr %s187, 8
      %s189 = scalar_lea.vmem %s3, %s188
      %s190 = smul.u32 32, %s19
      %p191 = scmp.lt.s32.totalorder %s18, 1
      %s192 = scalar_select %p191, %s18, 1
      %p193 = scmp.lt.s32.totalorder %s190, 31
      %s194 = scalar_select %p193, %s190, 31
      %s195 = smul.addr %s192, 32
      %s196 = sadd.s32 %s194, %s195
      %s197 = smul.addr %s196, 4
      %s198 = scalar_lea.vmem %s0, %s197
      %s199 = smul.u32 32, %s19
      %s200 = smul.u32 32, %s19
      %p201 = scmp.lt.s32.totalorder %s18, 1
      %s202 = scalar_select %p201, %s18, 1
      %p203 = scmp.lt.s32.totalorder %s200, 31
      %s204 = scalar_select %p203, %s200, 31
      %s205 = smul.addr %s202, 32
      %s206 = sadd.s32 %s204, %s205
      %s207 = smul.addr %s206, 8
      %s208 = scalar_lea.vmem %s3, %s207
      %s209 = smul.u32 32, %s19
      %v211 = vld [vmem:[%s198] sm:$0xf]
      %v212 = vld [vmem:[%s198 + $0x4] sm:$0xf]
      %v213 = vld [vmem:[%s198 + $0x8] sm:$0xf]
      %v214 = vld [vmem:[%s198 + $0xc] sm:$0xf]
      %v215 = vld [vmem:[%s198 + $0x10] sm:$0xf]
      %v216 = vld [vmem:[%s198 + $0x14] sm:$0xf]
      %v217 = vld [vmem:[%s198 + $0x18] sm:$0xf]
      %v218 = vld [vmem:[%s198 + $0x1c] sm:$0xf]
      %v219 = vld [vmem:[%s198 + $0x20] sm:$0xf]
      %v220 = vld [vmem:[%s198 + $0x24] sm:$0xf]
      %v221 = vld [vmem:[%s198 + $0x28] sm:$0xf]
      %v222 = vld [vmem:[%s198 + $0x2c] sm:$0xf]
      %v223 = vld [vmem:[%s198 + $0x30] sm:$0xf]
      %v224 = vld [vmem:[%s198 + $0x34] sm:$0xf]
      %v225 = vld [vmem:[%s198 + $0x38] sm:$0xf]
      %v226 = vld [vmem:[%s198 + $0x3c] sm:$0xf]
      %v227 = vld [vmem:[%s198 + $0x40] sm:$0xf]
      %v228 = vld [vmem:[%s198 + $0x44] sm:$0xf]
      %v229 = vld [vmem:[%s198 + $0x48] sm:$0xf]
      %v230 = vld [vmem:[%s198 + $0x4c] sm:$0xf]
      %v231 = vld [vmem:[%s198 + $0x50] sm:$0xf]
      %v232 = vld [vmem:[%s198 + $0x54] sm:$0xf]
      %v233 = vld [vmem:[%s198 + $0x58] sm:$0xf]
      %v234 = vld [vmem:[%s198 + $0x5c] sm:$0xf]
      %v235 = vld [vmem:[%s198 + $0x60] sm:$0xf]
      %v236 = vld [vmem:[%s198 + $0x64] sm:$0xf]
      %v237 = vld [vmem:[%s198 + $0x68] sm:$0xf]
      %v238 = vld [vmem:[%s198 + $0x6c] sm:$0xf]
      %v239 = vld [vmem:[%s198 + $0x70] sm:$0xf]
      %v240 = vld [vmem:[%s198 + $0x74] sm:$0xf]
      %v241 = vld [vmem:[%s198 + $0x78] sm:$0xf]
      %v242 = vld [vmem:[%s198 + $0x7c] sm:$0xf]
      %v243 = vld [vmem:[%s1] sm:$0xf]
      %v244 = vld [vmem:[%s1 + $0x4] sm:$0xf]
      %v245 = vld [vmem:[%s1 + $0x8] sm:$0x1]
      %v246 = vld [vmem:[%s2] sm:$0x1]
      %v248 = vlaneseq
      %v249 = vshrl.u32 %v248, 7
      %v250 = vsub.s32 0, %v249
      %v251 = vrot.slane %v246, %v250
      %v285 = vunpack.c.l.b16 %v211
      %v286 = vunpack.c.l.b16 %v212
      %v287 = vunpack.c.l.b16 %v213
      %v288 = vunpack.c.l.b16 %v214
      %v289 = vunpack.c.l.b16 %v215
      %v290 = vunpack.c.l.b16 %v216
      %v291 = vunpack.c.l.b16 %v217
      %v292 = vunpack.c.l.b16 %v218
      %v293 = vunpack.c.l.b16 %v219
      %v294 = vunpack.c.l.b16 %v220
      %v295 = vunpack.c.l.b16 %v221
      %v296 = vunpack.c.l.b16 %v222
      %v297 = vunpack.c.l.b16 %v223
      %v298 = vunpack.c.l.b16 %v224
      %v299 = vunpack.c.l.b16 %v225
      %v300 = vunpack.c.l.b16 %v226
      %v301 = vunpack.c.l.b16 %v227
      %v302 = vunpack.c.l.b16 %v228
      %v303 = vunpack.c.l.b16 %v229
      %v304 = vunpack.c.l.b16 %v230
      %v305 = vunpack.c.l.b16 %v231
      %v306 = vunpack.c.l.b16 %v232
      %v307 = vunpack.c.l.b16 %v233
      %v308 = vunpack.c.l.b16 %v234
      %v309 = vunpack.c.l.b16 %v235
      %v310 = vunpack.c.l.b16 %v236
      %v311 = vunpack.c.l.b16 %v237
      %v312 = vunpack.c.l.b16 %v238
      %v313 = vunpack.c.l.b16 %v239
      %v314 = vunpack.c.l.b16 %v240
      %v315 = vunpack.c.l.b16 %v241
      %v316 = vunpack.c.l.b16 %v242
      %v317 = vpack.c.b16 %v286, %v285
      %v318 = vpack.c.b16 %v288, %v287
      %v319 = vpack.c.b16 %v290, %v289
      %v320 = vpack.c.b16 %v292, %v291
      %v321 = vpack.c.b16 %v294, %v293
      %v322 = vpack.c.b16 %v296, %v295
      %v323 = vpack.c.b16 %v298, %v297
      %v324 = vpack.c.b16 %v300, %v299
      %v325 = vpack.c.b16 %v302, %v301
      %v326 = vpack.c.b16 %v304, %v303
      %v327 = vpack.c.b16 %v306, %v305
      %v328 = vpack.c.b16 %v308, %v307
      %v329 = vpack.c.b16 %v310, %v309
      %v330 = vpack.c.b16 %v312, %v311
      %v331 = vpack.c.b16 %v314, %v313
      %v332 = vpack.c.b16 %v316, %v315
      %v336 = vunpack.c.l.b16 %v243
      %v337 = vunpack.c.l.b16 %v244
      %v338 = vunpack.c.l.b16 %v245
      %v339 = vpack.c.b16 %v337, %v336
      %v340 = vpack.c.b16 %v338, %v338
      %vm342 = vcmask 146432
      %v344 = vsel %vm342, %v317, 0
      %v347 = vsel %vm342, %v318, 0
      %v350 = vsel %vm342, %v319, 0
      %v353 = vsel %vm342, %v320, 0
      %v356 = vsel %vm342, %v321, 0
      %v359 = vsel %vm342, %v322, 0
      %v362 = vsel %vm342, %v323, 0
      %v365 = vsel %vm342, %v324, 0
      %v368 = vsel %vm342, %v325, 0
      %v371 = vsel %vm342, %v326, 0
      %v374 = vsel %vm342, %v327, 0
      %v377 = vsel %vm342, %v328, 0
      %v380 = vsel %vm342, %v329, 0
      %v383 = vsel %vm342, %v330, 0
      %v386 = vsel %vm342, %v331, 0
      %v389 = vsel %vm342, %v332, 0
      %vm391 = vcmask 1040384
      %v393 = vsel %vm391, %v340, 0
      %395 = vmatprep.subr.bf16.mxu0 0
      %396 = vmatpush1.bf16.msra.mxu0 %v339
      %397 = vmatprep.subr.bf16.mxu0 0
      %398 = vmatpush1.bf16.msra.mxu0 %v393
      %399 = vmatprep.subr.bf16.mxu0 0
      %400 = vmatpush1.bf16.msra.mxu0 0
      %401 = vmatprep.subr.bf16.mxu0 0
      %402 = vmatpush1.bf16.msra.mxu0 0
      %403 = vmatprep.subr.bf16.mxu0 0
      %404 = vmatpush1.bf16.msra.mxu0 0
      %405 = vmatprep.subr.bf16.mxu0 0
      %406 = vmatpush1.bf16.msra.mxu0 0
      %407 = vmatprep.subr.bf16.mxu0 0
      %408 = vmatpush1.bf16.msra.mxu0 0
      %409 = vmatprep.subr.bf16.mxu0 0
      %410 = vmatpush1.bf16.msra.mxu0 0
      %411 = vmatprep.subr.bf16.mxu0 0
      %412 = vmatpush1.bf16.msra.mxu0 0
      %413 = vmatprep.subr.bf16.mxu0 0
      %414 = vmatpush1.bf16.msra.mxu0 0
      %415 = vmatprep.subr.bf16.mxu0 0
      %416 = vmatpush1.bf16.msra.mxu0 0
      %417 = vmatprep.subr.bf16.mxu0 0
      %418 = vmatpush1.bf16.msra.mxu0 0
      %419 = vmatprep.subr.bf16.mxu0 0
      %420 = vmatpush1.bf16.msra.mxu0 0
      %421 = vmatprep.subr.bf16.mxu0 0
      %422 = vmatpush1.bf16.msra.mxu0 0
      %423 = vmatprep.subr.bf16.mxu0 0
      %424 = vmatpush1.bf16.msra.mxu0 0
      %425 = vmatprep.subr.bf16.mxu0 0
      %426 = vmatpush1.bf16.msra.mxu0 0
      %427 = vmatprep.mubr.bf16.mxu0 0
      %428 = vmatmul.mubr.bf16.gmra.mrb[0].mxu0 %v344
      %v429 = vpop.f32.mrb[0].mxu0
      %v430 = vadd.f32 %v251, %v429
      %v431 = vpop.f32.mrb[0].mxu0
      %v432 = vpop.f32.mrb[0].mxu0
      %v433 = vadd.f32 %v251, %v432
      %v434 = vpop.f32.mrb[0].mxu0
      %435 = vmatprep.mubr.bf16.mxu0 0
      %436 = vmatmul.mubr.bf16.gmra.mrb[0].mxu0 %v347
      %v437 = vpop.f32.mrb[0].mxu0
      %v438 = vadd.f32 %v251, %v437
      %v439 = vpop.f32.mrb[0].mxu0
      %v440 = vpop.f32.mrb[0].mxu0
      %v441 = vadd.f32 %v251, %v440
      %v442 = vpop.f32.mrb[0].mxu0
      %443 = vmatprep.mubr.bf16.mxu0 0
      %444 = vmatmul.mubr.bf16.gmra.mrb[0].mxu0 %v350
      %v445 = vpop.f32.mrb[0].mxu0
      %v446 = vadd.f32 %v251, %v445
      %v447 = vpop.f32.mrb[0].mxu0
      %v448 = vpop.f32.mrb[0].mxu0
      %v449 = vadd.f32 %v251, %v448
      %v450 = vpop.f32.mrb[0].mxu0
      %451 = vmatprep.mubr.bf16.mxu0 0
      %452 = vmatmul.mubr.bf16.gmra.mrb[0].mxu0 %v353
      %v453 = vpop.f32.mrb[0].mxu0
      %v454 = vadd.f32 %v251, %v453
      %v455 = vpop.f32.mrb[0].mxu0
      %v456 = vpop.f32.mrb[0].mxu0
      %v457 = vadd.f32 %v251, %v456
      %v458 = vpop.f32.mrb[0].mxu0
      %459 = vmatprep.mubr.bf16.mxu0 0
      %460 = vmatmul.mubr.bf16.gmra.mrb[0].mxu0 %v356
      %v461 = vpop.f32.mrb[0].mxu0
      %v462 = vadd.f32 %v251, %v461
      %v463 = vpop.f32.mrb[0].mxu0
      %v464 = vpop.f32.mrb[0].mxu0
      %v465 = vadd.f32 %v251, %v464
      %v466 = vpop.f32.mrb[0].mxu0
      %467 = vmatprep.mubr.bf16.mxu0 0
      %468 = vmatmul.mubr.bf16.gmra.mrb[0].mxu0 %v359
      %v469 = vpop.f32.mrb[0].mxu0
      %v470 = vadd.f32 %v251, %v469
      %v471 = vpop.f32.mrb[0].mxu0
      %v472 = vpop.f32.mrb[0].mxu0
      %v473 = vadd.f32 %v251, %v472
      %v474 = vpop.f32.mrb[0].mxu0
      %475 = vmatprep.mubr.bf16.mxu0 0
      %476 = vmatmul.mubr.bf16.gmra.mrb[0].mxu0 %v362
      %v477 = vpop.f32.mrb[0].mxu0
      %v478 = vadd.f32 %v251, %v477
      %v479 = vpop.f32.mrb[0].mxu0
      %v480 = vpop.f32.mrb[0].mxu0
      %v481 = vadd.f32 %v251, %v480
      %v482 = vpop.f32.mrb[0].mxu0
      %483 = vmatprep.mubr.bf16.mxu0 0
      %484 = vmatmul.mubr.bf16.gmra.mrb[0].mxu0 %v365
      %v485 = vpop.f32.mrb[0].mxu0
      %v486 = vadd.f32 %v251, %v485
      %v487 = vpop.f32.mrb[0].mxu0
      %v488 = vpop.f32.mrb[0].mxu0
      %v489 = vadd.f32 %v251, %v488
      %v490 = vpop.f32.mrb[0].mxu0
      %491 = vmatprep.mubr.bf16.mxu0 0
      %492 = vmatmul.mubr.bf16.gmra.mrb[0].mxu0 %v368
      %v493 = vpop.f32.mrb[0].mxu0
      %v494 = vadd.f32 %v251, %v493
      %v495 = vpop.f32.mrb[0].mxu0
      %v496 = vpop.f32.mrb[0].mxu0
      %v497 = vadd.f32 %v251, %v496
      %v498 = vpop.f32.mrb[0].mxu0
      %499 = vmatprep.mubr.bf16.mxu0 0
      %500 = vmatmul.mubr.bf16.gmra.mrb[0].mxu0 %v371
      %v501 = vpop.f32.mrb[0].mxu0
      %v502 = vadd.f32 %v251, %v501
      %v503 = vpop.f32.mrb[0].mxu0
      %v504 = vpop.f32.mrb[0].mxu0
      %v505 = vadd.f32 %v251, %v504
      %v506 = vpop.f32.mrb[0].mxu0
      %507 = vmatprep.mubr.bf16.mxu0 0
      %508 = vmatmul.mubr.bf16.gmra.mrb[0].mxu0 %v374
      %v509 = vpop.f32.mrb[0].mxu0
      %v510 = vadd.f32 %v251, %v509
      %v511 = vpop.f32.mrb[0].mxu0
      %v512 = vpop.f32.mrb[0].mxu0
      %v513 = vadd.f32 %v251, %v512
      %v514 = vpop.f32.mrb[0].mxu0
      %515 = vmatprep.mubr.bf16.mxu0 0
      %516 = vmatmul.mubr.bf16.gmra.mrb[0].mxu0 %v377
      %v517 = vpop.f32.mrb[0].mxu0
      %v518 = vadd.f32 %v251, %v517
      %v519 = vpop.f32.mrb[0].mxu0
      %v520 = vpop.f32.mrb[0].mxu0
      %v521 = vadd.f32 %v251, %v520
      %v522 = vpop.f32.mrb[0].mxu0
      %523 = vmatprep.mubr.bf16.mxu0 0
      %524 = vmatmul.mubr.bf16.gmra.mrb[0].mxu0 %v380
      %v525 = vpop.f32.mrb[0].mxu0
      %v526 = vadd.f32 %v251, %v525
      %v527 = vpop.f32.mrb[0].mxu0
      %v528 = vpop.f32.mrb[0].mxu0
      %v529 = vadd.f32 %v251, %v528
      %v530 = vpop.f32.mrb[0].mxu0
      %531 = vmatprep.mubr.bf16.mxu0 0
      %532 = vmatmul.mubr.bf16.gmra.mrb[0].mxu0 %v383
      %v533 = vpop.f32.mrb[0].mxu0
      %v534 = vadd.f32 %v251, %v533
      %v535 = vpop.f32.mrb[0].mxu0
      %v536 = vpop.f32.mrb[0].mxu0
      %v537 = vadd.f32 %v251, %v536
      %v538 = vpop.f32.mrb[0].mxu0
      %539 = vmatprep.mubr.bf16.mxu0 0
      %540 = vmatmul.mubr.bf16.gmra.mrb[0].mxu0 %v386
      %v541 = vpop.f32.mrb[0].mxu0
      %v542 = vadd.f32 %v251, %v541
      %v543 = vpop.f32.mrb[0].mxu0
      %v544 = vpop.f32.mrb[0].mxu0
      %v545 = vadd.f32 %v251, %v544
      %v546 = vpop.f32.mrb[0].mxu0
      %547 = vmatprep.mubr.bf16.mxu0 0
      %548 = vmatmul.mubr.bf16.gmra.mrb[0].mxu0 %v389
      %v549 = vpop.f32.mrb[0].mxu0
      %v550 = vadd.f32 %v251, %v549
      %v551 = vpop.f32.mrb[0].mxu0
      %v552 = vpop.f32.mrb[0].mxu0
      %v553 = vadd.f32 %v251, %v552
      %v554 = vpop.f32.mrb[0].mxu0
      %555 = vdwg.mxu0
      %556 = vst [vmem:[%s208] sm:$0xff] %v430
      %557 = vst [vmem:[%s208 + $0x8] sm:$0xff] %v433
      %558 = vst [vmem:[%s208 + $0x10] sm:$0xff] %v438
      %559 = vst [vmem:[%s208 + $0x18] sm:$0xff] %v441
      %560 = vst [vmem:[%s208 + $0x20] sm:$0xff] %v446
      %561 = vst [vmem:[%s208 + $0x28] sm:$0xff] %v449
      %562 = vst [vmem:[%s208 + $0x30] sm:$0xff] %v454
      %563 = vst [vmem:[%s208 + $0x38] sm:$0xff] %v457
      %564 = vst [vmem:[%s208 + $0x40] sm:$0xff] %v462
      %565 = vst [vmem:[%s208 + $0x48] sm:$0xff] %v465
      %566 = vst [vmem:[%s208 + $0x50] sm:$0xff] %v470
      %567 = vst [vmem:[%s208 + $0x58] sm:$0xff] %v473
      %568 = vst [vmem:[%s208 + $0x60] sm:$0xff] %v478
      %569 = vst [vmem:[%s208 + $0x68] sm:$0xff] %v481
      %570 = vst [vmem:[%s208 + $0x70] sm:$0xff] %v486
      %571 = vst [vmem:[%s208 + $0x78] sm:$0xff] %v489
      %572 = vst [vmem:[%s208 + $0x80] sm:$0xff] %v494
      %573 = vst [vmem:[%s208 + $0x88] sm:$0xff] %v497
      %574 = vst [vmem:[%s208 + $0x90] sm:$0xff] %v502
      %575 = vst [vmem:[%s208 + $0x98] sm:$0xff] %v505
      %576 = vst [vmem:[%s208 + $0xa0] sm:$0xff] %v510
      %577 = vst [vmem:[%s208 + $0xa8] sm:$0xff] %v513
      %578 = vst [vmem:[%s208 + $0xb0] sm:$0xff] %v518
      %579 = vst [vmem:[%s208 + $0xb8] sm:$0xff] %v521
      %580 = vst [vmem:[%s208 + $0xc0] sm:$0xff] %v526
      %581 = vst [vmem:[%s208 + $0xc8] sm:$0xff] %v529
      %582 = vst [vmem:[%s208 + $0xd0] sm:$0xff] %v534
      %583 = vst [vmem:[%s208 + $0xd8] sm:$0xff] %v537
      %584 = vst [vmem:[%s208 + $0xe0] sm:$0xff] %v542
      %585 = vst [vmem:[%s208 + $0xe8] sm:$0xff] %v545
      %586 = vst [vmem:[%s208 + $0xf0] sm:$0xff] %v550
      %587 = vst [vmem:[%s208 + $0xf8] sm:$0xff] %v553
      %s588 = smul.u32 32, %s19
      %p589 = scmp.lt.s32.totalorder %s18, 1
      %s590 = scalar_select %p589, %s18, 1
      %p591 = scmp.lt.s32.totalorder %s588, 31
      %s592 = scalar_select %p591, %s588, 31
      %s593 = smul.addr %s590, 32
      %s594 = sadd.s32 %s592, %s593
      %s595 = smul.addr %s594, 8
      %s596 = scalar_lea.vmem %s3, %s595
      // Predicated region
      $region33: #{bottleneck_mdconv_forward.5} parent=31 // pred_check
        %p597 = pneg %p116
      $region34: #{bottleneck_mdconv_forward.5} parent=31 // pred_check_branch
        %599 = sbr.rel (%p597) target = $region36
      $region35: #{bottleneck_mdconv_forward.5} parent=31 // pred_region
        %s600 = smul.u32 32, %s19
      $region36: #{bottleneck_mdconv_forward.5} parent=31 // pred_fallthru
        _
    $region32: #{bottleneck_mdconv_forward.5} parent=5 // pred_fallthru
      _
    %p601 = scmp.le.s32.totalorder 2, %s9
    // Predicated region
    $region37: #{bottleneck_mdconv_forward.5} parent=5 // pred_check
      %p602 = pneg %p601
    $region38: #{bottleneck_mdconv_forward.5} parent=5 // pred_check_branch
      %604 = sbr.rel (%p602) target = $region40
    $region39: #{bottleneck_mdconv_forward.5} parent=5 // pred_region
      %s605 = ssub.s32 %s9, 2
      // Predicated region
      $region41: #{bottleneck_mdconv_forward.5} parent=39 // pred_check
        %p606 = pneg %p122
      $region42: #{bottleneck_mdconv_forward.5} parent=39 // pred_check_branch
        %608 = sbr.rel (%p606) target = $region44
      $region43: #{bottleneck_mdconv_forward.5} parent=39 // pred_region
        %s609 = smul.u32 32, %s21
        %p610 = scmp.lt.s32.totalorder %s20, 1
        %s611 = scalar_select %p610, %s20, 1
        %p612 = scmp.lt.s32.totalorder %s609, 31
        %s613 = scalar_select %p612, %s609, 31
        %s614 = smul.addr %s611, 32
        %s615 = sadd.s32 %s613, %s614
        %s616 = smul.addr %s615, 8
        %s617 = scalar_lea.vmem %s3, %s616
      $region44: #{bottleneck_mdconv_forward.5} parent=39 // pred_fallthru
        _
    $region40: #{bottleneck_mdconv_forward.5} parent=5 // pred_fallthru
      _
  $region6: #{bottleneck_mdconv_forward.5} parent=0 // loop_footer
    %s13 = sadd.s32 1, %s9
  $region7: #{bottleneck_mdconv_forward.5} parent=0 // loop_footer_branch
    %8 = sbr.rel target = $region3
  $region8: #{bottleneck_mdconv_forward.5} parent=0 // loop_exit
    _

</llo_original>
